<compile_context>
chip_gen: v6e
topology: v6e:2x2x1
jax: 0.10.0
libtpu: 0.0.40
codegen_flags: <defaults>
</compile_context>

<pallas_src>
import functools
import math

import jax
import jax.numpy as jnp
from jax import lax
from jax.experimental import pallas as pl
from jax.experimental.pallas import tpu as pltpu


_LANE = 128


def _round_up(v, m):
    return ((v + m - 1) // m) * m


def _choose_tile_m(M):
    # Prefer big tiles, but keep >=2 grid steps when possible (megacore)
    # and avoid padding M whenever a clean divisor exists.
    for t in (512, 256, 128):
        if M % t == 0 and M // t >= 2:
            return t
    for t in (512, 256, 128):
        if M % t == 0:
            return t
    return 128


# ---------------------------------------------------------------------------
# Pallas kernel 1: matmul + bias (conv hot path via NHWC im2col)
# ---------------------------------------------------------------------------
def _matmul_bias_kernel(a_ref, w_ref, b_ref, o_ref):
    acc = jnp.dot(a_ref[...], w_ref[...], preferred_element_type=jnp.float32)
    o_ref[...] = (acc + b_ref[...]).astype(o_ref.dtype)


def matmul_bias(a, w, b):
    """a: (M, K), w: (K, N), b: (N,)  ->  (M, Np) f32 with Np = round_up(N, 128).
    Lane-dense output (caller slices [:, :N]); bf16 MXU operands, f32 accum."""
    M, K = a.shape
    Kw, N = w.shape
    assert K == Kw
    Np = _round_up(N, _LANE)

    a16 = a.astype(jnp.bfloat16)
    w16 = jnp.pad(w, ((0, 0), (0, Np - N))).astype(jnp.bfloat16)
    b2 = jnp.pad(b.astype(jnp.float32), (0, Np - N)).reshape(1, Np)

    tile_m = _choose_tile_m(M)
    Mp = _round_up(M, tile_m)
    if Mp != M:
        a16 = jnp.pad(a16, ((0, Mp - M), (0, 0)))

    # VMEM estimate: double-buffered bf16 inputs + f32 output tile (+ headroom).
    vmem_bytes = (2 * (tile_m * K + K * Np) * 2
                  + 2 * tile_m * Np * 4
                  + (2 << 20))
    out = pl.pallas_call(
        _matmul_bias_kernel,
        out_shape=jax.ShapeDtypeStruct((Mp, Np), jnp.float32),
        grid_spec=pltpu.PrefetchScalarGridSpec(
            num_scalar_prefetch=0,
            grid=(Mp // tile_m,),
            in_specs=[
                pl.BlockSpec((tile_m, K), lambda i: (i, 0)),
                pl.BlockSpec((K, Np), lambda i: (0, 0)),
                pl.BlockSpec((1, Np), lambda i: (0, 0)),
            ],
            out_specs=pl.BlockSpec((tile_m, Np), lambda i: (i, 0)),
        ),
        compiler_params=pltpu.CompilerParams(
            dimension_semantics=("parallel",),
            vmem_limit_bytes=min(64 << 20, max(8 << 20, vmem_bytes))),
    )(a16, w16, b2)
    if Mp != M:
        out = out[:M]
    return out


# ---------------------------------------------------------------------------
# Pallas kernel 2: fused GroupNorm + activation (PyTorch GroupNorm semantics),
# channels-last, grid over batch, group reduction via a tiny MXU matmul.
# ---------------------------------------------------------------------------
def _gn_act_kernel(x_ref, g_ref, b_ref, m_ref, o_ref, *, inv_n, eps, act):
    hw = x_ref.shape[1]
    c = x_ref.shape[2]
    x2 = x_ref[...].astype(jnp.float32).reshape(hw, c)          # (HW, C)
    gmat = m_ref[...]                                           # (C, C) group mask
    gsum = jnp.sum(jnp.dot(x2, gmat, preferred_element_type=jnp.float32),
                   axis=0, keepdims=True)                       # (1, C)
    mean = gsum * inv_n
    d = x2 - mean
    gvar = jnp.sum(jnp.dot(d * d, gmat, preferred_element_type=jnp.float32),
                   axis=0, keepdims=True) * inv_n               # (1, C)
    y = d * lax.rsqrt(gvar + eps)
    y = y * g_ref[...].reshape(1, c) + b_ref[...].reshape(1, c)
    if act == "tanh":
        y = jnp.tanh(y)
    elif act == "relu":
        y = jnp.maximum(y, 0.0)
    o_ref[...] = y.reshape(1, hw, c).astype(o_ref.dtype)


def groupnorm_act_nhwc(x, gamma, beta, num_groups, *, eps=1e-5, act="none"):
    """x: (B, H, W, C) channels-last; per-(sample, group) normalization + act."""
    B, H, W, C = x.shape
    G = num_groups
    assert C % G == 0, (C, G)
    Cg = C // G
    HW = H * W
    xr = x.reshape(B, HW, C)
    ch = jnp.arange(C) // Cg
    gmat = (ch[:, None] == ch[None, :]).astype(jnp.float32)     # (C, C)
    g = gamma.astype(jnp.float32).reshape(1, 1, C)
    bb = beta.astype(jnp.float32).reshape(1, 1, C)
    kern = functools.partial(_gn_act_kernel, inv_n=1.0 / (Cg * HW), eps=eps, act=act)
    vmem_bytes = 4 * HW * C * 4 + C * C * 4 + (2 << 20)
    out = pl.pallas_call(
        kern,
        out_shape=jax.ShapeDtypeStruct((B, HW, C), x.dtype),
        grid_spec=pltpu.PrefetchScalarGridSpec(
            num_scalar_prefetch=0,
            grid=(B,),
            in_specs=[
                pl.BlockSpec((1, HW, C), lambda b: (b, 0, 0)),
                pl.BlockSpec((1, 1, C), lambda b: (0, 0, 0)),
                pl.BlockSpec((1, 1, C), lambda b: (0, 0, 0)),
                pl.BlockSpec((C, C), lambda b: (0, 0)),
            ],
            out_specs=pl.BlockSpec((1, HW, C), lambda b: (b, 0, 0)),
        ),
        compiler_params=pltpu.CompilerParams(
            dimension_semantics=("parallel",),
            vmem_limit_bytes=min(32 << 20, max(8 << 20, vmem_bytes))),
    )(xr, g, bb, gmat)
    return out.reshape(B, H, W, C)


# ---------------------------------------------------------------------------
# Pallas kernel 3: fused snake-conv matmul + bias + GroupNorm + ReLU
# (handles BOTH DSConv branches in one call via a block-diagonal weight).
# ---------------------------------------------------------------------------
def _snakeconv_gn_relu_kernel(a_ref, w_ref, b_ref, g_ref, bt_ref, m_ref,
                              o_ref, *, inv_n, eps):
    hw = a_ref.shape[1]
    kc = a_ref.shape[2]
    npad = o_ref.shape[2]
    a = a_ref[...].reshape(hw, kc)                               # bf16 (HW, 2KC)
    y = jnp.dot(a, w_ref[...], preferred_element_type=jnp.float32) + b_ref[...]
    gmat = m_ref[...]                                            # (Np, Np)
    gsum = jnp.sum(jnp.dot(y, gmat, preferred_element_type=jnp.float32),
                   axis=0, keepdims=True)
    mean = gsum * inv_n
    d = y - mean
    gvar = jnp.sum(jnp.dot(d * d, gmat, preferred_element_type=jnp.float32),
                   axis=0, keepdims=True) * inv_n
    out = d * lax.rsqrt(gvar + eps)
    out = out * g_ref[...] + bt_ref[...]
    out = jnp.maximum(out, 0.0)
    o_ref[...] = out.reshape(1, hw, npad).astype(o_ref.dtype)


def snakeconv_gn_relu(a, w, bias, gamma, beta, *, group_size, eps=1e-5):
    """a: (B, HW, KC2) deformed features; w: (KC2, C2) block-diagonal snake-conv
    weight.  Fused matmul + bias + GroupNorm(group_size) + ReLU.  -> (B, HW, C2)."""
    B, HW, KC2 = a.shape
    _, C2 = w.shape
    Np = _round_up(C2, _LANE)

    a16 = a.astype(jnp.bfloat16)
    w16 = jnp.pad(w, ((0, 0), (0, Np - C2))).astype(jnp.bfloat16)
    b2 = jnp.pad(bias.astype(jnp.float32), (0, Np - C2)).reshape(1, Np)
    g2 = jnp.pad(gamma.astype(jnp.float32), (0, Np - C2)).reshape(1, Np)
    bt2 = jnp.pad(beta.astype(jnp.float32), (0, Np - C2)).reshape(1, Np)
    idx = jnp.arange(Np)
    # padded channels get unique negative ids -> isolated groups (stay exactly 0)
    grp = jnp.where(idx < C2, idx // group_size, -1 - idx)
    gmat = (grp[:, None] == grp[None, :]).astype(jnp.float32)    # (Np, Np)

    kern = functools.partial(_snakeconv_gn_relu_kernel,
                             inv_n=1.0 / (group_size * HW), eps=eps)
    vmem_bytes = (2 * HW * KC2 * 2 + KC2 * Np * 2 + Np * Np * 4
                  + 2 * HW * Np * 4 + (2 << 20))
    out = pl.pallas_call(
        kern,
        out_shape=jax.ShapeDtypeStruct((B, HW, Np), jnp.float32),
        grid_spec=pltpu.PrefetchScalarGridSpec(
            num_scalar_prefetch=0,
            grid=(B,),
            in_specs=[
                pl.BlockSpec((1, HW, KC2), lambda b: (b, 0, 0)),
                pl.BlockSpec((KC2, Np), lambda b: (0, 0)),
                pl.BlockSpec((1, Np), lambda b: (0, 0)),
                pl.BlockSpec((1, Np), lambda b: (0, 0)),
                pl.BlockSpec((1, Np), lambda b: (0, 0)),
                pl.BlockSpec((Np, Np), lambda b: (0, 0)),
            ],
            out_specs=pl.BlockSpec((1, HW, Np), lambda b: (b, 0, 0)),
        ),
        compiler_params=pltpu.CompilerParams(
            dimension_semantics=("parallel",),
            vmem_limit_bytes=min(64 << 20, max(8 << 20, vmem_bytes))),
    )(a16, w16, b2, g2, bt2, gmat)
    return out[:, :, :C2]


# ---------------------------------------------------------------------------
# Conv2d (NHWC) = im2col (JAX strided-slice glue) + Pallas matmul
# ---------------------------------------------------------------------------
def conv2d_nhwc(x, w, b, *, stride=1, padding=0):
    """x: (B, H, W, Cin) NHWC, w: (Cout, Cin, KH, KW) (PyTorch layout), b: (Cout,)."""
    # TODO(synk): fold im2col into the Pallas pipeline (KH*KW grid axis + f32
    # accumulator) to avoid materializing the KH*KW-expanded patch matrix in HBM.
    B, H, W, Cin = x.shape
    Cout, _, KH, KW = w.shape
    Ho = (H + 2 * padding - KH) // stride + 1
    Wo = (W + 2 * padding - KW) // stride + 1
    xp = jnp.pad(x, ((0, 0), (padding, padding), (padding, padding), (0, 0)))
    cols = []
    for kh in range(KH):
        for kw in range(KW):
            cols.append(lax.slice(
                xp,
                (0, kh, kw, 0),
                (B, kh + (Ho - 1) * stride + 1, kw + (Wo - 1) * stride + 1, Cin),
                (1, stride, stride, 1)))
    a = jnp.concatenate(cols, axis=-1).reshape(B * Ho * Wo, KH * KW * Cin)
    # weight rows ordered (kh, kw, cin) to match the im2col column order
    wm = jnp.transpose(w, (2, 3, 1, 0)).reshape(KH * KW * Cin, Cout)
    out = matmul_bias(a, wm, b)                                  # (B*Ho*Wo, Np)
    return out[:, :Cout].reshape(B, Ho, Wo, Cout)


# ---------------------------------------------------------------------------
# Dynamic-snake coordinates + bilinear sampling (DSConv_pro), channels-last
# ---------------------------------------------------------------------------
def _snake_coordinates(offset, morph, extend_scope):
    """offset: (B, H, W, 2K) in [-1, 1]. Returns per-(b,h,w,k) sample coords (y, x)."""
    B, H, W, twoK = offset.shape
    K = twoK // 2
    center = K // 2
    y_off = offset[..., :K]
    x_off = offset[..., K:]

    def cumulative(off):  # outward accumulation from the kernel center (center = 0)
        lower = jnp.cumsum(off[..., :center][..., ::-1], axis=-1)[..., ::-1]
        upper = jnp.cumsum(off[..., center + 1:], axis=-1)
        zero = jnp.zeros_like(off[..., :1])
        return jnp.concatenate([lower, zero, upper], axis=-1)

    h_grid = jnp.arange(H, dtype=jnp.float32)[None, :, None, None]
    w_grid = jnp.arange(W, dtype=jnp.float32)[None, None, :, None]
    spread = jnp.linspace(-center, center, K, dtype=jnp.float32)[None, None, None, :]

    if morph == 0:
        # kernel extends along x (spread on x); y positions snake via offsets
        y = jnp.broadcast_to(h_grid + cumulative(y_off) * extend_scope, (B, H, W, K))
        x = jnp.broadcast_to(w_grid + spread, (B, H, W, K))
    else:
        # kernel extends along y (spread on y); x positions snake via offsets
        y = jnp.broadcast_to(h_grid + spread, (B, H, W, K))
        x = jnp.broadcast_to(w_grid + cumulative(x_off) * extend_scope, (B, H, W, K))
    return y, x


def bilinear_sample_nhwc(feat, y, x):
    """feat: (B, H, W, C); y, x: (B, Ho, Wo, K) -> (B, Ho, Wo, K, C).
    Matches clamp-to-border coords + F.grid_sample(align_corners=True).
    All four corner gathers share ONE stacked take_along_axis."""
    # TODO(synk): data-dependent gather kept in plain JAX (channels-last whole-row
    # gathers); a Pallas scalar-prefetch / manual-DMA gather kernel would be next.
    B, H, W, C = feat.shape
    _, Ho, Wo, K = y.shape
    Npix = Ho * Wo * K
    y = jnp.clip(y, 0.0, H - 1.0)
    x = jnp.clip(x, 0.0, W - 1.0)
    y0 = jnp.floor(y)
    x0 = jnp.floor(x)
    wy1 = (y - y0).reshape(B, 1, Npix, 1)
    wx1 = (x - x0).reshape(B, 1, Npix, 1)
    y0i = y0.astype(jnp.int32)
    x0i = x0.astype(jnp.int32)
    y1i = jnp.minimum(y0i + 1, H - 1)
    x1i = jnp.minimum(x0i + 1, W - 1)

    featf = feat.reshape(B, H * W, C)
    lin = jnp.stack([y0i * W + x0i, y0i * W + x1i,
                     y1i * W + x0i, y1i * W + x1i], axis=1)      # (B, 4, Ho, Wo, K)
    lin = lin.reshape(B, 4 * Npix, 1)
    v = jnp.take_along_axis(featf, lin, axis=1).reshape(B, 4, Npix, C)

    wy0 = 1.0 - wy1
    wx0 = 1.0 - wx1
    wts = jnp.concatenate([wy0 * wx0, wy0 * wx1, wy1 * wx0, wy1 * wx1], axis=1)
    out = jnp.sum(wts * v, axis=1)                               # (B, Npix, C)
    return out.reshape(B, Ho, Wo, K, C)


# ---------------------------------------------------------------------------
# DSCModule forward: NCHW in / NCHW out, NHWC internally
# ---------------------------------------------------------------------------
def dsc_module(x_nchw, params, *, kernel=3, stride=1, remove_dsc=False,
               extend_scope=1.0):
    pad = math.ceil(kernel / 2) - 1
    x = jnp.transpose(x_nchw, (0, 2, 3, 1))                      # NCHW -> NHWC (once)
    B, H, W, Cin = x.shape

    if remove_dsc:
        cat = conv2d_nhwc(x, params["conv_w"], params["conv_b"],
                          stride=1, padding=pad)
    else:
        px, py = params["xdsc"], params["ydsc"]
        Cout = params["conv_w"].shape[0]
        K2 = px["offset_w"].shape[0]                             # 2*K
        K = K2 // 2
        assert Cout % 4 == 0, Cout

        if kernel == 3 and pad == 1:
            # Fuse the three 3x3 convs that share input x: 1 im2col + 1 matmul.
            w_f = jnp.concatenate([params["conv_w"],
                                   px["offset_w"], py["offset_w"]], axis=0)
            b_f = jnp.concatenate([params["conv_b"],
                                   px["offset_b"], py["offset_b"]], axis=0)
            fused = conv2d_nhwc(x, w_f, b_f, stride=1, padding=1)
            c = fused[..., :Cout]
            off_raw = fused[..., Cout:Cout + 2 * K2]             # [x_off | y_off]
        else:
            c = conv2d_nhwc(x, params["conv_w"], params["conv_b"],
                            stride=1, padding=pad)
            xo = conv2d_nhwc(x, px["offset_w"], px["offset_b"], stride=1, padding=1)
            yo = conv2d_nhwc(x, py["offset_w"], py["offset_b"], stride=1, padding=1)
            off_raw = jnp.concatenate([xo, yo], axis=-1)

        # Fused GroupNorm(K) + tanh for BOTH offset branches (groups never cross
        # the branch boundary, so channel concat is exactly equivalent).
        off = groupnorm_act_nhwc(
            off_raw,
            jnp.concatenate([px["gn_off_g"], py["gn_off_g"]]),
            jnp.concatenate([px["gn_off_b"], py["gn_off_b"]]),
            num_groups=2 * K, act="tanh")
        x_off = off[..., :K2]
        y_off = off[..., K2:]

        # Snake coordinates for both morphs, sampled with ONE stacked gather.
        y0c, x0c = _snake_coordinates(x_off, 0, extend_scope)
        y1c, x1c = _snake_coordinates(y_off, 1, extend_scope)
        ys = jnp.concatenate([y0c, y1c], axis=-1)                # (B, H, W, 2K)
        xs = jnp.concatenate([x0c, x1c], axis=-1)
        deformed = bilinear_sample_nhwc(x, ys, xs)               # (B, H, W, 2K, Cin)
        a = deformed.reshape(B, H * W, 2 * K * Cin)

        # Block-diagonal snake-conv weight -> one fused matmul + GN + ReLU kernel
        # producing [xd | yd] in a single lane-dense output slab.
        KC = K * Cin
        wx = jnp.transpose(px["dsc_w"].reshape(Cout, Cin, K), (2, 1, 0)).reshape(KC, Cout)
        wy = jnp.transpose(py["dsc_w"].reshape(Cout, Cin, K), (2, 1, 0)).reshape(KC, Cout)
        w_bd = jnp.zeros((2 * KC, 2 * Cout), jnp.float32)
        w_bd = w_bd.at[:KC, :Cout].set(wx).at[KC:, Cout:].set(wy)
        group_size = Cout // (Cout // 4)                          # == 4
        xdyd = snakeconv_gn_relu(
            a, w_bd,
            jnp.concatenate([px["dsc_b"], py["dsc_b"]]),
            jnp.concatenate([px["gn_g"], py["gn_g"]]),
            jnp.concatenate([px["gn_b"], py["gn_b"]]),
            group_size=group_size)
        xdyd = xdyd.reshape(B, H, W, 2 * Cout)                    # [xd | yd]
        cat = jnp.concatenate([c, xdyd], axis=-1)                 # [c | xd | yd]

    out = conv2d_nhwc(cat, params["enc_w"], params["enc_b"],
                      stride=stride, padding=pad)
    return jnp.transpose(out, (0, 3, 1, 2))                       # NHWC -> NCHW


# ---------------------------------------------------------------------------
# Deterministic parameter initialization (shapes from DSCModule.__init__)
# ---------------------------------------------------------------------------
def init_params(key, in_channels, out_channels, kernel=3):
    K = kernel * kernel                      # snake kernel_size = kernel**2
    ks = jax.random.split(key, 12)

    def w(k, shape, scale=0.1):
        return jax.random.normal(k, shape, jnp.float32) * scale

    def dsconv_params(k0, k1, k2, k3, morph):
        dsc_shape = ((out_channels, in_channels, K, 1) if morph == 0
                     else (out_channels, in_channels, 1, K))
        return {
            "offset_w": w(k0, (2 * K, in_channels, 3, 3)),
            "offset_b": w(k1, (2 * K,)),
            "gn_off_g": jnp.ones((2 * K,), jnp.float32),
            "gn_off_b": jnp.zeros((2 * K,), jnp.float32),
            "dsc_w": w(k2, dsc_shape),
            "dsc_b": w(k3, (out_channels,)),
            "gn_g": jnp.ones((out_channels,), jnp.float32),
            "gn_b": jnp.zeros((out_channels,), jnp.float32),
        }

    return {
        "conv_w": w(ks[0], (out_channels, in_channels, kernel, kernel)),
        "conv_b": w(ks[1], (out_channels,)),
        "xdsc": dsconv_params(ks[2], ks[3], ks[4], ks[5], 0),
        "ydsc": dsconv_params(ks[6], ks[7], ks[8], ks[9], 1),
        "enc_w": w(ks[10], (out_channels, out_channels * 3, kernel, kernel)),
        "enc_b": w(ks[11], (out_channels,)),
    }


if __name__ == "__main__":
    key = jax.random.PRNGKey(0)
    kx, kp = jax.random.split(key)
    B, Cin, H, W = 2, 4, 16, 16
    Cout = 8
    x = jax.random.normal(kx, (B, Cin, H, W), jnp.float32)
    params = init_params(kp, Cin, Cout, kernel=3)

    fwd = jax.jit(functools.partial(dsc_module, kernel=3, stride=1,
                                    remove_dsc=False))
    out = fwd(x, params)
    jax.block_until_ready(out)
    assert out.shape == (B, Cout, H, W), out.shape
    assert bool(jnp.all(jnp.isfinite(out)))
    print("KERNEL_OK")
</pallas_src>

<mosaic_0001>
module attributes {stable_mosaic.version = 11 : i64} {
  func.func @_matmul_bias_kernel(%arg0: i32, %arg1: memref<256x36xbf16, #tpu.memory_space<vmem>>, %arg2: memref<36x128xbf16, #tpu.memory_space<vmem>>, %arg3: memref<1x128xf32, #tpu.memory_space<vmem>>, %arg4: memref<256x128xf32, #tpu.memory_space<vmem>>) attributes {dimension_semantics = [#tpu.dimension_semantics<parallel>], iteration_bounds = array<i64: 2>, scalar_prefetch = 0 : i64, scratch_operands = 0 : i64, tpu.core_type = #tpu.core_type<tc>, window_params = [{transform_indices = @transform_0, window_bounds = array<i64: 256, 36>}, {pipeline_mode = #tpu.pipeline_mode<synchronous>, transform_indices = @transform_1, window_bounds = array<i64: 36, 128>}, {pipeline_mode = #tpu.pipeline_mode<synchronous>, transform_indices = @transform_2, window_bounds = array<i64: 1, 128>}, {transform_indices = @transform_3, window_bounds = array<i64: 256, 128>}]} {
    %c0 = arith.constant 0 : index
    %c0_0 = arith.constant 0 : index
    %0 = vector.load %arg1[%c0, %c0_0] : memref<256x36xbf16, #tpu.memory_space<vmem>>, vector<256x36xbf16>
    %c0_1 = arith.constant 0 : index
    %c0_2 = arith.constant 0 : index
    %1 = vector.load %arg2[%c0_1, %c0_2] : memref<36x128xbf16, #tpu.memory_space<vmem>>, vector<36x128xbf16>
    %cst = arith.constant dense<0.000000e+00> : vector<256x128xf32>
    %2 = tpu.matmul %0, %1, %cst {dimension_numbers = #tpu.dot_dimension_numbers<[1], [0], [0], [1], [0, 0, 1, 1], [], []>} : vector<256x36xbf16>, vector<36x128xbf16>, vector<256x128xf32> -> vector<256x128xf32>
    %c0_3 = arith.constant 0 : index
    %c0_4 = arith.constant 0 : index
    %3 = vector.load %arg3[%c0_3, %c0_4] : memref<1x128xf32, #tpu.memory_space<vmem>>, vector<1x128xf32>
    %4 = vector.broadcast %3 : vector<1x128xf32> to vector<256x128xf32>
    %5 = arith.addf %2, %4 : vector<256x128xf32>
    %c0_5 = arith.constant 0 : index
    %c0_6 = arith.constant 0 : index
    %6 = vector.load %arg4[%c0_5, %c0_6] : memref<256x128xf32, #tpu.memory_space<vmem>>, vector<256x128xf32>
    tpu.vector_store %arg4[%c0_5, %c0_6], %5 {strides = array<i32>} : memref<256x128xf32, #tpu.memory_space<vmem>>, vector<256x128xf32>,
    return
  }
  func.func @transform_0(%arg0: i32) -> (i32, i32) {
    %c0_i32 = arith.constant 0 : i32
    %c0_i32_0 = arith.constant 0 : i32
    return %arg0, %c0_i32 : i32, i32
  }
  func.func @transform_1(%arg0: i32) -> (i32, i32) {
    %c0_i32 = arith.constant 0 : i32
    %c0_i32_0 = arith.constant 0 : i32
    %c0_i32_1 = arith.constant 0 : i32
    return %c0_i32, %c0_i32_0 : i32, i32
  }
  func.func @transform_2(%arg0: i32) -> (i32, i32) {
    %c0_i32 = arith.constant 0 : i32
    %c0_i32_0 = arith.constant 0 : i32
    %c0_i32_1 = arith.constant 0 : i32
    return %c0_i32, %c0_i32_0 : i32, i32
  }
  func.func @transform_3(%arg0: i32) -> (i32, i32) {
    %c0_i32 = arith.constant 0 : i32
    %c0_i32_0 = arith.constant 0 : i32
    return %arg0, %c0_i32 : i32, i32
  }
}

module attributes {stable_mosaic.version = 11 : i64} {
  func.func @_gn_act_kernel(%arg0: i32, %arg1: memref<1x256x36xf32, #tpu.memory_space<vmem>>, %arg2: memref<1x1x36xf32, #tpu.memory_space<vmem>>, %arg3: memref<1x1x36xf32, #tpu.memory_space<vmem>>, %arg4: memref<36x36xf32, #tpu.memory_space<vmem>>, %arg5: memref<1x256x36xf32, #tpu.memory_space<vmem>>) attributes {dimension_semantics = [#tpu.dimension_semantics<parallel>], iteration_bounds = array<i64: 2>, scalar_prefetch = 0 : i64, scratch_operands = 0 : i64, tpu.core_type = #tpu.core_type<tc>, window_params = [{transform_indices = @transform_0, window_bounds = array<i64: 1, 256, 36>}, {pipeline_mode = #tpu.pipeline_mode<synchronous>, transform_indices = @transform_1, window_bounds = array<i64: 1, 1, 36>}, {pipeline_mode = #tpu.pipeline_mode<synchronous>, transform_indices = @transform_2, window_bounds = array<i64: 1, 1, 36>}, {pipeline_mode = #tpu.pipeline_mode<synchronous>, transform_indices = @transform_3, window_bounds = array<i64: 36, 36>}, {transform_indices = @transform_4, window_bounds = array<i64: 1, 256, 36>}]} {
    %c0 = arith.constant 0 : index
    %c0_0 = arith.constant 0 : index
    %c0_1 = arith.constant 0 : index
    %0 = vector.load %arg1[%c0, %c0_0, %c0_1] : memref<1x256x36xf32, #tpu.memory_space<vmem>>, vector<1x256x36xf32>
    %1 = vector.shape_cast %0 : vector<1x256x36xf32> to vector<256x36xf32>
    %c0_2 = arith.constant 0 : index
    %c0_3 = arith.constant 0 : index
    %2 = vector.load %arg4[%c0_2, %c0_3] : memref<36x36xf32, #tpu.memory_space<vmem>>, vector<36x36xf32>
    %cst = arith.constant dense<0.000000e+00> : vector<256x36xf32>
    %3 = tpu.matmul %1, %2, %cst {dimension_numbers = #tpu.dot_dimension_numbers<[1], [0], [0], [1], [0, 0, 1, 1], [], []>} : vector<256x36xf32>, vector<36x36xf32>, vector<256x36xf32> -> vector<256x36xf32>
    %cst_4 = arith.constant dense<0.000000e+00> : vector<36xf32>
    %4 = vector.multi_reduction <add>, %3, %cst_4 [0] : vector<256x36xf32> to vector<36xf32>
    %5 = vector.shape_cast %4 : vector<36xf32> to vector<1x36xf32>
    %cst_5 = arith.constant 0.001953125 : f32
    %6 = vector.broadcast %cst_5 : f32 to vector<1x36xf32>
    %7 = arith.mulf %5, %6 : vector<1x36xf32>
    %8 = vector.broadcast %7 : vector<1x36xf32> to vector<256x36xf32>
    %9 = arith.subf %1, %8 : vector<256x36xf32>
    %10 = arith.mulf %9, %9 : vector<256x36xf32>
    %cst_6 = arith.constant dense<0.000000e+00> : vector<256x36xf32>
    %11 = tpu.matmul %10, %2, %cst_6 {dimension_numbers = #tpu.dot_dimension_numbers<[1], [0], [0], [1], [0, 0, 1, 1], [], []>} : vector<256x36xf32>, vector<36x36xf32>, vector<256x36xf32> -> vector<256x36xf32>
    %cst_7 = arith.constant dense<0.000000e+00> : vector<36xf32>
    %12 = vector.multi_reduction <add>, %11, %cst_7 [0] : vector<256x36xf32> to vector<36xf32>
    %13 = vector.shape_cast %12 : vector<36xf32> to vector<1x36xf32>
    %cst_8 = arith.constant 0.001953125 : f32
    %14 = vector.broadcast %cst_8 : f32 to vector<1x36xf32>
    %15 = arith.mulf %13, %14 : vector<1x36xf32>
    %cst_9 = arith.constant 9.99999974E-6 : f32
    %16 = vector.broadcast %cst_9 : f32 to vector<1x36xf32>
    %17 = arith.addf %15, %16 : vector<1x36xf32>
    %18 = math.rsqrt %17 : vector<1x36xf32>
    %19 = vector.broadcast %18 : vector<1x36xf32> to vector<256x36xf32>
    %20 = arith.mulf %9, %19 : vector<256x36xf32>
    %c0_10 = arith.constant 0 : index
    %c0_11 = arith.constant 0 : index
    %c0_12 = arith.constant 0 : index
    %21 = vector.load %arg2[%c0_10, %c0_11, %c0_12] : memref<1x1x36xf32, #tpu.memory_space<vmem>>, vector<1x1x36xf32>
    %22 = vector.shape_cast %21 : vector<1x1x36xf32> to vector<1x36xf32>
    %23 = vector.broadcast %22 : vector<1x36xf32> to vector<256x36xf32>
    %24 = arith.mulf %20, %23 : vector<256x36xf32>
    %c0_13 = arith.constant 0 : index
    %c0_14 = arith.constant 0 : index
    %c0_15 = arith.constant 0 : index
    %25 = vector.load %arg3[%c0_13, %c0_14, %c0_15] : memref<1x1x36xf32, #tpu.memory_space<vmem>>, vector<1x1x36xf32>
    %26 = vector.shape_cast %25 : vector<1x1x36xf32> to vector<1x36xf32>
    %27 = vector.broadcast %26 : vector<1x36xf32> to vector<256x36xf32>
    %28 = arith.addf %24, %27 : vector<256x36xf32>
    %29 = math.tanh %28 : vector<256x36xf32>
    %30 = vector.shape_cast %29 : vector<256x36xf32> to vector<1x256x36xf32>
    %c0_16 = arith.constant 0 : index
    %c0_17 = arith.constant 0 : index
    %c0_18 = arith.constant 0 : index
    %31 = vector.load %arg5[%c0_16, %c0_17, %c0_18] : memref<1x256x36xf32, #tpu.memory_space<vmem>>, vector<1x256x36xf32>
    tpu.vector_store %arg5[%c0_16, %c0_17, %c0_18], %30 {strides = array<i32>} : memref<1x256x36xf32, #tpu.memory_space<vmem>>, vector<1x256x36xf32>,
    return
  }
  func.func @transform_0(%arg0: i32) -> (i32, i32, i32) {
    %c0_i32 = arith.constant 0 : i32
    %c0_i32_0 = arith.constant 0 : i32
    %c0_i32_1 = arith.constant 0 : i32
    return %arg0, %c0_i32, %c0_i32_0 : i32, i32, i32
  }
  func.func @transform_1(%arg0: i32) -> (i32, i32, i32) {
    %c0_i32 = arith.constant 0 : i32
    %c0_i32_0 = arith.constant 0 : i32
    %c0_i32_1 = arith.constant 0 : i32
    %c0_i32_2 = arith.constant 0 : i32
    return %c0_i32, %c0_i32_0, %c0_i32_1 : i32, i32, i32
  }
  func.func @transform_2(%arg0: i32) -> (i32, i32, i32) {
    %c0_i32 = arith.constant 0 : i32
    %c0_i32_0 = arith.constant 0 : i32
    %c0_i32_1 = arith.constant 0 : i32
    %c0_i32_2 = arith.constant 0 : i32
    return %c0_i32, %c0_i32_0, %c0_i32_1 : i32, i32, i32
  }
  func.func @transform_3(%arg0: i32) -> (i32, i32) {
    %c0_i32 = arith.constant 0 : i32
    %c0_i32_0 = arith.constant 0 : i32
    %c0_i32_1 = arith.constant 0 : i32
    return %c0_i32, %c0_i32_0 : i32, i32
  }
  func.func @transform_4(%arg0: i32) -> (i32, i32, i32) {
    %c0_i32 = arith.constant 0 : i32
    %c0_i32_0 = arith.constant 0 : i32
    %c0_i32_1 = arith.constant 0 : i32
    return %arg0, %c0_i32, %c0_i32_0 : i32, i32, i32
  }
}

module attributes {stable_mosaic.version = 11 : i64} {
  func.func @_snakeconv_gn_relu_kernel(%arg0: i32, %arg1: memref<1x256x72xbf16, #tpu.memory_space<vmem>>, %arg2: memref<72x128xbf16, #tpu.memory_space<vmem>>, %arg3: memref<1x128xf32, #tpu.memory_space<vmem>>, %arg4: memref<1x128xf32, #tpu.memory_space<vmem>>, %arg5: memref<1x128xf32, #tpu.memory_space<vmem>>, %arg6: memref<128x128xf32, #tpu.memory_space<vmem>>, %arg7: memref<1x256x128xf32, #tpu.memory_space<vmem>>) attributes {dimension_semantics = [#tpu.dimension_semantics<parallel>], iteration_bounds = array<i64: 2>, scalar_prefetch = 0 : i64, scratch_operands = 0 : i64, tpu.core_type = #tpu.core_type<tc>, window_params = [{transform_indices = @transform_0, window_bounds = array<i64: 1, 256, 72>}, {pipeline_mode = #tpu.pipeline_mode<synchronous>, transform_indices = @transform_1, window_bounds = array<i64: 72, 128>}, {pipeline_mode = #tpu.pipeline_mode<synchronous>, transform_indices = @transform_2, window_bounds = array<i64: 1, 128>}, {pipeline_mode = #tpu.pipeline_mode<synchronous>, transform_indices = @transform_3, window_bounds = array<i64: 1, 128>}, {pipeline_mode = #tpu.pipeline_mode<synchronous>, transform_indices = @transform_4, window_bounds = array<i64: 1, 128>}, {pipeline_mode = #tpu.pipeline_mode<synchronous>, transform_indices = @transform_5, window_bounds = array<i64: 128, 128>}, {transform_indices = @transform_6, window_bounds = array<i64: 1, 256, 128>}]} {
    %c0 = arith.constant 0 : index
    %c0_0 = arith.constant 0 : index
    %c0_1 = arith.constant 0 : index
    %0 = vector.load %arg1[%c0, %c0_0, %c0_1] : memref<1x256x72xbf16, #tpu.memory_space<vmem>>, vector<1x256x72xbf16>
    %1 = vector.shape_cast %0 : vector<1x256x72xbf16> to vector<256x72xbf16>
    %c0_2 = arith.constant 0 : index
    %c0_3 = arith.constant 0 : index
    %2 = vector.load %arg2[%c0_2, %c0_3] : memref<72x128xbf16, #tpu.memory_space<vmem>>, vector<72x128xbf16>
    %cst = arith.constant dense<0.000000e+00> : vector<256x128xf32>
    %3 = tpu.matmul %1, %2, %cst {dimension_numbers = #tpu.dot_dimension_numbers<[1], [0], [0], [1], [0, 0, 1, 1], [], []>} : vector<256x72xbf16>, vector<72x128xbf16>, vector<256x128xf32> -> vector<256x128xf32>
    %c0_4 = arith.constant 0 : index
    %c0_5 = arith.constant 0 : index
    %4 = vector.load %arg3[%c0_4, %c0_5] : memref<1x128xf32, #tpu.memory_space<vmem>>, vector<1x128xf32>
    %5 = vector.broadcast %4 : vector<1x128xf32> to vector<256x128xf32>
    %6 = arith.addf %3, %5 : vector<256x128xf32>
    %c0_6 = arith.constant 0 : index
    %c0_7 = arith.constant 0 : index
    %7 = vector.load %arg6[%c0_6, %c0_7] : memref<128x128xf32, #tpu.memory_space<vmem>>, vector<128x128xf32>
    %cst_8 = arith.constant dense<0.000000e+00> : vector<256x128xf32>
    %8 = tpu.matmul %6, %7, %cst_8 {dimension_numbers = #tpu.dot_dimension_numbers<[1], [0], [0], [1], [0, 0, 1, 1], [], []>} : vector<256x128xf32>, vector<128x128xf32>, vector<256x128xf32> -> vector<256x128xf32>
    %cst_9 = arith.constant dense<0.000000e+00> : vector<128xf32>
    %9 = vector.multi_reduction <add>, %8, %cst_9 [0] : vector<256x128xf32> to vector<128xf32>
    %10 = vector.shape_cast %9 : vector<128xf32> to vector<1x128xf32>
    %cst_10 = arith.constant 9.765625E-4 : f32
    %11 = vector.broadcast %cst_10 : f32 to vector<1x128xf32>
    %12 = arith.mulf %10, %11 : vector<1x128xf32>
    %13 = vector.broadcast %12 : vector<1x128xf32> to vector<256x128xf32>
    %14 = arith.subf %6, %13 : vector<256x128xf32>
    %15 = arith.mulf %14, %14 : vector<256x128xf32>
    %cst_11 = arith.constant dense<0.000000e+00> : vector<256x128xf32>
    %16 = tpu.matmul %15, %7, %cst_11 {dimension_numbers = #tpu.dot_dimension_numbers<[1], [0], [0], [1], [0, 0, 1, 1], [], []>} : vector<256x128xf32>, vector<128x128xf32>, vector<256x128xf32> -> vector<256x128xf32>
    %cst_12 = arith.constant dense<0.000000e+00> : vector<128xf32>
    %17 = vector.multi_reduction <add>, %16, %cst_12 [0] : vector<256x128xf32> to vector<128xf32>
    %18 = vector.shape_cast %17 : vector<128xf32> to vector<1x128xf32>
    %cst_13 = arith.constant 9.765625E-4 : f32
    %19 = vector.broadcast %cst_13 : f32 to vector<1x128xf32>
    %20 = arith.mulf %18, %19 : vector<1x128xf32>
    %cst_14 = arith.constant 9.99999974E-6 : f32
    %21 = vector.broadcast %cst_14 : f32 to vector<1x128xf32>
    %22 = arith.addf %20, %21 : vector<1x128xf32>
    %23 = math.rsqrt %22 : vector<1x128xf32>
    %24 = vector.broadcast %23 : vector<1x128xf32> to vector<256x128xf32>
    %25 = arith.mulf %14, %24 : vector<256x128xf32>
    %c0_15 = arith.constant 0 : index
    %c0_16 = arith.constant 0 : index
    %26 = vector.load %arg4[%c0_15, %c0_16] : memref<1x128xf32, #tpu.memory_space<vmem>>, vector<1x128xf32>
    %27 = vector.broadcast %26 : vector<1x128xf32> to vector<256x128xf32>
    %28 = arith.mulf %25, %27 : vector<256x128xf32>
    %c0_17 = arith.constant 0 : index
    %c0_18 = arith.constant 0 : index
    %29 = vector.load %arg5[%c0_17, %c0_18] : memref<1x128xf32, #tpu.memory_space<vmem>>, vector<1x128xf32>
    %30 = vector.broadcast %29 : vector<1x128xf32> to vector<256x128xf32>
    %31 = arith.addf %28, %30 : vector<256x128xf32>
    %cst_19 = arith.constant 0.000000e+00 : f32
    %32 = vector.broadcast %cst_19 : f32 to vector<256x128xf32>
    %33 = arith.maximumf %31, %32 : vector<256x128xf32>
    %34 = vector.shape_cast %33 : vector<256x128xf32> to vector<1x256x128xf32>
    %c0_20 = arith.constant 0 : index
    %c0_21 = arith.constant 0 : index
    %c0_22 = arith.constant 0 : index
    %35 = vector.load %arg7[%c0_20, %c0_21, %c0_22] : memref<1x256x128xf32, #tpu.memory_space<vmem>>, vector<1x256x128xf32>
    tpu.vector_store %arg7[%c0_20, %c0_21, %c0_22], %34 {strides = array<i32>} : memref<1x256x128xf32, #tpu.memory_space<vmem>>, vector<1x256x128xf32>,
    return
  }
  func.func @transform_0(%arg0: i32) -> (i32, i32, i32) {
    %c0_i32 = arith.constant 0 : i32
    %c0_i32_0 = arith.constant 0 : i32
    %c0_i32_1 = arith.constant 0 : i32
    return %arg0, %c0_i32, %c0_i32_0 : i32, i32, i32
  }
  func.func @transform_1(%arg0: i32) -> (i32, i32) {
    %c0_i32 = arith.constant 0 : i32
    %c0_i32_0 = arith.constant 0 : i32
    %c0_i32_1 = arith.constant 0 : i32
    return %c0_i32, %c0_i32_0 : i32, i32
  }
  func.func @transform_2(%arg0: i32) -> (i32, i32) {
    %c0_i32 = arith.constant 0 : i32
    %c0_i32_0 = arith.constant 0 : i32
    %c0_i32_1 = arith.constant 0 : i32
    return %c0_i32, %c0_i32_0 : i32, i32
  }
  func.func @transform_3(%arg0: i32) -> (i32, i32) {
    %c0_i32 = arith.constant 0 : i32
    %c0_i32_0 = arith.constant 0 : i32
    %c0_i32_1 = arith.constant 0 : i32
    return %c0_i32, %c0_i32_0 : i32, i32
  }
  func.func @transform_4(%arg0: i32) -> (i32, i32) {
    %c0_i32 = arith.constant 0 : i32
    %c0_i32_0 = arith.constant 0 : i32
    %c0_i32_1 = arith.constant 0 : i32
    return %c0_i32, %c0_i32_0 : i32, i32
  }
  func.func @transform_5(%arg0: i32) -> (i32, i32) {
    %c0_i32 = arith.constant 0 : i32
    %c0_i32_0 = arith.constant 0 : i32
    %c0_i32_1 = arith.constant 0 : i32
    return %c0_i32, %c0_i32_0 : i32, i32
  }
  func.func @transform_6(%arg0: i32) -> (i32, i32, i32) {
    %c0_i32 = arith.constant 0 : i32
    %c0_i32_0 = arith.constant 0 : i32
    %c0_i32_1 = arith.constant 0 : i32
    return %arg0, %c0_i32, %c0_i32_0 : i32, i32, i32
  }
}

module attributes {stable_mosaic.version = 11 : i64} {
  func.func @_matmul_bias_kernel(%arg0: i32, %arg1: memref<256x216xbf16, #tpu.memory_space<vmem>>, %arg2: memref<216x128xbf16, #tpu.memory_space<vmem>>, %arg3: memref<1x128xf32, #tpu.memory_space<vmem>>, %arg4: memref<256x128xf32, #tpu.memory_space<vmem>>) attributes {dimension_semantics = [#tpu.dimension_semantics<parallel>], iteration_bounds = array<i64: 2>, scalar_prefetch = 0 : i64, scratch_operands = 0 : i64, tpu.core_type = #tpu.core_type<tc>, window_params = [{transform_indices = @transform_0, window_bounds = array<i64: 256, 216>}, {pipeline_mode = #tpu.pipeline_mode<synchronous>, transform_indices = @transform_1, window_bounds = array<i64: 216, 128>}, {pipeline_mode = #tpu.pipeline_mode<synchronous>, transform_indices = @transform_2, window_bounds = array<i64: 1, 128>}, {transform_indices = @transform_3, window_bounds = array<i64: 256, 128>}]} {
    %c0 = arith.constant 0 : index
    %c0_0 = arith.constant 0 : index
    %0 = vector.load %arg1[%c0, %c0_0] : memref<256x216xbf16, #tpu.memory_space<vmem>>, vector<256x216xbf16>
    %c0_1 = arith.constant 0 : index
    %c0_2 = arith.constant 0 : index
    %1 = vector.load %arg2[%c0_1, %c0_2] : memref<216x128xbf16, #tpu.memory_space<vmem>>, vector<216x128xbf16>
    %cst = arith.constant dense<0.000000e+00> : vector<256x128xf32>
    %2 = tpu.matmul %0, %1, %cst {dimension_numbers = #tpu.dot_dimension_numbers<[1], [0], [0], [1], [0, 0, 1, 1], [], []>} : vector<256x216xbf16>, vector<216x128xbf16>, vector<256x128xf32> -> vector<256x128xf32>
    %c0_3 = arith.constant 0 : index
    %c0_4 = arith.constant 0 : index
    %3 = vector.load %arg3[%c0_3, %c0_4] : memref<1x128xf32, #tpu.memory_space<vmem>>, vector<1x128xf32>
    %4 = vector.broadcast %3 : vector<1x128xf32> to vector<256x128xf32>
    %5 = arith.addf %2, %4 : vector<256x128xf32>
    %c0_5 = arith.constant 0 : index
    %c0_6 = arith.constant 0 : index
    %6 = vector.load %arg4[%c0_5, %c0_6] : memref<256x128xf32, #tpu.memory_space<vmem>>, vector<256x128xf32>
    tpu.vector_store %arg4[%c0_5, %c0_6], %5 {strides = array<i32>} : memref<256x128xf32, #tpu.memory_space<vmem>>, vector<256x128xf32>,
    return
  }
  func.func @transform_0(%arg0: i32) -> (i32, i32) {
    %c0_i32 = arith.constant 0 : i32
    %c0_i32_0 = arith.constant 0 : i32
    return %arg0, %c0_i32 : i32, i32
  }
  func.func @transform_1(%arg0: i32) -> (i32, i32) {
    %c0_i32 = arith.constant 0 : i32
    %c0_i32_0 = arith.constant 0 : i32
    %c0_i32_1 = arith.constant 0 : i32
    return %c0_i32, %c0_i32_0 : i32, i32
  }
  func.func @transform_2(%arg0: i32) -> (i32, i32) {
    %c0_i32 = arith.constant 0 : i32
    %c0_i32_0 = arith.constant 0 : i32
    %c0_i32_1 = arith.constant 0 : i32
    return %c0_i32, %c0_i32_0 : i32, i32
  }
  func.func @transform_3(%arg0: i32) -> (i32, i32) {
    %c0_i32 = arith.constant 0 : i32
    %c0_i32_0 = arith.constant 0 : i32
    return %arg0, %c0_i32 : i32, i32
  }
}

</mosaic_0001>

<llo_original>
// kernel: dsc_module.4
$region0: #{dsc_module.4}
  #allocation0 [shape = 'u32[]', space=smem, size = 0x4, offset = 0x4, fixed_abs, tag = 'smem constant byte address 0x4 - core index']
  #allocation1 [shape = 'u32[144,128]{1,0:T(1,128)}', space=vmem, size = 0x12000, scoped, tag = 'internal scratch']
  %s0 = inlined_call_operand.vmem [shape: bf16[512,36], index: 0, kind: input, shape index: {}]
  %s1 = inlined_call_operand.vmem [shape: bf16[36,128], index: 1, kind: input, shape index: {}]
  %s2 = inlined_call_operand.vmem [shape: f32[1,128], index: 2, kind: input, shape index: {}]
  %s3 = inlined_call_operand.vmem [shape: f32[512,128], index: 3, kind: output, shape index: {}]
  %s4 = sld [smem:[#allocation0]]
  $region45: #{dsc_module.4} parent=0
    _
  %s6 = ssub.s32 1, %s4
  %s7 = scalar_select 0, %s6, %s4
  loop: start=0, step=1, limit=4
  $region2: #{dsc_module.4} parent=0 // loop_pre_header
    _
  $region3: #{dsc_module.4} parent=0 // loop_header
    %s9 = sphi 0, %s13
    %p10 = scmp.ge.s32.totalorder %s9, 4
    %s19 = sphi 0, %s21
    %s22 = sphi 0, %s19
    %s23 = sphi 0, %s22
    %s39 = sphi 0, %s23
    %s43 = sphi 0, %s43
    %s45 = sphi 0, %s43
    %s46 = sphi 0, %s45
    %s60 = sphi 0, %s46
    %s64 = sphi 0, %s64
    %s66 = sphi 0, %s64
    %s67 = sphi 0, %s66
    %s81 = sphi 0, %s67
    %s87 = sphi 0, %s89
    %s90 = sphi 0, %s87
    %s91 = sphi 0, %s90
    %s107 = sphi 0, %s91
  $region4: #{dsc_module.4} parent=0 // loop_header_branch
    %12 = sbr.rel (%p10) target = $region8
  $region5: #{dsc_module.4} parent=0 // loop_body
    %s14 = ssub.s32 %s9, 1
    %s15 = ssub.s32 %s9, 2
    %s16 = sadd.s32 %s9, 1
    %s17 = ssub.s32 %s9, %s16
    %p18 = scmp.eq.s32.totalorder %s17, 0
    %s20 = sadd.s32 %s19, 1
    %s21 = scalar_select %p18, %s19, %s20
    %p24 = pneg %p18
    %p25 = scmp.eq.s32.totalorder %s9, 1
    %p26 = por %p24, %p25
    %p27 = scmp.ne.s32.totalorder %s19, %s22
    %p28 = scmp.eq.s32.totalorder %s9, 0
    %p29 = por %p27, %p28
    %p30 = scmp.ne.s32.totalorder %s19, %s22
    %p31 = scmp.eq.s32.totalorder %s14, 1
    %p32 = por %p30, %p31
    %p33 = scmp.ne.s32.totalorder %s22, %s23
    %p34 = scmp.eq.s32.totalorder %s14, 0
    %p35 = por %p33, %p34
    %p36 = scmp.ne.s32.totalorder %s22, %s23
    %p37 = scmp.eq.s32.totalorder %s15, 1
    %p38 = por %p36, %p37
    %p40 = scmp.ne.s32.totalorder %s23, %s39
    %p41 = scmp.eq.s32.totalorder %s15, 0
    %p42 = por %p40, %p41
    %s44 = sadd.s32 %s43, 1
    %p47 = scmp.eq.s32.totalorder %s9, 1
    %p48 = scmp.ne.s32.totalorder %s43, %s45
    %p49 = scmp.eq.s32.totalorder %s9, 0
    %p50 = por %p48, %p49
    %p51 = scmp.ne.s32.totalorder %s43, %s45
    %p52 = scmp.eq.s32.totalorder %s14, 1
    %p53 = por %p51, %p52
    %p54 = scmp.ne.s32.totalorder %s45, %s46
    %p55 = scmp.eq.s32.totalorder %s14, 0
    %p56 = por %p54, %p55
    %p57 = scmp.ne.s32.totalorder %s45, %s46
    %p58 = scmp.eq.s32.totalorder %s15, 1
    %p59 = por %p57, %p58
    %p61 = scmp.ne.s32.totalorder %s46, %s60
    %p62 = scmp.eq.s32.totalorder %s15, 0
    %p63 = por %p61, %p62
    %s65 = sadd.s32 %s64, 1
    %p68 = scmp.eq.s32.totalorder %s9, 1
    %p69 = scmp.ne.s32.totalorder %s64, %s66
    %p70 = scmp.eq.s32.totalorder %s9, 0
    %p71 = por %p69, %p70
    %p72 = scmp.ne.s32.totalorder %s64, %s66
    %p73 = scmp.eq.s32.totalorder %s14, 1
    %p74 = por %p72, %p73
    %p75 = scmp.ne.s32.totalorder %s66, %s67
    %p76 = scmp.eq.s32.totalorder %s14, 0
    %p77 = por %p75, %p76
    %p78 = scmp.ne.s32.totalorder %s66, %s67
    %p79 = scmp.eq.s32.totalorder %s15, 1
    %p80 = por %p78, %p79
    %p82 = scmp.ne.s32.totalorder %s67, %s81
    %p83 = scmp.eq.s32.totalorder %s15, 0
    %p84 = por %p82, %p83
    %s85 = ssub.s32 %s9, %s16
    %p86 = scmp.eq.s32.totalorder %s85, 0
    %s88 = sadd.s32 %s87, 1
    %s89 = scalar_select %p86, %s87, %s88
    %p92 = pneg %p86
    %p93 = scmp.eq.s32.totalorder %s9, 1
    %p94 = por %p92, %p93
    %p95 = scmp.ne.s32.totalorder %s87, %s90
    %p96 = scmp.eq.s32.totalorder %s9, 0
    %p97 = por %p95, %p96
    %p98 = scmp.ne.s32.totalorder %s87, %s90
    %p99 = scmp.eq.s32.totalorder %s14, 1
    %p100 = por %p98, %p99
    %p101 = scmp.ne.s32.totalorder %s90, %s91
    %p102 = scmp.eq.s32.totalorder %s14, 0
    %p103 = por %p101, %p102
    %p104 = scmp.ne.s32.totalorder %s90, %s91
    %p105 = scmp.eq.s32.totalorder %s15, 1
    %p106 = por %p104, %p105
    %p108 = scmp.ne.s32.totalorder %s91, %s107
    %p109 = scmp.eq.s32.totalorder %s15, 0
    %p110 = por %p108, %p109
    %p111 = scmp.le.s32.totalorder 1, %s9
    %p112 = scmp.lt.s32.totalorder %s9, 3
    %p113 = pnand %p111, %p112
    %p114 = pneg %p113
    // Predicated region
    $region9: #{dsc_module.4} parent=5 // pred_check
      _
    $region10: #{dsc_module.4} parent=5 // pred_check_branch
      %116 = sbr.rel (%p113) target = $region12
    $region11: #{dsc_module.4} parent=5 // pred_region
      %s117 = ssub.s32 %s9, 1
      // Predicated region
      $region13: #{dsc_module.4} parent=11 // pred_check
        %p118 = pneg %p56
      $region14: #{dsc_module.4} parent=11 // pred_check_branch
        %120 = sbr.rel (%p118) target = $region16
      $region15: #{dsc_module.4} parent=11 // pred_region
        _
      $region16: #{dsc_module.4} parent=11 // pred_fallthru
        _
      // Predicated region
      $region17: #{dsc_module.4} parent=11 // pred_check
        %p121 = pneg %p77
      $region18: #{dsc_module.4} parent=11 // pred_check_branch
        %123 = sbr.rel (%p121) target = $region20
      $region19: #{dsc_module.4} parent=11 // pred_region
        _
      $region20: #{dsc_module.4} parent=11 // pred_fallthru
        _
    $region12: #{dsc_module.4} parent=5 // pred_fallthru
      _
    %p124 = scmp.lt.s32.totalorder %s9, 2
    // Predicated region
    $region21: #{dsc_module.4} parent=5 // pred_check
      %p125 = pneg %p124
    $region22: #{dsc_module.4} parent=5 // pred_check_branch
      %127 = sbr.rel (%p125) target = $region24
    $region23: #{dsc_module.4} parent=5 // pred_region
      // Predicated region
      $region25: #{dsc_module.4} parent=23 // pred_check
        %p128 = pneg %p29
      $region26: #{dsc_module.4} parent=23 // pred_check_branch
        %130 = sbr.rel (%p128) target = $region28
      $region27: #{dsc_module.4} parent=23 // pred_region
        %s131 = smul.u32 32, %s9
        %p132 = scmp.lt.s32.totalorder %s131, 63
        %s133 = scalar_select %p132, %s131, 63
        %s134 = smul.addr %s133, 4
        %s135 = scalar_lea.vmem %s0, %s134
        %s136 = smul.u32 32, %s9
      $region28: #{dsc_module.4} parent=23 // pred_fallthru
        _
    $region24: #{dsc_module.4} parent=5 // pred_fallthru
      _
    %p137 = scmp.le.s32.totalorder 1, %s9
    %p138 = scmp.lt.s32.totalorder %s9, 3
    %p139 = pnand %p137, %p138
    %p140 = pneg %p139
    // Predicated region
    $region29: #{dsc_module.4} parent=5 // pred_check
      _
    $region30: #{dsc_module.4} parent=5 // pred_check_branch
      %142 = sbr.rel (%p139) target = $region32
    $region31: #{dsc_module.4} parent=5 // pred_region
      %s143 = ssub.s32 %s9, 1
      %s144 = smul.u32 32, %s14
      %p145 = scmp.lt.s32.totalorder %s144, 63
      %s146 = scalar_select %p145, %s144, 63
      %s147 = smul.addr %s146, 4
      %s148 = scalar_lea.vmem %s0, %s147
      %p149 = pneg %p35
      %p150 = pneg %p32
      %p151 = pneg %p56
      %p152 = pneg %p53
      %p153 = pneg %p77
      %p154 = pneg %p74
      %p155 = pneg %p103
      %p156 = pneg %p100
      %s157 = smul.u32 32, %s14
      %p158 = scmp.lt.s32.totalorder %s157, 63
      %s159 = scalar_select %p158, %s157, 63
      %s160 = smul.addr %s159, 8
      %s161 = scalar_lea.vmem %s3, %s160
      %s162 = smul.u32 32, %s14
      %p163 = scmp.lt.s32.totalorder %s162, 63
      %s164 = scalar_select %p163, %s162, 63
      %s165 = smul.addr %s164, 4
      %s166 = scalar_lea.vmem %s0, %s165
      %s167 = smul.u32 32, %s14
      %s168 = smul.u32 32, %s14
      %p169 = scmp.lt.s32.totalorder %s168, 63
      %s170 = scalar_select %p169, %s168, 63
      %s171 = smul.addr %s170, 8
      %s172 = scalar_lea.vmem %s3, %s171
      %s173 = smul.u32 32, %s14
      %v175 = vld [vmem:[%s166] sm:$0xf]
      %v176 = vld [vmem:[%s166 + $0x4] sm:$0xf]
      %v177 = vld [vmem:[%s166 + $0x8] sm:$0xf]
      %v178 = vld [vmem:[%s166 + $0xc] sm:$0xf]
      %v179 = vld [vmem:[%s166 + $0x10] sm:$0xf]
      %v180 = vld [vmem:[%s166 + $0x14] sm:$0xf]
      %v181 = vld [vmem:[%s166 + $0x18] sm:$0xf]
      %v182 = vld [vmem:[%s166 + $0x1c] sm:$0xf]
      %v183 = vld [vmem:[%s166 + $0x20] sm:$0xf]
      %v184 = vld [vmem:[%s166 + $0x24] sm:$0xf]
      %v185 = vld [vmem:[%s166 + $0x28] sm:$0xf]
      %v186 = vld [vmem:[%s166 + $0x2c] sm:$0xf]
      %v187 = vld [vmem:[%s166 + $0x30] sm:$0xf]
      %v188 = vld [vmem:[%s166 + $0x34] sm:$0xf]
      %v189 = vld [vmem:[%s166 + $0x38] sm:$0xf]
      %v190 = vld [vmem:[%s166 + $0x3c] sm:$0xf]
      %v191 = vld [vmem:[%s166 + $0x40] sm:$0xf]
      %v192 = vld [vmem:[%s166 + $0x44] sm:$0xf]
      %v193 = vld [vmem:[%s166 + $0x48] sm:$0xf]
      %v194 = vld [vmem:[%s166 + $0x4c] sm:$0xf]
      %v195 = vld [vmem:[%s166 + $0x50] sm:$0xf]
      %v196 = vld [vmem:[%s166 + $0x54] sm:$0xf]
      %v197 = vld [vmem:[%s166 + $0x58] sm:$0xf]
      %v198 = vld [vmem:[%s166 + $0x5c] sm:$0xf]
      %v199 = vld [vmem:[%s166 + $0x60] sm:$0xf]
      %v200 = vld [vmem:[%s166 + $0x64] sm:$0xf]
      %v201 = vld [vmem:[%s166 + $0x68] sm:$0xf]
      %v202 = vld [vmem:[%s166 + $0x6c] sm:$0xf]
      %v203 = vld [vmem:[%s166 + $0x70] sm:$0xf]
      %v204 = vld [vmem:[%s166 + $0x74] sm:$0xf]
      %v205 = vld [vmem:[%s166 + $0x78] sm:$0xf]
      %v206 = vld [vmem:[%s166 + $0x7c] sm:$0xf]
      %v207 = vld [vmem:[%s1] sm:$0xf]
      %v208 = vld [vmem:[%s1 + $0x4] sm:$0xf]
      %v209 = vld [vmem:[%s1 + $0x8] sm:$0xf]
      %v210 = vld [vmem:[%s1 + $0xc] sm:$0xf]
      %v211 = vld [vmem:[%s1 + $0x10] sm:$0x3]
      %v212 = vld [vmem:[%s2] sm:$0x1]
      %v214 = vlaneseq
      %v215 = vshrl.u32 %v214, 7
      %v216 = vsub.s32 0, %v215
      %v217 = vrot.slane %v212, %v216
      %v251 = vunpack.c.l.b16 %v175
      %v252 = vunpack.c.l.b16 %v176
      %v253 = vunpack.c.l.b16 %v177
      %v254 = vunpack.c.l.b16 %v178
      %v255 = vunpack.c.l.b16 %v179
      %v256 = vunpack.c.l.b16 %v180
      %v257 = vunpack.c.l.b16 %v181
      %v258 = vunpack.c.l.b16 %v182
      %v259 = vunpack.c.l.b16 %v183
      %v260 = vunpack.c.l.b16 %v184
      %v261 = vunpack.c.l.b16 %v185
      %v262 = vunpack.c.l.b16 %v186
      %v263 = vunpack.c.l.b16 %v187
      %v264 = vunpack.c.l.b16 %v188
      %v265 = vunpack.c.l.b16 %v189
      %v266 = vunpack.c.l.b16 %v190
      %v267 = vunpack.c.l.b16 %v191
      %v268 = vunpack.c.l.b16 %v192
      %v269 = vunpack.c.l.b16 %v193
      %v270 = vunpack.c.l.b16 %v194
      %v271 = vunpack.c.l.b16 %v195
      %v272 = vunpack.c.l.b16 %v196
      %v273 = vunpack.c.l.b16 %v197
      %v274 = vunpack.c.l.b16 %v198
      %v275 = vunpack.c.l.b16 %v199
      %v276 = vunpack.c.l.b16 %v200
      %v277 = vunpack.c.l.b16 %v201
      %v278 = vunpack.c.l.b16 %v202
      %v279 = vunpack.c.l.b16 %v203
      %v280 = vunpack.c.l.b16 %v204
      %v281 = vunpack.c.l.b16 %v205
      %v282 = vunpack.c.l.b16 %v206
      %v283 = vpack.c.b16 %v252, %v251
      %v284 = vpack.c.b16 %v254, %v253
      %v285 = vpack.c.b16 %v256, %v255
      %v286 = vpack.c.b16 %v258, %v257
      %v287 = vpack.c.b16 %v260, %v259
      %v288 = vpack.c.b16 %v262, %v261
      %v289 = vpack.c.b16 %v264, %v263
      %v290 = vpack.c.b16 %v266, %v265
      %v291 = vpack.c.b16 %v268, %v267
      %v292 = vpack.c.b16 %v270, %v269
      %v293 = vpack.c.b16 %v272, %v271
      %v294 = vpack.c.b16 %v274, %v273
      %v295 = vpack.c.b16 %v276, %v275
      %v296 = vpack.c.b16 %v278, %v277
      %v297 = vpack.c.b16 %v280, %v279
      %v298 = vpack.c.b16 %v282, %v281
      %v304 = vunpack.c.l.b16 %v207
      %v305 = vunpack.c.l.b16 %v208
      %v306 = vunpack.c.l.b16 %v209
      %v307 = vunpack.c.l.b16 %v210
      %v308 = vunpack.c.l.b16 %v211
      %v309 = vpack.c.b16 %v305, %v304
      %v310 = vpack.c.b16 %v307, %v306
      %v311 = vpack.c.b16 %v308, %v308
      %vm314 = vcmask 293888
      %v316 = vsel %vm314, %v283, 0
      %v319 = vsel %vm314, %v284, 0
      %v322 = vsel %vm314, %v285, 0
      %v325 = vsel %vm314, %v286, 0
      %v328 = vsel %vm314, %v287, 0
      %v331 = vsel %vm314, %v288, 0
      %v334 = vsel %vm314, %v289, 0
      %v337 = vsel %vm314, %v290, 0
      %v340 = vsel %vm314, %v291, 0
      %v343 = vsel %vm314, %v292, 0
      %v346 = vsel %vm314, %v293, 0
      %v349 = vsel %vm314, %v294, 0
      %v352 = vsel %vm314, %v295, 0
      %v355 = vsel %vm314, %v296, 0
      %v358 = vsel %vm314, %v297, 0
      %v361 = vsel %vm314, %v298, 0
      %vm363 = vcmask 1041408
      %v365 = vsel %vm363, %v311, 0
      %367 = vmatprep.subr.bf16.mxu0 0
      %368 = vmatpush1.bf16.msra.mxu0 0
      %369 = vmatprep.subr.bf16.mxu0 0
      %370 = vmatpush1.bf16.msra.mxu0 0
      %371 = vmatprep.subr.bf16.mxu0 0
      %372 = vmatpush1.bf16.msra.mxu0 0
      %373 = vmatprep.subr.bf16.mxu0 0
      %374 = vmatpush1.bf16.msra.mxu0 0
      %375 = vmatprep.subr.bf16.mxu0 0
      %376 = vmatpush1.bf16.msra.mxu0 0
      %377 = vmatprep.subr.bf16.mxu0 0
      %378 = vmatpush1.bf16.msra.mxu0 %v365
      %379 = vmatprep.subr.bf16.mxu0 0
      %380 = vmatpush1.bf16.msra.mxu0 %v310
      %381 = vmatprep.subr.bf16.mxu0 0
      %382 = vmatpush1.bf16.msra.mxu0 %v309
      %383 = vmatprep.subr.bf16.mxu0 0
      %384 = vmatpush2.bf16.msra.mxu0 0
      %385 = vmatprep.subr.bf16.mxu0 0
      %386 = vmatpush2.bf16.msra.mxu0 0
      %387 = vmatprep.subr.bf16.mxu0 0
      %388 = vmatpush2.bf16.msra.mxu0 0
      %389 = vmatprep.subr.bf16.mxu0 0
      %390 = vmatpush2.bf16.msra.mxu0 0
      %391 = vmatprep.subr.bf16.mxu0 0
      %392 = vmatpush2.bf16.msra.mxu0 0
      %393 = vmatprep.subr.bf16.mxu0 0
      %394 = vmatpush2.bf16.msra.mxu0 0
      %395 = vmatprep.subr.bf16.mxu0 0
      %396 = vmatpush2.bf16.msra.mxu0 0
      %397 = vmatprep.subr.bf16.mxu0 0
      %398 = vmatpush2.bf16.msra.mxu0 0
      %399 = vmatprep.mubr.bf16.mxu0 0
      %400 = vmatmul.mubr.bf16.gmra.mxu0 %v316
      %v401 = vpop.f32.mrf.mxu0
      %v402 = vadd.f32 %v217, %v401
      %v403 = vpop.f32.mrf.mxu0
      %v404 = vpop.f32.mrf.mxu0
      %v405 = vadd.f32 %v217, %v404
      %v406 = vpop.f32.mrf.mxu0
      %407 = vmatprep.mubr.bf16.mxu0 0
      %408 = vmatmul.mubr.bf16.gmra.mxu0 %v319
      %v409 = vpop.f32.mrf.mxu0
      %v410 = vadd.f32 %v217, %v409
      %v411 = vpop.f32.mrf.mxu0
      %v412 = vpop.f32.mrf.mxu0
      %v413 = vadd.f32 %v217, %v412
      %v414 = vpop.f32.mrf.mxu0
      %415 = vmatprep.mubr.bf16.mxu0 0
      %416 = vmatmul.mubr.bf16.gmra.mxu0 %v322
      %v417 = vpop.f32.mrf.mxu0
      %v418 = vadd.f32 %v217, %v417
      %v419 = vpop.f32.mrf.mxu0
      %v420 = vpop.f32.mrf.mxu0
      %v421 = vadd.f32 %v217, %v420
      %v422 = vpop.f32.mrf.mxu0
      %423 = vmatprep.mubr.bf16.mxu0 0
      %424 = vmatmul.mubr.bf16.gmra.mxu0 %v325
      %v425 = vpop.f32.mrf.mxu0
      %v426 = vadd.f32 %v217, %v425
      %v427 = vpop.f32.mrf.mxu0
      %v428 = vpop.f32.mrf.mxu0
      %v429 = vadd.f32 %v217, %v428
      %v430 = vpop.f32.mrf.mxu0
      %431 = vmatprep.mubr.bf16.mxu0 0
      %432 = vmatmul.mubr.bf16.gmra.mxu0 %v328
      %v433 = vpop.f32.mrf.mxu0
      %v434 = vadd.f32 %v217, %v433
      %v435 = vpop.f32.mrf.mxu0
      %v436 = vpop.f32.mrf.mxu0
      %v437 = vadd.f32 %v217, %v436
      %v438 = vpop.f32.mrf.mxu0
      %439 = vmatprep.mubr.bf16.mxu0 0
      %440 = vmatmul.mubr.bf16.gmra.mxu0 %v331
      %v441 = vpop.f32.mrf.mxu0
      %v442 = vadd.f32 %v217, %v441
      %v443 = vpop.f32.mrf.mxu0
      %v444 = vpop.f32.mrf.mxu0
      %v445 = vadd.f32 %v217, %v444
      %v446 = vpop.f32.mrf.mxu0
      %447 = vmatprep.mubr.bf16.mxu0 0
      %448 = vmatmul.mubr.bf16.gmra.mxu0 %v334
      %v449 = vpop.f32.mrf.mxu0
      %v450 = vadd.f32 %v217, %v449
      %v451 = vpop.f32.mrf.mxu0
      %v452 = vpop.f32.mrf.mxu0
      %v453 = vadd.f32 %v217, %v452
      %v454 = vpop.f32.mrf.mxu0
      %455 = vmatprep.mubr.bf16.mxu0 0
      %456 = vmatmul.mubr.bf16.gmra.mxu0 %v337
      %v457 = vpop.f32.mrf.mxu0
      %v458 = vadd.f32 %v217, %v457
      %v459 = vpop.f32.mrf.mxu0
      %v460 = vpop.f32.mrf.mxu0
      %v461 = vadd.f32 %v217, %v460
      %v462 = vpop.f32.mrf.mxu0
      %463 = vmatprep.mubr.bf16.mxu0 0
      %464 = vmatmul.mubr.bf16.gmra.mxu0 %v340
      %v465 = vpop.f32.mrf.mxu0
      %v466 = vadd.f32 %v217, %v465
      %v467 = vpop.f32.mrf.mxu0
      %v468 = vpop.f32.mrf.mxu0
      %v469 = vadd.f32 %v217, %v468
      %v470 = vpop.f32.mrf.mxu0
      %471 = vmatprep.mubr.bf16.mxu0 0
      %472 = vmatmul.mubr.bf16.gmra.mxu0 %v343
      %v473 = vpop.f32.mrf.mxu0
      %v474 = vadd.f32 %v217, %v473
      %v475 = vpop.f32.mrf.mxu0
      %v476 = vpop.f32.mrf.mxu0
      %v477 = vadd.f32 %v217, %v476
      %v478 = vpop.f32.mrf.mxu0
      %479 = vmatprep.mubr.bf16.mxu0 0
      %480 = vmatmul.mubr.bf16.gmra.mxu0 %v346
      %v481 = vpop.f32.mrf.mxu0
      %v482 = vadd.f32 %v217, %v481
      %v483 = vpop.f32.mrf.mxu0
      %v484 = vpop.f32.mrf.mxu0
      %v485 = vadd.f32 %v217, %v484
      %v486 = vpop.f32.mrf.mxu0
      %487 = vmatprep.mubr.bf16.mxu0 0
      %488 = vmatmul.mubr.bf16.gmra.mxu0 %v349
      %v489 = vpop.f32.mrf.mxu0
      %v490 = vadd.f32 %v217, %v489
      %v491 = vpop.f32.mrf.mxu0
      %v492 = vpop.f32.mrf.mxu0
      %v493 = vadd.f32 %v217, %v492
      %v494 = vpop.f32.mrf.mxu0
      %495 = vmatprep.mubr.bf16.mxu0 0
      %496 = vmatmul.mubr.bf16.gmra.mxu0 %v352
      %v497 = vpop.f32.mrf.mxu0
      %v498 = vadd.f32 %v217, %v497
      %v499 = vpop.f32.mrf.mxu0
      %v500 = vpop.f32.mrf.mxu0
      %v501 = vadd.f32 %v217, %v500
      %v502 = vpop.f32.mrf.mxu0
      %503 = vmatprep.mubr.bf16.mxu0 0
      %504 = vmatmul.mubr.bf16.gmra.mxu0 %v355
      %v505 = vpop.f32.mrf.mxu0
      %v506 = vadd.f32 %v217, %v505
      %v507 = vpop.f32.mrf.mxu0
      %v508 = vpop.f32.mrf.mxu0
      %v509 = vadd.f32 %v217, %v508
      %v510 = vpop.f32.mrf.mxu0
      %511 = vmatprep.mubr.bf16.mxu0 0
      %512 = vmatmul.mubr.bf16.gmra.mxu0 %v358
      %v513 = vpop.f32.mrf.mxu0
      %v514 = vadd.f32 %v217, %v513
      %v515 = vpop.f32.mrf.mxu0
      %v516 = vpop.f32.mrf.mxu0
      %v517 = vadd.f32 %v217, %v516
      %v518 = vpop.f32.mrf.mxu0
      %519 = vmatprep.mubr.bf16.mxu0 0
      %520 = vmatmul.mubr.bf16.gmra.mxu0 %v361
      %v521 = vpop.f32.mrf.mxu0
      %v522 = vadd.f32 %v217, %v521
      %v523 = vpop.f32.mrf.mxu0
      %v524 = vpop.f32.mrf.mxu0
      %v525 = vadd.f32 %v217, %v524
      %v526 = vpop.f32.mrf.mxu0
      %527 = vdwg.mxu0
      %528 = vst [vmem:[%s172] sm:$0xff] %v402
      %529 = vst [vmem:[%s172 + $0x8] sm:$0xff] %v405
      %530 = vst [vmem:[%s172 + $0x10] sm:$0xff] %v410
      %531 = vst [vmem:[%s172 + $0x18] sm:$0xff] %v413
      %532 = vst [vmem:[%s172 + $0x20] sm:$0xff] %v418
      %533 = vst [vmem:[%s172 + $0x28] sm:$0xff] %v421
      %534 = vst [vmem:[%s172 + $0x30] sm:$0xff] %v426
      %535 = vst [vmem:[%s172 + $0x38] sm:$0xff] %v429
      %536 = vst [vmem:[%s172 + $0x40] sm:$0xff] %v434
      %537 = vst [vmem:[%s172 + $0x48] sm:$0xff] %v437
      %538 = vst [vmem:[%s172 + $0x50] sm:$0xff] %v442
      %539 = vst [vmem:[%s172 + $0x58] sm:$0xff] %v445
      %540 = vst [vmem:[%s172 + $0x60] sm:$0xff] %v450
      %541 = vst [vmem:[%s172 + $0x68] sm:$0xff] %v453
      %542 = vst [vmem:[%s172 + $0x70] sm:$0xff] %v458
      %543 = vst [vmem:[%s172 + $0x78] sm:$0xff] %v461
      %544 = vst [vmem:[%s172 + $0x80] sm:$0xff] %v466
      %545 = vst [vmem:[%s172 + $0x88] sm:$0xff] %v469
      %546 = vst [vmem:[%s172 + $0x90] sm:$0xff] %v474
      %547 = vst [vmem:[%s172 + $0x98] sm:$0xff] %v477
      %548 = vst [vmem:[%s172 + $0xa0] sm:$0xff] %v482
      %549 = vst [vmem:[%s172 + $0xa8] sm:$0xff] %v485
      %550 = vst [vmem:[%s172 + $0xb0] sm:$0xff] %v490
      %551 = vst [vmem:[%s172 + $0xb8] sm:$0xff] %v493
      %552 = vst [vmem:[%s172 + $0xc0] sm:$0xff] %v498
      %553 = vst [vmem:[%s172 + $0xc8] sm:$0xff] %v501
      %554 = vst [vmem:[%s172 + $0xd0] sm:$0xff] %v506
      %555 = vst [vmem:[%s172 + $0xd8] sm:$0xff] %v509
      %556 = vst [vmem:[%s172 + $0xe0] sm:$0xff] %v514
      %557 = vst [vmem:[%s172 + $0xe8] sm:$0xff] %v517
      %558 = vst [vmem:[%s172 + $0xf0] sm:$0xff] %v522
      %559 = vst [vmem:[%s172 + $0xf8] sm:$0xff] %v525
      %s560 = smul.u32 32, %s14
      %p561 = scmp.lt.s32.totalorder %s560, 63
      %s562 = scalar_select %p561, %s560, 63
      %s563 = smul.addr %s562, 8
      %s564 = scalar_lea.vmem %s3, %s563
      // Predicated region
      $region33: #{dsc_module.4} parent=31 // pred_check
        %p565 = pneg %p100
      $region34: #{dsc_module.4} parent=31 // pred_check_branch
        %567 = sbr.rel (%p565) target = $region36
      $region35: #{dsc_module.4} parent=31 // pred_region
        %s568 = smul.u32 32, %s14
      $region36: #{dsc_module.4} parent=31 // pred_fallthru
        _
    $region32: #{dsc_module.4} parent=5 // pred_fallthru
      _
    %p569 = scmp.le.s32.totalorder 2, %s9
    // Predicated region
    $region37: #{dsc_module.4} parent=5 // pred_check
      %p570 = pneg %p569
    $region38: #{dsc_module.4} parent=5 // pred_check_branch
      %572 = sbr.rel (%p570) target = $region40
    $region39: #{dsc_module.4} parent=5 // pred_region
      %s573 = ssub.s32 %s9, 2
      // Predicated region
      $region41: #{dsc_module.4} parent=39 // pred_check
        %p574 = pneg %p106
      $region42: #{dsc_module.4} parent=39 // pred_check_branch
        %576 = sbr.rel (%p574) target = $region44
      $region43: #{dsc_module.4} parent=39 // pred_region
        %s577 = smul.u32 32, %s15
        %p578 = scmp.lt.s32.totalorder %s577, 63
        %s579 = scalar_select %p578, %s577, 63
        %s580 = smul.addr %s579, 8
        %s581 = scalar_lea.vmem %s3, %s580
      $region44: #{dsc_module.4} parent=39 // pred_fallthru
        _
    $region40: #{dsc_module.4} parent=5 // pred_fallthru
      _
  $region6: #{dsc_module.4} parent=0 // loop_footer
    %s13 = sadd.s32 1, %s9
  $region7: #{dsc_module.4} parent=0 // loop_footer_branch
    %8 = sbr.rel target = $region3
  $region8: #{dsc_module.4} parent=0 // loop_exit
    _

// kernel: dsc_module.5
$region0: #{dsc_module.5}
  #allocation0 [shape = 'u32[]', space=smem, size = 0x4, offset = 0x4, fixed_abs, tag = 'smem constant byte address 0x4 - core index']
  #allocation1 [shape = 'u32[144,128]{1,0:T(1,128)}', space=vmem, size = 0x12000, scoped, tag = 'internal scratch']
  %s0 = inlined_call_operand.vmem [shape: f32[2,256,36], index: 0, kind: input, shape index: {}]
  %s1 = inlined_call_operand.vmem [shape: f32[1,1,36], index: 1, kind: input, shape index: {}]
  %s2 = inlined_call_operand.vmem [shape: f32[1,1,36], index: 2, kind: input, shape index: {}]
  %s3 = inlined_call_operand.vmem [shape: f32[36,36], index: 3, kind: input, shape index: {}]
  %s4 = inlined_call_operand.vmem [shape: f32[2,256,36], index: 4, kind: output, shape index: {}]
  %s5 = sld [smem:[#allocation0]]
  $region49: #{dsc_module.5} parent=0
    _
  %s7 = ssub.s32 1, %s5
  %s8 = scalar_select 0, %s7, %s5
  loop: start=0, step=1, limit=4
  $region2: #{dsc_module.5} parent=0 // loop_pre_header
    _
  $region3: #{dsc_module.5} parent=0 // loop_header
    %s10 = sphi 0, %s14
    %p11 = scmp.ge.s32.totalorder %s10, 4
    %s20 = sphi 0, %s22
    %s23 = sphi 0, %s20
    %s24 = sphi 0, %s23
    %s40 = sphi 0, %s24
    %s44 = sphi 0, %s44
    %s46 = sphi 0, %s44
    %s47 = sphi 0, %s46
    %s61 = sphi 0, %s47
    %s65 = sphi 0, %s65
    %s67 = sphi 0, %s65
    %s68 = sphi 0, %s67
    %s82 = sphi 0, %s68
    %s86 = sphi 0, %s86
    %s88 = sphi 0, %s86
    %s89 = sphi 0, %s88
    %s103 = sphi 0, %s89
    %s109 = sphi 0, %s111
    %s112 = sphi 0, %s109
    %s113 = sphi 0, %s112
    %s129 = sphi 0, %s113
  $region4: #{dsc_module.5} parent=0 // loop_header_branch
    %13 = sbr.rel (%p11) target = $region8
  $region5: #{dsc_module.5} parent=0 // loop_body
    %s15 = ssub.s32 %s10, 1
    %s16 = ssub.s32 %s10, 2
    %s17 = sadd.s32 %s10, 1
    %s18 = ssub.s32 %s10, %s17
    %p19 = scmp.eq.s32.totalorder %s18, 0
    %s21 = sadd.s32 %s20, 1
    %s22 = scalar_select %p19, %s20, %s21
    %p25 = pneg %p19
    %p26 = scmp.eq.s32.totalorder %s10, 1
    %p27 = por %p25, %p26
    %p28 = scmp.ne.s32.totalorder %s20, %s23
    %p29 = scmp.eq.s32.totalorder %s10, 0
    %p30 = por %p28, %p29
    %p31 = scmp.ne.s32.totalorder %s20, %s23
    %p32 = scmp.eq.s32.totalorder %s15, 1
    %p33 = por %p31, %p32
    %p34 = scmp.ne.s32.totalorder %s23, %s24
    %p35 = scmp.eq.s32.totalorder %s15, 0
    %p36 = por %p34, %p35
    %p37 = scmp.ne.s32.totalorder %s23, %s24
    %p38 = scmp.eq.s32.totalorder %s16, 1
    %p39 = por %p37, %p38
    %p41 = scmp.ne.s32.totalorder %s24, %s40
    %p42 = scmp.eq.s32.totalorder %s16, 0
    %p43 = por %p41, %p42
    %s45 = sadd.s32 %s44, 1
    %p48 = scmp.eq.s32.totalorder %s10, 1
    %p49 = scmp.ne.s32.totalorder %s44, %s46
    %p50 = scmp.eq.s32.totalorder %s10, 0
    %p51 = por %p49, %p50
    %p52 = scmp.ne.s32.totalorder %s44, %s46
    %p53 = scmp.eq.s32.totalorder %s15, 1
    %p54 = por %p52, %p53
    %p55 = scmp.ne.s32.totalorder %s46, %s47
    %p56 = scmp.eq.s32.totalorder %s15, 0
    %p57 = por %p55, %p56
    %p58 = scmp.ne.s32.totalorder %s46, %s47
    %p59 = scmp.eq.s32.totalorder %s16, 1
    %p60 = por %p58, %p59
    %p62 = scmp.ne.s32.totalorder %s47, %s61
    %p63 = scmp.eq.s32.totalorder %s16, 0
    %p64 = por %p62, %p63
    %s66 = sadd.s32 %s65, 1
    %p69 = scmp.eq.s32.totalorder %s10, 1
    %p70 = scmp.ne.s32.totalorder %s65, %s67
    %p71 = scmp.eq.s32.totalorder %s10, 0
    %p72 = por %p70, %p71
    %p73 = scmp.ne.s32.totalorder %s65, %s67
    %p74 = scmp.eq.s32.totalorder %s15, 1
    %p75 = por %p73, %p74
    %p76 = scmp.ne.s32.totalorder %s67, %s68
    %p77 = scmp.eq.s32.totalorder %s15, 0
    %p78 = por %p76, %p77
    %p79 = scmp.ne.s32.totalorder %s67, %s68
    %p80 = scmp.eq.s32.totalorder %s16, 1
    %p81 = por %p79, %p80
    %p83 = scmp.ne.s32.totalorder %s68, %s82
    %p84 = scmp.eq.s32.totalorder %s16, 0
    %p85 = por %p83, %p84
    %s87 = sadd.s32 %s86, 1
    %p90 = scmp.eq.s32.totalorder %s10, 1
    %p91 = scmp.ne.s32.totalorder %s86, %s88
    %p92 = scmp.eq.s32.totalorder %s10, 0
    %p93 = por %p91, %p92
    %p94 = scmp.ne.s32.totalorder %s86, %s88
    %p95 = scmp.eq.s32.totalorder %s15, 1
    %p96 = por %p94, %p95
    %p97 = scmp.ne.s32.totalorder %s88, %s89
    %p98 = scmp.eq.s32.totalorder %s15, 0
    %p99 = por %p97, %p98
    %p100 = scmp.ne.s32.totalorder %s88, %s89
    %p101 = scmp.eq.s32.totalorder %s16, 1
    %p102 = por %p100, %p101
    %p104 = scmp.ne.s32.totalorder %s89, %s103
    %p105 = scmp.eq.s32.totalorder %s16, 0
    %p106 = por %p104, %p105
    %s107 = ssub.s32 %s10, %s17
    %p108 = scmp.eq.s32.totalorder %s107, 0
    %s110 = sadd.s32 %s109, 1
    %s111 = scalar_select %p108, %s109, %s110
    %p114 = pneg %p108
    %p115 = scmp.eq.s32.totalorder %s10, 1
    %p116 = por %p114, %p115
    %p117 = scmp.ne.s32.totalorder %s109, %s112
    %p118 = scmp.eq.s32.totalorder %s10, 0
    %p119 = por %p117, %p118
    %p120 = scmp.ne.s32.totalorder %s109, %s112
    %p121 = scmp.eq.s32.totalorder %s15, 1
    %p122 = por %p120, %p121
    %p123 = scmp.ne.s32.totalorder %s112, %s113
    %p124 = scmp.eq.s32.totalorder %s15, 0
    %p125 = por %p123, %p124
    %p126 = scmp.ne.s32.totalorder %s112, %s113
    %p127 = scmp.eq.s32.totalorder %s16, 1
    %p128 = por %p126, %p127
    %p130 = scmp.ne.s32.totalorder %s113, %s129
    %p131 = scmp.eq.s32.totalorder %s16, 0
    %p132 = por %p130, %p131
    %p133 = scmp.le.s32.totalorder 1, %s10
    %p134 = scmp.lt.s32.totalorder %s10, 3
    %p135 = pnand %p133, %p134
    %p136 = pneg %p135
    // Predicated region
    $region9: #{dsc_module.5} parent=5 // pred_check
      _
    $region10: #{dsc_module.5} parent=5 // pred_check_branch
      %138 = sbr.rel (%p135) target = $region12
    $region11: #{dsc_module.5} parent=5 // pred_region
      %s139 = ssub.s32 %s10, 1
      // Predicated region
      $region13: #{dsc_module.5} parent=11 // pred_check
        %p140 = pneg %p57
      $region14: #{dsc_module.5} parent=11 // pred_check_branch
        %142 = sbr.rel (%p140) target = $region16
      $region15: #{dsc_module.5} parent=11 // pred_region
        _
      $region16: #{dsc_module.5} parent=11 // pred_fallthru
        _
      // Predicated region
      $region17: #{dsc_module.5} parent=11 // pred_check
        %p143 = pneg %p78
      $region18: #{dsc_module.5} parent=11 // pred_check_branch
        %145 = sbr.rel (%p143) target = $region20
      $region19: #{dsc_module.5} parent=11 // pred_region
        _
      $region20: #{dsc_module.5} parent=11 // pred_fallthru
        _
      // Predicated region
      $region21: #{dsc_module.5} parent=11 // pred_check
        %p146 = pneg %p99
      $region22: #{dsc_module.5} parent=11 // pred_check_branch
        %148 = sbr.rel (%p146) target = $region24
      $region23: #{dsc_module.5} parent=11 // pred_region
        _
      $region24: #{dsc_module.5} parent=11 // pred_fallthru
        _
    $region12: #{dsc_module.5} parent=5 // pred_fallthru
      _
    %p149 = scmp.lt.s32.totalorder %s10, 2
    // Predicated region
    $region25: #{dsc_module.5} parent=5 // pred_check
      %p150 = pneg %p149
    $region26: #{dsc_module.5} parent=5 // pred_check_branch
      %152 = sbr.rel (%p150) target = $region28
    $region27: #{dsc_module.5} parent=5 // pred_region
      // Predicated region
      $region29: #{dsc_module.5} parent=27 // pred_check
        %p153 = pneg %p30
      $region30: #{dsc_module.5} parent=27 // pred_check_branch
        %155 = sbr.rel (%p153) target = $region32
      $region31: #{dsc_module.5} parent=27 // pred_region
        %p156 = scmp.lt.s32.totalorder %s10, 1
        %s157 = scalar_select %p156, %s10, 1
        %s158 = smul.addr %s157, 32
        %s159 = smul.addr %s158, 8
        %s160 = scalar_lea.vmem %s0, %s159
      $region32: #{dsc_module.5} parent=27 // pred_fallthru
        _
    $region28: #{dsc_module.5} parent=5 // pred_fallthru
      _
    %p161 = scmp.le.s32.totalorder 1, %s10
    %p162 = scmp.lt.s32.totalorder %s10, 3
    %p163 = pnand %p161, %p162
    %p164 = pneg %p163
    // Predicated region
    $region33: #{dsc_module.5} parent=5 // pred_check
      _
    $region34: #{dsc_module.5} parent=5 // pred_check_branch
      %166 = sbr.rel (%p163) target = $region36
    $region35: #{dsc_module.5} parent=5 // pred_region
      %s167 = ssub.s32 %s10, 1
      %p168 = scmp.lt.s32.totalorder %s15, 1
      %s169 = scalar_select %p168, %s15, 1
      %s170 = smul.addr %s169, 32
      %s171 = smul.addr %s170, 8
      %s172 = scalar_lea.vmem %s0, %s171
      %p173 = pneg %p36
      %p174 = pneg %p33
      %p175 = pneg %p57
      %p176 = pneg %p54
      %p177 = pneg %p78
      %p178 = pneg %p75
      %p179 = pneg %p99
      %p180 = pneg %p96
      %p181 = pneg %p125
      %p182 = pneg %p122
      %p183 = scmp.lt.s32.totalorder %s15, 1
      %s184 = scalar_select %p183, %s15, 1
      %s185 = smul.addr %s184, 32
      %s186 = smul.addr %s185, 8
      %s187 = scalar_lea.vmem %s4, %s186
      %p188 = scmp.lt.s32.totalorder %s15, 1
      %s189 = scalar_select %p188, %s15, 1
      %s190 = smul.addr %s189, 32
      %s191 = smul.addr %s190, 8
      %s192 = scalar_lea.vmem %s0, %s191
      %p193 = scmp.lt.s32.totalorder %s15, 1
      %s194 = scalar_select %p193, %s15, 1
      %s195 = smul.addr %s194, 32
      %s196 = smul.addr %s195, 8
      %s197 = scalar_lea.vmem %s4, %s196
      %v198 = vld [vmem:[%s192] sm:$0xff]
      %v199 = vld [vmem:[%s192 + $0x8] sm:$0xff]
      %v200 = vld [vmem:[%s192 + $0x10] sm:$0xff]
      %v201 = vld [vmem:[%s192 + $0x18] sm:$0xff]
      %v202 = vld [vmem:[%s192 + $0x20] sm:$0xff]
      %v203 = vld [vmem:[%s192 + $0x28] sm:$0xff]
      %v204 = vld [vmem:[%s192 + $0x30] sm:$0xff]
      %v205 = vld [vmem:[%s192 + $0x38] sm:$0xff]
      %v206 = vld [vmem:[%s192 + $0x40] sm:$0xff]
      %v207 = vld [vmem:[%s192 + $0x48] sm:$0xff]
      %v208 = vld [vmem:[%s192 + $0x50] sm:$0xff]
      %v209 = vld [vmem:[%s192 + $0x58] sm:$0xff]
      %v210 = vld [vmem:[%s192 + $0x60] sm:$0xff]
      %v211 = vld [vmem:[%s192 + $0x68] sm:$0xff]
      %v212 = vld [vmem:[%s192 + $0x70] sm:$0xff]
      %v213 = vld [vmem:[%s192 + $0x78] sm:$0xff]
      %v214 = vld [vmem:[%s192 + $0x80] sm:$0xff]
      %v215 = vld [vmem:[%s192 + $0x88] sm:$0xff]
      %v216 = vld [vmem:[%s192 + $0x90] sm:$0xff]
      %v217 = vld [vmem:[%s192 + $0x98] sm:$0xff]
      %v218 = vld [vmem:[%s192 + $0xa0] sm:$0xff]
      %v219 = vld [vmem:[%s192 + $0xa8] sm:$0xff]
      %v220 = vld [vmem:[%s192 + $0xb0] sm:$0xff]
      %v221 = vld [vmem:[%s192 + $0xb8] sm:$0xff]
      %v222 = vld [vmem:[%s192 + $0xc0] sm:$0xff]
      %v223 = vld [vmem:[%s192 + $0xc8] sm:$0xff]
      %v224 = vld [vmem:[%s192 + $0xd0] sm:$0xff]
      %v225 = vld [vmem:[%s192 + $0xd8] sm:$0xff]
      %v226 = vld [vmem:[%s192 + $0xe0] sm:$0xff]
      %v227 = vld [vmem:[%s192 + $0xe8] sm:$0xff]
      %v228 = vld [vmem:[%s192 + $0xf0] sm:$0xff]
      %v229 = vld [vmem:[%s192 + $0xf8] sm:$0xff]
      %v230 = vld [vmem:[%s3] sm:$0xff]
      %v231 = vld [vmem:[%s3 + $0x8] sm:$0xff]
      %v232 = vld [vmem:[%s3 + $0x10] sm:$0xff]
      %v233 = vld [vmem:[%s3 + $0x18] sm:$0xff]
      %v234 = vld [vmem:[%s3 + $0x20] sm:$0xf]
      %vm235 = vcmask 293888
      %v237 = vsel %vm235, %v198, 0
      %v240 = vsel %vm235, %v199, 0
      %v243 = vsel %vm235, %v200, 0
      %v246 = vsel %vm235, %v201, 0
      %v249 = vsel %vm235, %v202, 0
      %v252 = vsel %vm235, %v203, 0
      %v255 = vsel %vm235, %v204, 0
      %v258 = vsel %vm235, %v205, 0
      %v261 = vsel %vm235, %v206, 0
      %v264 = vsel %vm235, %v207, 0
      %v267 = vsel %vm235, %v208, 0
      %v270 = vsel %vm235, %v209, 0
      %v273 = vsel %vm235, %v210, 0
      %v276 = vsel %vm235, %v211, 0
      %v279 = vsel %vm235, %v212, 0
      %v282 = vsel %vm235, %v213, 0
      %v285 = vsel %vm235, %v214, 0
      %v288 = vsel %vm235, %v215, 0
      %v291 = vsel %vm235, %v216, 0
      %v294 = vsel %vm235, %v217, 0
      %v297 = vsel %vm235, %v218, 0
      %v300 = vsel %vm235, %v219, 0
      %v303 = vsel %vm235, %v220, 0
      %v306 = vsel %vm235, %v221, 0
      %v309 = vsel %vm235, %v222, 0
      %v312 = vsel %vm235, %v223, 0
      %v315 = vsel %vm235, %v224, 0
      %v318 = vsel %vm235, %v225, 0
      %v321 = vsel %vm235, %v226, 0
      %v324 = vsel %vm235, %v227, 0
      %v327 = vsel %vm235, %v228, 0
      %v330 = vsel %vm235, %v229, 0
      %vm332 = vcmask 1043456
      %v334 = vsel %vm332, %v234, 0
      %336 = vmatprep.subr.mxu0 0.0
      %337 = vmatpush1.msra.mxu0 0.0
      %338 = vmatprep.subr.mxu0 0.0
      %339 = vmatpush1.msra.mxu0 0.0
      %340 = vmatprep.subr.mxu0 0.0
      %341 = vmatpush1.msra.mxu0 0.0
      %342 = vmatprep.subr.mxu0 0.0
      %343 = vmatpush1.msra.mxu0 0.0
      %344 = vmatprep.subr.mxu0 0.0
      %345 = vmatpush1.msra.mxu0 0.0
      %346 = vmatprep.subr.mxu0 0.0
      %347 = vmatpush1.msra.mxu0 0.0
      %348 = vmatprep.subr.mxu0 0.0
      %349 = vmatpush1.msra.mxu0 0.0
      %350 = vmatprep.subr.mxu0 0.0
      %351 = vmatpush1.msra.mxu0 0.0
      %352 = vmatprep.subr.mxu0 0.0
      %353 = vmatpush1.msra.mxu0 0.0
      %354 = vmatprep.subr.mxu0 0.0
      %355 = vmatpush1.msra.mxu0 0.0
      %356 = vmatprep.subr.mxu0 0.0
      %357 = vmatpush1.msra.mxu0 0.0
      %358 = vmatprep.subr.mxu0 0.0
      %359 = vmatpush1.msra.mxu0 %v334
      %360 = vmatprep.subr.mxu0 0.0
      %361 = vmatpush1.msra.mxu0 %v233
      %362 = vmatprep.subr.mxu0 0.0
      %363 = vmatpush1.msra.mxu0 %v232
      %364 = vmatprep.subr.mxu0 0.0
      %365 = vmatpush1.msra.mxu0 %v231
      %366 = vmatprep.subr.mxu0 0.0
      %367 = vmatpush1.msra.mxu0 %v230
      %368 = vmatprep.subr.mxu0 0.0
      %369 = vmatpush2.msra.mxu0 0.0
      %370 = vmatprep.subr.mxu0 0.0
      %371 = vmatpush2.msra.mxu0 0.0
      %372 = vmatprep.subr.mxu0 0.0
      %373 = vmatpush2.msra.mxu0 0.0
      %374 = vmatprep.subr.mxu0 0.0
      %375 = vmatpush2.msra.mxu0 0.0
      %376 = vmatprep.subr.mxu0 0.0
      %377 = vmatpush2.msra.mxu0 0.0
      %378 = vmatprep.subr.mxu0 0.0
      %379 = vmatpush2.msra.mxu0 0.0
      %380 = vmatprep.subr.mxu0 0.0
      %381 = vmatpush2.msra.mxu0 0.0
      %382 = vmatprep.subr.mxu0 0.0
      %383 = vmatpush2.msra.mxu0 0.0
      %384 = vmatprep.subr.mxu0 0.0
      %385 = vmatpush2.msra.mxu0 0.0
      %386 = vmatprep.subr.mxu0 0.0
      %387 = vmatpush2.msra.mxu0 0.0
      %388 = vmatprep.subr.mxu0 0.0
      %389 = vmatpush2.msra.mxu0 0.0
      %390 = vmatprep.subr.mxu0 0.0
      %391 = vmatpush2.msra.mxu0 0.0
      %392 = vmatprep.subr.mxu0 0.0
      %393 = vmatpush2.msra.mxu0 0.0
      %394 = vmatprep.subr.mxu0 0.0
      %395 = vmatpush2.msra.mxu0 0.0
      %396 = vmatprep.subr.mxu0 0.0
      %397 = vmatpush2.msra.mxu0 0.0
      %398 = vmatprep.subr.mxu0 0.0
      %399 = vmatpush2.msra.mxu0 0.0
      %400 = vmatprep.mubr.f32.mxu0 0.0
      %401 = vmatmul.mubr.f32.gmra.mxu0 %v237
      %v402 = vpop.f32.mrf.mxu0
      %v403 = vadd.f32 0.0, %v402
      %v404 = vpop.f32.mrf.mxu0
      %405 = vmatprep.mubr.f32.mxu0 0.0
      %406 = vmatmul.mubr.f32.gmra.mxu0 %v240
      %v407 = vpop.f32.mrf.mxu0
      %v408 = vadd.f32 0.0, %v407
      %v409 = vpop.f32.mrf.mxu0
      %410 = vmatprep.mubr.f32.mxu0 0.0
      %411 = vmatmul.mubr.f32.gmra.mxu0 %v243
      %v412 = vpop.f32.mrf.mxu0
      %v413 = vadd.f32 0.0, %v412
      %v414 = vpop.f32.mrf.mxu0
      %415 = vmatprep.mubr.f32.mxu0 0.0
      %416 = vmatmul.mubr.f32.gmra.mxu0 %v246
      %v417 = vpop.f32.mrf.mxu0
      %v418 = vadd.f32 0.0, %v417
      %v419 = vpop.f32.mrf.mxu0
      %420 = vmatprep.mubr.f32.mxu0 0.0
      %421 = vmatmul.mubr.f32.gmra.mxu0 %v249
      %v422 = vpop.f32.mrf.mxu0
      %v423 = vadd.f32 0.0, %v422
      %v424 = vpop.f32.mrf.mxu0
      %425 = vmatprep.mubr.f32.mxu0 0.0
      %426 = vmatmul.mubr.f32.gmra.mxu0 %v252
      %v427 = vpop.f32.mrf.mxu0
      %v428 = vadd.f32 0.0, %v427
      %v429 = vpop.f32.mrf.mxu0
      %430 = vmatprep.mubr.f32.mxu0 0.0
      %431 = vmatmul.mubr.f32.gmra.mxu0 %v255
      %v432 = vpop.f32.mrf.mxu0
      %v433 = vadd.f32 0.0, %v432
      %v434 = vpop.f32.mrf.mxu0
      %435 = vmatprep.mubr.f32.mxu0 0.0
      %436 = vmatmul.mubr.f32.gmra.mxu0 %v258
      %v437 = vpop.f32.mrf.mxu0
      %v438 = vadd.f32 0.0, %v437
      %v439 = vpop.f32.mrf.mxu0
      %440 = vmatprep.mubr.f32.mxu0 0.0
      %441 = vmatmul.mubr.f32.gmra.mxu0 %v261
      %v442 = vpop.f32.mrf.mxu0
      %v443 = vadd.f32 0.0, %v442
      %v444 = vpop.f32.mrf.mxu0
      %445 = vmatprep.mubr.f32.mxu0 0.0
      %446 = vmatmul.mubr.f32.gmra.mxu0 %v264
      %v447 = vpop.f32.mrf.mxu0
      %v448 = vadd.f32 0.0, %v447
      %v449 = vpop.f32.mrf.mxu0
      %450 = vmatprep.mubr.f32.mxu0 0.0
      %451 = vmatmul.mubr.f32.gmra.mxu0 %v267
      %v452 = vpop.f32.mrf.mxu0
      %v453 = vadd.f32 0.0, %v452
      %v454 = vpop.f32.mrf.mxu0
      %455 = vmatprep.mubr.f32.mxu0 0.0
      %456 = vmatmul.mubr.f32.gmra.mxu0 %v270
      %v457 = vpop.f32.mrf.mxu0
      %v458 = vadd.f32 0.0, %v457
      %v459 = vpop.f32.mrf.mxu0
      %460 = vmatprep.mubr.f32.mxu0 0.0
      %461 = vmatmul.mubr.f32.gmra.mxu0 %v273
      %v462 = vpop.f32.mrf.mxu0
      %v463 = vadd.f32 0.0, %v462
      %v464 = vpop.f32.mrf.mxu0
      %465 = vmatprep.mubr.f32.mxu0 0.0
      %466 = vmatmul.mubr.f32.gmra.mxu0 %v276
      %v467 = vpop.f32.mrf.mxu0
      %v468 = vadd.f32 0.0, %v467
      %v469 = vpop.f32.mrf.mxu0
      %470 = vmatprep.mubr.f32.mxu0 0.0
      %471 = vmatmul.mubr.f32.gmra.mxu0 %v279
      %v472 = vpop.f32.mrf.mxu0
      %v473 = vadd.f32 0.0, %v472
      %v474 = vpop.f32.mrf.mxu0
      %475 = vmatprep.mubr.f32.mxu0 0.0
      %476 = vmatmul.mubr.f32.gmra.mxu0 %v282
      %v477 = vpop.f32.mrf.mxu0
      %v478 = vadd.f32 0.0, %v477
      %v479 = vpop.f32.mrf.mxu0
      %480 = vmatprep.mubr.f32.mxu0 0.0
      %481 = vmatmul.mubr.f32.gmra.mxu0 %v285
      %v482 = vpop.f32.mrf.mxu0
      %v483 = vadd.f32 0.0, %v482
      %v484 = vpop.f32.mrf.mxu0
      %485 = vmatprep.mubr.f32.mxu0 0.0
      %486 = vmatmul.mubr.f32.gmra.mxu0 %v288
      %v487 = vpop.f32.mrf.mxu0
      %v488 = vadd.f32 0.0, %v487
      %v489 = vpop.f32.mrf.mxu0
      %490 = vmatprep.mubr.f32.mxu0 0.0
      %491 = vmatmul.mubr.f32.gmra.mxu0 %v291
      %v492 = vpop.f32.mrf.mxu0
      %v493 = vadd.f32 0.0, %v492
      %v494 = vpop.f32.mrf.mxu0
      %495 = vmatprep.mubr.f32.mxu0 0.0
      %496 = vmatmul.mubr.f32.gmra.mxu0 %v294
      %v497 = vpop.f32.mrf.mxu0
      %v498 = vadd.f32 0.0, %v497
      %v499 = vpop.f32.mrf.mxu0
      %500 = vmatprep.mubr.f32.mxu0 0.0
      %501 = vmatmul.mubr.f32.gmra.mxu0 %v297
      %v502 = vpop.f32.mrf.mxu0
      %v503 = vadd.f32 0.0, %v502
      %v504 = vpop.f32.mrf.mxu0
      %505 = vmatprep.mubr.f32.mxu0 0.0
      %506 = vmatmul.mubr.f32.gmra.mxu0 %v300
      %v507 = vpop.f32.mrf.mxu0
      %v508 = vadd.f32 0.0, %v507
      %v509 = vpop.f32.mrf.mxu0
      %510 = vmatprep.mubr.f32.mxu0 0.0
      %511 = vmatmul.mubr.f32.gmra.mxu0 %v303
      %v512 = vpop.f32.mrf.mxu0
      %v513 = vadd.f32 0.0, %v512
      %v514 = vpop.f32.mrf.mxu0
      %515 = vmatprep.mubr.f32.mxu0 0.0
      %516 = vmatmul.mubr.f32.gmra.mxu0 %v306
      %v517 = vpop.f32.mrf.mxu0
      %v518 = vadd.f32 0.0, %v517
      %v519 = vpop.f32.mrf.mxu0
      %520 = vmatprep.mubr.f32.mxu0 0.0
      %521 = vmatmul.mubr.f32.gmra.mxu0 %v309
      %v522 = vpop.f32.mrf.mxu0
      %v523 = vadd.f32 0.0, %v522
      %v524 = vpop.f32.mrf.mxu0
      %525 = vmatprep.mubr.f32.mxu0 0.0
      %526 = vmatmul.mubr.f32.gmra.mxu0 %v312
      %v527 = vpop.f32.mrf.mxu0
      %v528 = vadd.f32 0.0, %v527
      %v529 = vpop.f32.mrf.mxu0
      %530 = vmatprep.mubr.f32.mxu0 0.0
      %531 = vmatmul.mubr.f32.gmra.mxu0 %v315
      %v532 = vpop.f32.mrf.mxu0
      %v533 = vadd.f32 0.0, %v532
      %v534 = vpop.f32.mrf.mxu0
      %535 = vmatprep.mubr.f32.mxu0 0.0
      %536 = vmatmul.mubr.f32.gmra.mxu0 %v318
      %v537 = vpop.f32.mrf.mxu0
      %v538 = vadd.f32 0.0, %v537
      %v539 = vpop.f32.mrf.mxu0
      %540 = vmatprep.mubr.f32.mxu0 0.0
      %541 = vmatmul.mubr.f32.gmra.mxu0 %v321
      %v542 = vpop.f32.mrf.mxu0
      %v543 = vadd.f32 0.0, %v542
      %v544 = vpop.f32.mrf.mxu0
      %545 = vmatprep.mubr.f32.mxu0 0.0
      %546 = vmatmul.mubr.f32.gmra.mxu0 %v324
      %v547 = vpop.f32.mrf.mxu0
      %v548 = vadd.f32 0.0, %v547
      %v549 = vpop.f32.mrf.mxu0
      %550 = vmatprep.mubr.f32.mxu0 0.0
      %551 = vmatmul.mubr.f32.gmra.mxu0 %v327
      %v552 = vpop.f32.mrf.mxu0
      %v553 = vadd.f32 0.0, %v552
      %v554 = vpop.f32.mrf.mxu0
      %555 = vmatprep.mubr.f32.mxu0 0.0
      %556 = vmatmul.mubr.f32.gmra.mxu0 %v330
      %v557 = vpop.f32.mrf.mxu0
      %v558 = vadd.f32 0.0, %v557
      %v559 = vpop.f32.mrf.mxu0
      %560 = vdwg.mxu0
      %v561 = vsel %vm235, %v403, 0.0
      %v562 = vsel %vm235, %v408, 0.0
      %v563 = vadd.f32 %v561, %v562
      %v564 = vsel %vm235, %v413, 0.0
      %v565 = vadd.f32 %v563, %v564
      %v566 = vsel %vm235, %v418, 0.0
      %v567 = vadd.f32 %v565, %v566
      %v568 = vsel %vm235, %v423, 0.0
      %v569 = vadd.f32 %v567, %v568
      %v570 = vsel %vm235, %v428, 0.0
      %v571 = vadd.f32 %v569, %v570
      %v572 = vsel %vm235, %v433, 0.0
      %v573 = vadd.f32 %v571, %v572
      %v574 = vsel %vm235, %v438, 0.0
      %v575 = vadd.f32 %v573, %v574
      %v576 = vsel %vm235, %v443, 0.0
      %v577 = vadd.f32 %v575, %v576
      %v578 = vsel %vm235, %v448, 0.0
      %v579 = vadd.f32 %v577, %v578
      %v580 = vsel %vm235, %v453, 0.0
      %v581 = vadd.f32 %v579, %v580
      %v582 = vsel %vm235, %v458, 0.0
      %v583 = vadd.f32 %v581, %v582
      %v584 = vsel %vm235, %v463, 0.0
      %v585 = vadd.f32 %v583, %v584
      %v586 = vsel %vm235, %v468, 0.0
      %v587 = vadd.f32 %v585, %v586
      %v588 = vsel %vm235, %v473, 0.0
      %v589 = vadd.f32 %v587, %v588
      %v590 = vsel %vm235, %v478, 0.0
      %v591 = vadd.f32 %v589, %v590
      %v592 = vsel %vm235, %v483, 0.0
      %v593 = vadd.f32 %v591, %v592
      %v594 = vsel %vm235, %v488, 0.0
      %v595 = vadd.f32 %v593, %v594
      %v596 = vsel %vm235, %v493, 0.0
      %v597 = vadd.f32 %v595, %v596
      %v598 = vsel %vm235, %v498, 0.0
      %v599 = vadd.f32 %v597, %v598
      %v600 = vsel %vm235, %v503, 0.0
      %v601 = vadd.f32 %v599, %v600
      %v602 = vsel %vm235, %v508, 0.0
      %v603 = vadd.f32 %v601, %v602
      %v604 = vsel %vm235, %v513, 0.0
      %v605 = vadd.f32 %v603, %v604
      %v606 = vsel %vm235, %v518, 0.0
      %v607 = vadd.f32 %v605, %v606
      %v608 = vsel %vm235, %v523, 0.0
      %v609 = vadd.f32 %v607, %v608
      %v610 = vsel %vm235, %v528, 0.0
      %v611 = vadd.f32 %v609, %v610
      %v612 = vsel %vm235, %v533, 0.0
      %v613 = vadd.f32 %v611, %v612
      %v614 = vsel %vm235, %v538, 0.0
      %v615 = vadd.f32 %v613, %v614
      %v616 = vsel %vm235, %v543, 0.0
      %v617 = vadd.f32 %v615, %v616
      %v618 = vsel %vm235, %v548, 0.0
      %v619 = vadd.f32 %v617, %v618
      %v620 = vsel %vm235, %v553, 0.0
      %v621 = vadd.f32 %v619, %v620
      %v622 = vsel %vm235, %v558, 0.0
      %v623 = vadd.f32 %v621, %v622
      %v624 = vrot.slane %v623, 4
      %v625 = vadd.f32 %v623, %v624
      %v626 = vrot.slane %v625, 2
      %v627 = vadd.f32 %v625, %v626
      %v628 = vrot.slane %v627, 1
      %v629 = vadd.f32 %v627, %v628
      %v630 = vmul.f32 %v629, 0.001953125
      %v631 = vsub.f32 %v198, %v630
      %v632 = vsub.f32 %v199, %v630
      %v633 = vsub.f32 %v200, %v630
      %v634 = vsub.f32 %v201, %v630
      %v635 = vsub.f32 %v202, %v630
      %v636 = vsub.f32 %v203, %v630
      %v637 = vsub.f32 %v204, %v630
      %v638 = vsub.f32 %v205, %v630
      %v639 = vsub.f32 %v206, %v630
      %v640 = vsub.f32 %v207, %v630
      %v641 = vsub.f32 %v208, %v630
      %v642 = vsub.f32 %v209, %v630
      %v643 = vsub.f32 %v210, %v630
      %v644 = vsub.f32 %v211, %v630
      %v645 = vsub.f32 %v212, %v630
      %v646 = vsub.f32 %v213, %v630
      %v647 = vsub.f32 %v214, %v630
      %v648 = vsub.f32 %v215, %v630
      %v649 = vsub.f32 %v216, %v630
      %v650 = vsub.f32 %v217, %v630
      %v651 = vsub.f32 %v218, %v630
      %v652 = vsub.f32 %v219, %v630
      %v653 = vsub.f32 %v220, %v630
      %v654 = vsub.f32 %v221, %v630
      %v655 = vsub.f32 %v222, %v630
      %v656 = vsub.f32 %v223, %v630
      %v657 = vsub.f32 %v224, %v630
      %v658 = vsub.f32 %v225, %v630
      %v659 = vsub.f32 %v226, %v630
      %v660 = vsub.f32 %v227, %v630
      %v661 = vsub.f32 %v228, %v630
      %v662 = vsub.f32 %v229, %v630
      %v663 = vmul.f32 %v631, %v631
      %v664 = vmul.f32 %v632, %v632
      %v665 = vmul.f32 %v633, %v633
      %v666 = vmul.f32 %v634, %v634
      %v667 = vmul.f32 %v635, %v635
      %v668 = vmul.f32 %v636, %v636
      %v669 = vmul.f32 %v637, %v637
      %v670 = vmul.f32 %v638, %v638
      %v671 = vmul.f32 %v639, %v639
      %v672 = vmul.f32 %v640, %v640
      %v673 = vmul.f32 %v641, %v641
      %v674 = vmul.f32 %v642, %v642
      %v675 = vmul.f32 %v643, %v643
      %v676 = vmul.f32 %v644, %v644
      %v677 = vmul.f32 %v645, %v645
      %v678 = vmul.f32 %v646, %v646
      %v679 = vmul.f32 %v647, %v647
      %v680 = vmul.f32 %v648, %v648
      %v681 = vmul.f32 %v649, %v649
      %v682 = vmul.f32 %v650, %v650
      %v683 = vmul.f32 %v651, %v651
      %v684 = vmul.f32 %v652, %v652
      %v685 = vmul.f32 %v653, %v653
      %v686 = vmul.f32 %v654, %v654
      %v687 = vmul.f32 %v655, %v655
      %v688 = vmul.f32 %v656, %v656
      %v689 = vmul.f32 %v657, %v657
      %v690 = vmul.f32 %v658, %v658
      %v691 = vmul.f32 %v659, %v659
      %v692 = vmul.f32 %v660, %v660
      %v693 = vmul.f32 %v661, %v661
      %v694 = vmul.f32 %v662, %v662
      %v696 = vsel %vm235, %v663, 0
      %v699 = vsel %vm235, %v664, 0
      %v702 = vsel %vm235, %v665, 0
      %v705 = vsel %vm235, %v666, 0
      %v708 = vsel %vm235, %v667, 0
      %v711 = vsel %vm235, %v668, 0
      %v714 = vsel %vm235, %v669, 0
      %v717 = vsel %vm235, %v670, 0
      %v720 = vsel %vm235, %v671, 0
      %v723 = vsel %vm235, %v672, 0
      %v726 = vsel %vm235, %v673, 0
      %v729 = vsel %vm235, %v674, 0
      %v732 = vsel %vm235, %v675, 0
      %v735 = vsel %vm235, %v676, 0
      %v738 = vsel %vm235, %v677, 0
      %v741 = vsel %vm235, %v678, 0
      %v744 = vsel %vm235, %v679, 0
      %v747 = vsel %vm235, %v680, 0
      %v750 = vsel %vm235, %v681, 0
      %v753 = vsel %vm235, %v682, 0
      %v756 = vsel %vm235, %v683, 0
      %v759 = vsel %vm235, %v684, 0
      %v762 = vsel %vm235, %v685, 0
      %v765 = vsel %vm235, %v686, 0
      %v768 = vsel %vm235, %v687, 0
      %v771 = vsel %vm235, %v688, 0
      %v774 = vsel %vm235, %v689, 0
      %v777 = vsel %vm235, %v690, 0
      %v780 = vsel %vm235, %v691, 0
      %v783 = vsel %vm235, %v692, 0
      %v786 = vsel %vm235, %v693, 0
      %v789 = vsel %vm235, %v694, 0
      %791 = vmatprep.subr.mxu0 0.0
      %792 = vmatpush1.msra.mxu0 0.0
      %793 = vmatprep.subr.mxu0 0.0
      %794 = vmatpush1.msra.mxu0 0.0
      %795 = vmatprep.subr.mxu0 0.0
      %796 = vmatpush1.msra.mxu0 0.0
      %797 = vmatprep.subr.mxu0 0.0
      %798 = vmatpush1.msra.mxu0 0.0
      %799 = vmatprep.subr.mxu0 0.0
      %800 = vmatpush1.msra.mxu0 0.0
      %801 = vmatprep.subr.mxu0 0.0
      %802 = vmatpush1.msra.mxu0 0.0
      %803 = vmatprep.subr.mxu0 0.0
      %804 = vmatpush1.msra.mxu0 0.0
      %805 = vmatprep.subr.mxu0 0.0
      %806 = vmatpush1.msra.mxu0 0.0
      %807 = vmatprep.subr.mxu0 0.0
      %808 = vmatpush1.msra.mxu0 0.0
      %809 = vmatprep.subr.mxu0 0.0
      %810 = vmatpush1.msra.mxu0 0.0
      %811 = vmatprep.subr.mxu0 0.0
      %812 = vmatpush1.msra.mxu0 0.0
      %813 = vmatprep.subr.mxu0 0.0
      %814 = vmatpush1.msra.mxu0 %v334
      %815 = vmatprep.subr.mxu0 0.0
      %816 = vmatpush1.msra.mxu0 %v233
      %817 = vmatprep.subr.mxu0 0.0
      %818 = vmatpush1.msra.mxu0 %v232
      %819 = vmatprep.subr.mxu0 0.0
      %820 = vmatpush1.msra.mxu0 %v231
      %821 = vmatprep.subr.mxu0 0.0
      %822 = vmatpush1.msra.mxu0 %v230
      %823 = vmatprep.subr.mxu0 0.0
      %824 = vmatpush2.msra.mxu0 0.0
      %825 = vmatprep.subr.mxu0 0.0
      %826 = vmatpush2.msra.mxu0 0.0
      %827 = vmatprep.subr.mxu0 0.0
      %828 = vmatpush2.msra.mxu0 0.0
      %829 = vmatprep.subr.mxu0 0.0
      %830 = vmatpush2.msra.mxu0 0.0
      %831 = vmatprep.subr.mxu0 0.0
      %832 = vmatpush2.msra.mxu0 0.0
      %833 = vmatprep.subr.mxu0 0.0
      %834 = vmatpush2.msra.mxu0 0.0
      %835 = vmatprep.subr.mxu0 0.0
      %836 = vmatpush2.msra.mxu0 0.0
      %837 = vmatprep.subr.mxu0 0.0
      %838 = vmatpush2.msra.mxu0 0.0
      %839 = vmatprep.subr.mxu0 0.0
      %840 = vmatpush2.msra.mxu0 0.0
      %841 = vmatprep.subr.mxu0 0.0
      %842 = vmatpush2.msra.mxu0 0.0
      %843 = vmatprep.subr.mxu0 0.0
      %844 = vmatpush2.msra.mxu0 0.0
      %845 = vmatprep.subr.mxu0 0.0
      %846 = vmatpush2.msra.mxu0 0.0
      %847 = vmatprep.subr.mxu0 0.0
      %848 = vmatpush2.msra.mxu0 0.0
      %849 = vmatprep.subr.mxu0 0.0
      %850 = vmatpush2.msra.mxu0 0.0
      %851 = vmatprep.subr.mxu0 0.0
      %852 = vmatpush2.msra.mxu0 0.0
      %853 = vmatprep.subr.mxu0 0.0
      %854 = vmatpush2.msra.mxu0 0.0
      %855 = vmatprep.mubr.f32.mxu0 0.0
      %856 = vmatmul.mubr.f32.gmra.mxu0 %v696
      %v857 = vpop.f32.mrf.mxu0
      %v858 = vadd.f32 0.0, %v857
      %v859 = vpop.f32.mrf.mxu0
      %860 = vmatprep.mubr.f32.mxu0 0.0
      %861 = vmatmul.mubr.f32.gmra.mxu0 %v699
      %v862 = vpop.f32.mrf.mxu0
      %v863 = vadd.f32 0.0, %v862
      %v864 = vpop.f32.mrf.mxu0
      %865 = vmatprep.mubr.f32.mxu0 0.0
      %866 = vmatmul.mubr.f32.gmra.mxu0 %v702
      %v867 = vpop.f32.mrf.mxu0
      %v868 = vadd.f32 0.0, %v867
      %v869 = vpop.f32.mrf.mxu0
      %870 = vmatprep.mubr.f32.mxu0 0.0
      %871 = vmatmul.mubr.f32.gmra.mxu0 %v705
      %v872 = vpop.f32.mrf.mxu0
      %v873 = vadd.f32 0.0, %v872
      %v874 = vpop.f32.mrf.mxu0
      %875 = vmatprep.mubr.f32.mxu0 0.0
      %876 = vmatmul.mubr.f32.gmra.mxu0 %v708
      %v877 = vpop.f32.mrf.mxu0
      %v878 = vadd.f32 0.0, %v877
      %v879 = vpop.f32.mrf.mxu0
      %880 = vmatprep.mubr.f32.mxu0 0.0
      %881 = vmatmul.mubr.f32.gmra.mxu0 %v711
      %v882 = vpop.f32.mrf.mxu0
      %v883 = vadd.f32 0.0, %v882
      %v884 = vpop.f32.mrf.mxu0
      %885 = vmatprep.mubr.f32.mxu0 0.0
      %886 = vmatmul.mubr.f32.gmra.mxu0 %v714
      %v887 = vpop.f32.mrf.mxu0
      %v888 = vadd.f32 0.0, %v887
      %v889 = vpop.f32.mrf.mxu0
      %890 = vmatprep.mubr.f32.mxu0 0.0
      %891 = vmatmul.mubr.f32.gmra.mxu0 %v717
      %v892 = vpop.f32.mrf.mxu0
      %v893 = vadd.f32 0.0, %v892
      %v894 = vpop.f32.mrf.mxu0
      %895 = vmatprep.mubr.f32.mxu0 0.0
      %896 = vmatmul.mubr.f32.gmra.mxu0 %v720
      %v897 = vpop.f32.mrf.mxu0
      %v898 = vadd.f32 0.0, %v897
      %v899 = vpop.f32.mrf.mxu0
      %900 = vmatprep.mubr.f32.mxu0 0.0
      %901 = vmatmul.mubr.f32.gmra.mxu0 %v723
      %v902 = vpop.f32.mrf.mxu0
      %v903 = vadd.f32 0.0, %v902
      %v904 = vpop.f32.mrf.mxu0
      %905 = vmatprep.mubr.f32.mxu0 0.0
      %906 = vmatmul.mubr.f32.gmra.mxu0 %v726
      %v907 = vpop.f32.mrf.mxu0
      %v908 = vadd.f32 0.0, %v907
      %v909 = vpop.f32.mrf.mxu0
      %910 = vmatprep.mubr.f32.mxu0 0.0
      %911 = vmatmul.mubr.f32.gmra.mxu0 %v729
      %v912 = vpop.f32.mrf.mxu0
      %v913 = vadd.f32 0.0, %v912
      %v914 = vpop.f32.mrf.mxu0
      %915 = vmatprep.mubr.f32.mxu0 0.0
      %916 = vmatmul.mubr.f32.gmra.mxu0 %v732
      %v917 = vpop.f32.mrf.mxu0
      %v918 = vadd.f32 0.0, %v917
      %v919 = vpop.f32.mrf.mxu0
      %920 = vmatprep.mubr.f32.mxu0 0.0
      %921 = vmatmul.mubr.f32.gmra.mxu0 %v735
      %v922 = vpop.f32.mrf.mxu0
      %v923 = vadd.f32 0.0, %v922
      %v924 = vpop.f32.mrf.mxu0
      %925 = vmatprep.mubr.f32.mxu0 0.0
      %926 = vmatmul.mubr.f32.gmra.mxu0 %v738
      %v927 = vpop.f32.mrf.mxu0
      %v928 = vadd.f32 0.0, %v927
      %v929 = vpop.f32.mrf.mxu0
      %930 = vmatprep.mubr.f32.mxu0 0.0
      %931 = vmatmul.mubr.f32.gmra.mxu0 %v741
      %v932 = vpop.f32.mrf.mxu0
      %v933 = vadd.f32 0.0, %v932
      %v934 = vpop.f32.mrf.mxu0
      %935 = vmatprep.mubr.f32.mxu0 0.0
      %936 = vmatmul.mubr.f32.gmra.mxu0 %v744
      %v937 = vpop.f32.mrf.mxu0
      %v938 = vadd.f32 0.0, %v937
      %v939 = vpop.f32.mrf.mxu0
      %940 = vmatprep.mubr.f32.mxu0 0.0
      %941 = vmatmul.mubr.f32.gmra.mxu0 %v747
      %v942 = vpop.f32.mrf.mxu0
      %v943 = vadd.f32 0.0, %v942
      %v944 = vpop.f32.mrf.mxu0
      %945 = vmatprep.mubr.f32.mxu0 0.0
      %946 = vmatmul.mubr.f32.gmra.mxu0 %v750
      %v947 = vpop.f32.mrf.mxu0
      %v948 = vadd.f32 0.0, %v947
      %v949 = vpop.f32.mrf.mxu0
      %950 = vmatprep.mubr.f32.mxu0 0.0
      %951 = vmatmul.mubr.f32.gmra.mxu0 %v753
      %v952 = vpop.f32.mrf.mxu0
      %v953 = vadd.f32 0.0, %v952
      %v954 = vpop.f32.mrf.mxu0
      %955 = vmatprep.mubr.f32.mxu0 0.0
      %956 = vmatmul.mubr.f32.gmra.mxu0 %v756
      %v957 = vpop.f32.mrf.mxu0
      %v958 = vadd.f32 0.0, %v957
      %v959 = vpop.f32.mrf.mxu0
      %960 = vmatprep.mubr.f32.mxu0 0.0
      %961 = vmatmul.mubr.f32.gmra.mxu0 %v759
      %v962 = vpop.f32.mrf.mxu0
      %v963 = vadd.f32 0.0, %v962
      %v964 = vpop.f32.mrf.mxu0
      %965 = vmatprep.mubr.f32.mxu0 0.0
      %966 = vmatmul.mubr.f32.gmra.mxu0 %v762
      %v967 = vpop.f32.mrf.mxu0
      %v968 = vadd.f32 0.0, %v967
      %v969 = vpop.f32.mrf.mxu0
      %970 = vmatprep.mubr.f32.mxu0 0.0
      %971 = vmatmul.mubr.f32.gmra.mxu0 %v765
      %v972 = vpop.f32.mrf.mxu0
      %v973 = vadd.f32 0.0, %v972
      %v974 = vpop.f32.mrf.mxu0
      %975 = vmatprep.mubr.f32.mxu0 0.0
      %976 = vmatmul.mubr.f32.gmra.mxu0 %v768
      %v977 = vpop.f32.mrf.mxu0
      %v978 = vadd.f32 0.0, %v977
      %v979 = vpop.f32.mrf.mxu0
      %980 = vmatprep.mubr.f32.mxu0 0.0
      %981 = vmatmul.mubr.f32.gmra.mxu0 %v771
      %v982 = vpop.f32.mrf.mxu0
      %v983 = vadd.f32 0.0, %v982
      %v984 = vpop.f32.mrf.mxu0
      %985 = vmatprep.mubr.f32.mxu0 0.0
      %986 = vmatmul.mubr.f32.gmra.mxu0 %v774
      %v987 = vpop.f32.mrf.mxu0
      %v988 = vadd.f32 0.0, %v987
      %v989 = vpop.f32.mrf.mxu0
      %990 = vmatprep.mubr.f32.mxu0 0.0
      %991 = vmatmul.mubr.f32.gmra.mxu0 %v777
      %v992 = vpop.f32.mrf.mxu0
      %v993 = vadd.f32 0.0, %v992
      %v994 = vpop.f32.mrf.mxu0
      %995 = vmatprep.mubr.f32.mxu0 0.0
      %996 = vmatmul.mubr.f32.gmra.mxu0 %v780
      %v997 = vpop.f32.mrf.mxu0
      %v998 = vadd.f32 0.0, %v997
      %v999 = vpop.f32.mrf.mxu0
      %1000 = vmatprep.mubr.f32.mxu0 0.0
      %1001 = vmatmul.mubr.f32.gmra.mxu0 %v783
      %v1002 = vpop.f32.mrf.mxu0
      %v1003 = vadd.f32 0.0, %v1002
      %v1004 = vpop.f32.mrf.mxu0
      %1005 = vmatprep.mubr.f32.mxu0 0.0
      %1006 = vmatmul.mubr.f32.gmra.mxu0 %v786
      %v1007 = vpop.f32.mrf.mxu0
      %v1008 = vadd.f32 0.0, %v1007
      %v1009 = vpop.f32.mrf.mxu0
      %1010 = vmatprep.mubr.f32.mxu0 0.0
      %1011 = vmatmul.mubr.f32.gmra.mxu0 %v789
      %v1012 = vpop.f32.mrf.mxu0
      %v1013 = vadd.f32 0.0, %v1012
      %v1014 = vpop.f32.mrf.mxu0
      %1015 = vdwg.mxu0
      %v1016 = vsel %vm235, %v858, 0.0
      %v1017 = vsel %vm235, %v863, 0.0
      %v1018 = vadd.f32 %v1016, %v1017
      %v1019 = vsel %vm235, %v868, 0.0
      %v1020 = vadd.f32 %v1018, %v1019
      %v1021 = vsel %vm235, %v873, 0.0
      %v1022 = vadd.f32 %v1020, %v1021
      %v1023 = vsel %vm235, %v878, 0.0
      %v1024 = vadd.f32 %v1022, %v1023
      %v1025 = vsel %vm235, %v883, 0.0
      %v1026 = vadd.f32 %v1024, %v1025
      %v1027 = vsel %vm235, %v888, 0.0
      %v1028 = vadd.f32 %v1026, %v1027
      %v1029 = vsel %vm235, %v893, 0.0
      %v1030 = vadd.f32 %v1028, %v1029
      %v1031 = vsel %vm235, %v898, 0.0
      %v1032 = vadd.f32 %v1030, %v1031
      %v1033 = vsel %vm235, %v903, 0.0
      %v1034 = vadd.f32 %v1032, %v1033
      %v1035 = vsel %vm235, %v908, 0.0
      %v1036 = vadd.f32 %v1034, %v1035
      %v1037 = vsel %vm235, %v913, 0.0
      %v1038 = vadd.f32 %v1036, %v1037
      %v1039 = vsel %vm235, %v918, 0.0
      %v1040 = vadd.f32 %v1038, %v1039
      %v1041 = vsel %vm235, %v923, 0.0
      %v1042 = vadd.f32 %v1040, %v1041
      %v1043 = vsel %vm235, %v928, 0.0
      %v1044 = vadd.f32 %v1042, %v1043
      %v1045 = vsel %vm235, %v933, 0.0
      %v1046 = vadd.f32 %v1044, %v1045
      %v1047 = vsel %vm235, %v938, 0.0
      %v1048 = vadd.f32 %v1046, %v1047
      %v1049 = vsel %vm235, %v943, 0.0
      %v1050 = vadd.f32 %v1048, %v1049
      %v1051 = vsel %vm235, %v948, 0.0
      %v1052 = vadd.f32 %v1050, %v1051
      %v1053 = vsel %vm235, %v953, 0.0
      %v1054 = vadd.f32 %v1052, %v1053
      %v1055 = vsel %vm235, %v958, 0.0
      %v1056 = vadd.f32 %v1054, %v1055
      %v1057 = vsel %vm235, %v963, 0.0
      %v1058 = vadd.f32 %v1056, %v1057
      %v1059 = vsel %vm235, %v968, 0.0
      %v1060 = vadd.f32 %v1058, %v1059
      %v1061 = vsel %vm235, %v973, 0.0
      %v1062 = vadd.f32 %v1060, %v1061
      %v1063 = vsel %vm235, %v978, 0.0
      %v1064 = vadd.f32 %v1062, %v1063
      %v1065 = vsel %vm235, %v983, 0.0
      %v1066 = vadd.f32 %v1064, %v1065
      %v1067 = vsel %vm235, %v988, 0.0
      %v1068 = vadd.f32 %v1066, %v1067
      %v1069 = vsel %vm235, %v993, 0.0
      %v1070 = vadd.f32 %v1068, %v1069
      %v1071 = vsel %vm235, %v998, 0.0
      %v1072 = vadd.f32 %v1070, %v1071
      %v1073 = vsel %vm235, %v1003, 0.0
      %v1074 = vadd.f32 %v1072, %v1073
      %v1075 = vsel %vm235, %v1008, 0.0
      %v1076 = vadd.f32 %v1074, %v1075
      %v1077 = vsel %vm235, %v1013, 0.0
      %v1078 = vadd.f32 %v1076, %v1077
      %v1079 = vrot.slane %v1078, 4
      %v1080 = vadd.f32 %v1078, %v1079
      %v1081 = vrot.slane %v1080, 2
      %v1082 = vadd.f32 %v1080, %v1081
      %v1083 = vrot.slane %v1082, 1
      %v1084 = vadd.f32 %v1082, %v1083
      %v1085 = vmul.f32 %v1084, 0.001953125
      %v1086 = vadd.f32 %v1085, 1e-05
      %v1087 = vrsqrt.pop %v1086
      %v1088 = vmul.f32 %v631, %v1087
      %v1089 = vmul.f32 %v632, %v1087
      %v1090 = vmul.f32 %v633, %v1087
      %v1091 = vmul.f32 %v634, %v1087
      %v1092 = vmul.f32 %v635, %v1087
      %v1093 = vmul.f32 %v636, %v1087
      %v1094 = vmul.f32 %v637, %v1087
      %v1095 = vmul.f32 %v638, %v1087
      %v1096 = vmul.f32 %v639, %v1087
      %v1097 = vmul.f32 %v640, %v1087
      %v1098 = vmul.f32 %v641, %v1087
      %v1099 = vmul.f32 %v642, %v1087
      %v1100 = vmul.f32 %v643, %v1087
      %v1101 = vmul.f32 %v644, %v1087
      %v1102 = vmul.f32 %v645, %v1087
      %v1103 = vmul.f32 %v646, %v1087
      %v1104 = vmul.f32 %v647, %v1087
      %v1105 = vmul.f32 %v648, %v1087
      %v1106 = vmul.f32 %v649, %v1087
      %v1107 = vmul.f32 %v650, %v1087
      %v1108 = vmul.f32 %v651, %v1087
      %v1109 = vmul.f32 %v652, %v1087
      %v1110 = vmul.f32 %v653, %v1087
      %v1111 = vmul.f32 %v654, %v1087
      %v1112 = vmul.f32 %v655, %v1087
      %v1113 = vmul.f32 %v656, %v1087
      %v1114 = vmul.f32 %v657, %v1087
      %v1115 = vmul.f32 %v658, %v1087
      %v1116 = vmul.f32 %v659, %v1087
      %v1117 = vmul.f32 %v660, %v1087
      %v1118 = vmul.f32 %v661, %v1087
      %v1119 = vmul.f32 %v662, %v1087
      %v1120 = vld [vmem:[%s1] sm:$0x1]
      %v1122 = vlaneseq
      %v1123 = vshrl.u32 %v1122, 7
      %v1124 = vsub.s32 0, %v1123
      %v1125 = vrot.slane %v1120, %v1124
      %v1127 = vmul.f32 %v1088, %v1125
      %v1128 = vmul.f32 %v1089, %v1125
      %v1129 = vmul.f32 %v1090, %v1125
      %v1130 = vmul.f32 %v1091, %v1125
      %v1131 = vmul.f32 %v1092, %v1125
      %v1132 = vmul.f32 %v1093, %v1125
      %v1133 = vmul.f32 %v1094, %v1125
      %v1134 = vmul.f32 %v1095, %v1125
      %v1135 = vmul.f32 %v1096, %v1125
      %v1136 = vmul.f32 %v1097, %v1125
      %v1137 = vmul.f32 %v1098, %v1125
      %v1138 = vmul.f32 %v1099, %v1125
      %v1139 = vmul.f32 %v1100, %v1125
      %v1140 = vmul.f32 %v1101, %v1125
      %v1141 = vmul.f32 %v1102, %v1125
      %v1142 = vmul.f32 %v1103, %v1125
      %v1143 = vmul.f32 %v1104, %v1125
      %v1144 = vmul.f32 %v1105, %v1125
      %v1145 = vmul.f32 %v1106, %v1125
      %v1146 = vmul.f32 %v1107, %v1125
      %v1147 = vmul.f32 %v1108, %v1125
      %v1148 = vmul.f32 %v1109, %v1125
      %v1149 = vmul.f32 %v1110, %v1125
      %v1150 = vmul.f32 %v1111, %v1125
      %v1151 = vmul.f32 %v1112, %v1125
      %v1152 = vmul.f32 %v1113, %v1125
      %v1153 = vmul.f32 %v1114, %v1125
      %v1154 = vmul.f32 %v1115, %v1125
      %v1155 = vmul.f32 %v1116, %v1125
      %v1156 = vmul.f32 %v1117, %v1125
      %v1157 = vmul.f32 %v1118, %v1125
      %v1158 = vmul.f32 %v1119, %v1125
      %v1159 = vld [vmem:[%s2] sm:$0x1]
      %v1161 = vlaneseq
      %v1162 = vshrl.u32 %v1161, 7
      %v1163 = vsub.s32 0, %v1162
      %v1164 = vrot.slane %v1159, %v1163
      %v1166 = vadd.f32 %v1127, %v1164
      %v1167 = vadd.f32 %v1128, %v1164
      %v1168 = vadd.f32 %v1129, %v1164
      %v1169 = vadd.f32 %v1130, %v1164
      %v1170 = vadd.f32 %v1131, %v1164
      %v1171 = vadd.f32 %v1132, %v1164
      %v1172 = vadd.f32 %v1133, %v1164
      %v1173 = vadd.f32 %v1134, %v1164
      %v1174 = vadd.f32 %v1135, %v1164
      %v1175 = vadd.f32 %v1136, %v1164
      %v1176 = vadd.f32 %v1137, %v1164
      %v1177 = vadd.f32 %v1138, %v1164
      %v1178 = vadd.f32 %v1139, %v1164
      %v1179 = vadd.f32 %v1140, %v1164
      %v1180 = vadd.f32 %v1141, %v1164
      %v1181 = vadd.f32 %v1142, %v1164
      %v1182 = vadd.f32 %v1143, %v1164
      %v1183 = vadd.f32 %v1144, %v1164
      %v1184 = vadd.f32 %v1145, %v1164
      %v1185 = vadd.f32 %v1146, %v1164
      %v1186 = vadd.f32 %v1147, %v1164
      %v1187 = vadd.f32 %v1148, %v1164
      %v1188 = vadd.f32 %v1149, %v1164
      %v1189 = vadd.f32 %v1150, %v1164
      %v1190 = vadd.f32 %v1151, %v1164
      %v1191 = vadd.f32 %v1152, %v1164
      %v1192 = vadd.f32 %v1153, %v1164
      %v1193 = vadd.f32 %v1154, %v1164
      %v1194 = vadd.f32 %v1155, %v1164
      %v1195 = vadd.f32 %v1156, %v1164
      %v1196 = vadd.f32 %v1157, %v1164
      %v1197 = vadd.f32 %v1158, %v1164
      %v1198 = vtanh.pop %v1166
      %v1199 = vtanh.pop %v1167
      %v1200 = vtanh.pop %v1168
      %v1201 = vtanh.pop %v1169
      %v1202 = vtanh.pop %v1170
      %v1203 = vtanh.pop %v1171
      %v1204 = vtanh.pop %v1172
      %v1205 = vtanh.pop %v1173
      %v1206 = vtanh.pop %v1174
      %v1207 = vtanh.pop %v1175
      %v1208 = vtanh.pop %v1176
      %v1209 = vtanh.pop %v1177
      %v1210 = vtanh.pop %v1178
      %v1211 = vtanh.pop %v1179
      %v1212 = vtanh.pop %v1180
      %v1213 = vtanh.pop %v1181
      %v1214 = vtanh.pop %v1182
      %v1215 = vtanh.pop %v1183
      %v1216 = vtanh.pop %v1184
      %v1217 = vtanh.pop %v1185
      %v1218 = vtanh.pop %v1186
      %v1219 = vtanh.pop %v1187
      %v1220 = vtanh.pop %v1188
      %v1221 = vtanh.pop %v1189
      %v1222 = vtanh.pop %v1190
      %v1223 = vtanh.pop %v1191
      %v1224 = vtanh.pop %v1192
      %v1225 = vtanh.pop %v1193
      %v1226 = vtanh.pop %v1194
      %v1227 = vtanh.pop %v1195
      %v1228 = vtanh.pop %v1196
      %v1229 = vtanh.pop %v1197
      %1230 = vst.msk [vmem:[%s197] sm:$0xff] %vm235, %v1198
      %1231 = vst.msk [vmem:[%s197 + $0x8] sm:$0xff] %vm235, %v1199
      %1232 = vst.msk [vmem:[%s197 + $0x10] sm:$0xff] %vm235, %v1200
      %1233 = vst.msk [vmem:[%s197 + $0x18] sm:$0xff] %vm235, %v1201
      %1234 = vst.msk [vmem:[%s197 + $0x20] sm:$0xff] %vm235, %v1202
      %1235 = vst.msk [vmem:[%s197 + $0x28] sm:$0xff] %vm235, %v1203
      %1236 = vst.msk [vmem:[%s197 + $0x30] sm:$0xff] %vm235, %v1204
      %1237 = vst.msk [vmem:[%s197 + $0x38] sm:$0xff] %vm235, %v1205
      %1238 = vst.msk [vmem:[%s197 + $0x40] sm:$0xff] %vm235, %v1206
      %1239 = vst.msk [vmem:[%s197 + $0x48] sm:$0xff] %vm235, %v1207
      %1240 = vst.msk [vmem:[%s197 + $0x50] sm:$0xff] %vm235, %v1208
      %1241 = vst.msk [vmem:[%s197 + $0x58] sm:$0xff] %vm235, %v1209
      %1242 = vst.msk [vmem:[%s197 + $0x60] sm:$0xff] %vm235, %v1210
      %1243 = vst.msk [vmem:[%s197 + $0x68] sm:$0xff] %vm235, %v1211
      %1244 = vst.msk [vmem:[%s197 + $0x70] sm:$0xff] %vm235, %v1212
      %1245 = vst.msk [vmem:[%s197 + $0x78] sm:$0xff] %vm235, %v1213
      %1246 = vst.msk [vmem:[%s197 + $0x80] sm:$0xff] %vm235, %v1214
      %1247 = vst.msk [vmem:[%s197 + $0x88] sm:$0xff] %vm235, %v1215
      %1248 = vst.msk [vmem:[%s197 + $0x90] sm:$0xff] %vm235, %v1216
      %1249 = vst.msk [vmem:[%s197 + $0x98] sm:$0xff] %vm235, %v1217
      %1250 = vst.msk [vmem:[%s197 + $0xa0] sm:$0xff] %vm235, %v1218
      %1251 = vst.msk [vmem:[%s197 + $0xa8] sm:$0xff] %vm235, %v1219
      %1252 = vst.msk [vmem:[%s197 + $0xb0] sm:$0xff] %vm235, %v1220
      %1253 = vst.msk [vmem:[%s197 + $0xb8] sm:$0xff] %vm235, %v1221
      %1254 = vst.msk [vmem:[%s197 + $0xc0] sm:$0xff] %vm235, %v1222
      %1255 = vst.msk [vmem:[%s197 + $0xc8] sm:$0xff] %vm235, %v1223
      %1256 = vst.msk [vmem:[%s197 + $0xd0] sm:$0xff] %vm235, %v1224
      %1257 = vst.msk [vmem:[%s197 + $0xd8] sm:$0xff] %vm235, %v1225
      %1258 = vst.msk [vmem:[%s197 + $0xe0] sm:$0xff] %vm235, %v1226
      %1259 = vst.msk [vmem:[%s197 + $0xe8] sm:$0xff] %vm235, %v1227
      %1260 = vst.msk [vmem:[%s197 + $0xf0] sm:$0xff] %vm235, %v1228
      %1261 = vst.msk [vmem:[%s197 + $0xf8] sm:$0xff] %vm235, %v1229
      %p1262 = scmp.lt.s32.totalorder %s15, 1
      %s1263 = scalar_select %p1262, %s15, 1
      %s1264 = smul.addr %s1263, 32
      %s1265 = smul.addr %s1264, 8
      %s1266 = scalar_lea.vmem %s4, %s1265
      // Predicated region
      $region37: #{dsc_module.5} parent=35 // pred_check
        %p1267 = pneg %p122
      $region38: #{dsc_module.5} parent=35 // pred_check_branch
        %1269 = sbr.rel (%p1267) target = $region40
      $region39: #{dsc_module.5} parent=35 // pred_region
        _
      $region40: #{dsc_module.5} parent=35 // pred_fallthru
        _
    $region36: #{dsc_module.5} parent=5 // pred_fallthru
      _
    %p1270 = scmp.le.s32.totalorder 2, %s10
    // Predicated region
    $region41: #{dsc_module.5} parent=5 // pred_check
      %p1271 = pneg %p1270
    $region42: #{dsc_module.5} parent=5 // pred_check_branch
      %1273 = sbr.rel (%p1271) target = $region44
    $region43: #{dsc_module.5} parent=5 // pred_region
      %s1274 = ssub.s32 %s10, 2
      // Predicated region
      $region45: #{dsc_module.5} parent=43 // pred_check
        %p1275 = pneg %p128
      $region46: #{dsc_module.5} parent=43 // pred_check_branch
        %1277 = sbr.rel (%p1275) target = $region48
      $region47: #{dsc_module.5} parent=43 // pred_region
        %p1278 = scmp.lt.s32.totalorder %s16, 1
        %s1279 = scalar_select %p1278, %s16, 1
        %s1280 = smul.addr %s1279, 32
        %s1281 = smul.addr %s1280, 8
        %s1282 = scalar_lea.vmem %s4, %s1281
      $region48: #{dsc_module.5} parent=43 // pred_fallthru
        _
    $region44: #{dsc_module.5} parent=5 // pred_fallthru
      _
  $region6: #{dsc_module.5} parent=0 // loop_footer
    %s14 = sadd.s32 1, %s10
  $region7: #{dsc_module.5} parent=0 // loop_footer_branch
    %9 = sbr.rel target = $region3
  $region8: #{dsc_module.5} parent=0 // loop_exit
    _

// kernel: dsc_module.6
$region0: #{dsc_module.6}
  #allocation0 [shape = 'u32[]', space=smem, size = 0x4, offset = 0x4, fixed_abs, tag = 'smem constant byte address 0x4 - core index']
  #allocation1 [shape = 'u32[144,128]{1,0:T(1,128)}', space=vmem, size = 0x12000, scoped, tag = 'internal scratch']
  %s0 = inlined_call_operand.vmem [shape: bf16[2,256,72], index: 0, kind: input, shape index: {}]
  %s1 = inlined_call_operand.vmem [shape: bf16[72,128], index: 1, kind: input, shape index: {}]
  %s2 = inlined_call_operand.vmem [shape: f32[1,128], index: 2, kind: input, shape index: {}]
  %s3 = inlined_call_operand.vmem [shape: f32[1,128], index: 3, kind: input, shape index: {}]
  %s4 = inlined_call_operand.vmem [shape: f32[1,128], index: 4, kind: input, shape index: {}]
  %s5 = inlined_call_operand.vmem [shape: f32[128,128], index: 5, kind: input, shape index: {}]
  %s6 = inlined_call_operand.vmem [shape: f32[2,256,128], index: 6, kind: output, shape index: {}]
  %s7 = sld [smem:[#allocation0]]
  $region57: #{dsc_module.6} parent=0
    _
  %s9 = ssub.s32 1, %s7
  %s10 = scalar_select 0, %s9, %s7
  loop: start=0, step=1, limit=4
  $region2: #{dsc_module.6} parent=0 // loop_pre_header
    _
  $region3: #{dsc_module.6} parent=0 // loop_header
    %s12 = sphi 0, %s16
    %p13 = scmp.ge.s32.totalorder %s12, 4
    %s22 = sphi 0, %s24
    %s25 = sphi 0, %s22
    %s26 = sphi 0, %s25
    %s42 = sphi 0, %s26
    %s46 = sphi 0, %s46
    %s48 = sphi 0, %s46
    %s49 = sphi 0, %s48
    %s63 = sphi 0, %s49
    %s67 = sphi 0, %s67
    %s69 = sphi 0, %s67
    %s70 = sphi 0, %s69
    %s84 = sphi 0, %s70
    %s88 = sphi 0, %s88
    %s90 = sphi 0, %s88
    %s91 = sphi 0, %s90
    %s105 = sphi 0, %s91
    %s109 = sphi 0, %s109
    %s111 = sphi 0, %s109
    %s112 = sphi 0, %s111
    %s126 = sphi 0, %s112
    %s130 = sphi 0, %s130
    %s132 = sphi 0, %s130
    %s133 = sphi 0, %s132
    %s147 = sphi 0, %s133
    %s153 = sphi 0, %s155
    %s156 = sphi 0, %s153
    %s157 = sphi 0, %s156
    %s173 = sphi 0, %s157
  $region4: #{dsc_module.6} parent=0 // loop_header_branch
    %15 = sbr.rel (%p13) target = $region8
  $region5: #{dsc_module.6} parent=0 // loop_body
    %s17 = ssub.s32 %s12, 1
    %s18 = ssub.s32 %s12, 2
    %s19 = sadd.s32 %s12, 1
    %s20 = ssub.s32 %s12, %s19
    %p21 = scmp.eq.s32.totalorder %s20, 0
    %s23 = sadd.s32 %s22, 1
    %s24 = scalar_select %p21, %s22, %s23
    %p27 = pneg %p21
    %p28 = scmp.eq.s32.totalorder %s12, 1
    %p29 = por %p27, %p28
    %p30 = scmp.ne.s32.totalorder %s22, %s25
    %p31 = scmp.eq.s32.totalorder %s12, 0
    %p32 = por %p30, %p31
    %p33 = scmp.ne.s32.totalorder %s22, %s25
    %p34 = scmp.eq.s32.totalorder %s17, 1
    %p35 = por %p33, %p34
    %p36 = scmp.ne.s32.totalorder %s25, %s26
    %p37 = scmp.eq.s32.totalorder %s17, 0
    %p38 = por %p36, %p37
    %p39 = scmp.ne.s32.totalorder %s25, %s26
    %p40 = scmp.eq.s32.totalorder %s18, 1
    %p41 = por %p39, %p40
    %p43 = scmp.ne.s32.totalorder %s26, %s42
    %p44 = scmp.eq.s32.totalorder %s18, 0
    %p45 = por %p43, %p44
    %s47 = sadd.s32 %s46, 1
    %p50 = scmp.eq.s32.totalorder %s12, 1
    %p51 = scmp.ne.s32.totalorder %s46, %s48
    %p52 = scmp.eq.s32.totalorder %s12, 0
    %p53 = por %p51, %p52
    %p54 = scmp.ne.s32.totalorder %s46, %s48
    %p55 = scmp.eq.s32.totalorder %s17, 1
    %p56 = por %p54, %p55
    %p57 = scmp.ne.s32.totalorder %s48, %s49
    %p58 = scmp.eq.s32.totalorder %s17, 0
    %p59 = por %p57, %p58
    %p60 = scmp.ne.s32.totalorder %s48, %s49
    %p61 = scmp.eq.s32.totalorder %s18, 1
    %p62 = por %p60, %p61
    %p64 = scmp.ne.s32.totalorder %s49, %s63
    %p65 = scmp.eq.s32.totalorder %s18, 0
    %p66 = por %p64, %p65
    %s68 = sadd.s32 %s67, 1
    %p71 = scmp.eq.s32.totalorder %s12, 1
    %p72 = scmp.ne.s32.totalorder %s67, %s69
    %p73 = scmp.eq.s32.totalorder %s12, 0
    %p74 = por %p72, %p73
    %p75 = scmp.ne.s32.totalorder %s67, %s69
    %p76 = scmp.eq.s32.totalorder %s17, 1
    %p77 = por %p75, %p76
    %p78 = scmp.ne.s32.totalorder %s69, %s70
    %p79 = scmp.eq.s32.totalorder %s17, 0
    %p80 = por %p78, %p79
    %p81 = scmp.ne.s32.totalorder %s69, %s70
    %p82 = scmp.eq.s32.totalorder %s18, 1
    %p83 = por %p81, %p82
    %p85 = scmp.ne.s32.totalorder %s70, %s84
    %p86 = scmp.eq.s32.totalorder %s18, 0
    %p87 = por %p85, %p86
    %s89 = sadd.s32 %s88, 1
    %p92 = scmp.eq.s32.totalorder %s12, 1
    %p93 = scmp.ne.s32.totalorder %s88, %s90
    %p94 = scmp.eq.s32.totalorder %s12, 0
    %p95 = por %p93, %p94
    %p96 = scmp.ne.s32.totalorder %s88, %s90
    %p97 = scmp.eq.s32.totalorder %s17, 1
    %p98 = por %p96, %p97
    %p99 = scmp.ne.s32.totalorder %s90, %s91
    %p100 = scmp.eq.s32.totalorder %s17, 0
    %p101 = por %p99, %p100
    %p102 = scmp.ne.s32.totalorder %s90, %s91
    %p103 = scmp.eq.s32.totalorder %s18, 1
    %p104 = por %p102, %p103
    %p106 = scmp.ne.s32.totalorder %s91, %s105
    %p107 = scmp.eq.s32.totalorder %s18, 0
    %p108 = por %p106, %p107
    %s110 = sadd.s32 %s109, 1
    %p113 = scmp.eq.s32.totalorder %s12, 1
    %p114 = scmp.ne.s32.totalorder %s109, %s111
    %p115 = scmp.eq.s32.totalorder %s12, 0
    %p116 = por %p114, %p115
    %p117 = scmp.ne.s32.totalorder %s109, %s111
    %p118 = scmp.eq.s32.totalorder %s17, 1
    %p119 = por %p117, %p118
    %p120 = scmp.ne.s32.totalorder %s111, %s112
    %p121 = scmp.eq.s32.totalorder %s17, 0
    %p122 = por %p120, %p121
    %p123 = scmp.ne.s32.totalorder %s111, %s112
    %p124 = scmp.eq.s32.totalorder %s18, 1
    %p125 = por %p123, %p124
    %p127 = scmp.ne.s32.totalorder %s112, %s126
    %p128 = scmp.eq.s32.totalorder %s18, 0
    %p129 = por %p127, %p128
    %s131 = sadd.s32 %s130, 1
    %p134 = scmp.eq.s32.totalorder %s12, 1
    %p135 = scmp.ne.s32.totalorder %s130, %s132
    %p136 = scmp.eq.s32.totalorder %s12, 0
    %p137 = por %p135, %p136
    %p138 = scmp.ne.s32.totalorder %s130, %s132
    %p139 = scmp.eq.s32.totalorder %s17, 1
    %p140 = por %p138, %p139
    %p141 = scmp.ne.s32.totalorder %s132, %s133
    %p142 = scmp.eq.s32.totalorder %s17, 0
    %p143 = por %p141, %p142
    %p144 = scmp.ne.s32.totalorder %s132, %s133
    %p145 = scmp.eq.s32.totalorder %s18, 1
    %p146 = por %p144, %p145
    %p148 = scmp.ne.s32.totalorder %s133, %s147
    %p149 = scmp.eq.s32.totalorder %s18, 0
    %p150 = por %p148, %p149
    %s151 = ssub.s32 %s12, %s19
    %p152 = scmp.eq.s32.totalorder %s151, 0
    %s154 = sadd.s32 %s153, 1
    %s155 = scalar_select %p152, %s153, %s154
    %p158 = pneg %p152
    %p159 = scmp.eq.s32.totalorder %s12, 1
    %p160 = por %p158, %p159
    %p161 = scmp.ne.s32.totalorder %s153, %s156
    %p162 = scmp.eq.s32.totalorder %s12, 0
    %p163 = por %p161, %p162
    %p164 = scmp.ne.s32.totalorder %s153, %s156
    %p165 = scmp.eq.s32.totalorder %s17, 1
    %p166 = por %p164, %p165
    %p167 = scmp.ne.s32.totalorder %s156, %s157
    %p168 = scmp.eq.s32.totalorder %s17, 0
    %p169 = por %p167, %p168
    %p170 = scmp.ne.s32.totalorder %s156, %s157
    %p171 = scmp.eq.s32.totalorder %s18, 1
    %p172 = por %p170, %p171
    %p174 = scmp.ne.s32.totalorder %s157, %s173
    %p175 = scmp.eq.s32.totalorder %s18, 0
    %p176 = por %p174, %p175
    %p177 = scmp.le.s32.totalorder 1, %s12
    %p178 = scmp.lt.s32.totalorder %s12, 3
    %p179 = pnand %p177, %p178
    %p180 = pneg %p179
    // Predicated region
    $region9: #{dsc_module.6} parent=5 // pred_check
      _
    $region10: #{dsc_module.6} parent=5 // pred_check_branch
      %182 = sbr.rel (%p179) target = $region12
    $region11: #{dsc_module.6} parent=5 // pred_region
      %s183 = ssub.s32 %s12, 1
      // Predicated region
      $region13: #{dsc_module.6} parent=11 // pred_check
        %p184 = pneg %p59
      $region14: #{dsc_module.6} parent=11 // pred_check_branch
        %186 = sbr.rel (%p184) target = $region16
      $region15: #{dsc_module.6} parent=11 // pred_region
        _
      $region16: #{dsc_module.6} parent=11 // pred_fallthru
        _
      // Predicated region
      $region17: #{dsc_module.6} parent=11 // pred_check
        %p187 = pneg %p80
      $region18: #{dsc_module.6} parent=11 // pred_check_branch
        %189 = sbr.rel (%p187) target = $region20
      $region19: #{dsc_module.6} parent=11 // pred_region
        _
      $region20: #{dsc_module.6} parent=11 // pred_fallthru
        _
      // Predicated region
      $region21: #{dsc_module.6} parent=11 // pred_check
        %p190 = pneg %p101
      $region22: #{dsc_module.6} parent=11 // pred_check_branch
        %192 = sbr.rel (%p190) target = $region24
      $region23: #{dsc_module.6} parent=11 // pred_region
        _
      $region24: #{dsc_module.6} parent=11 // pred_fallthru
        _
      // Predicated region
      $region25: #{dsc_module.6} parent=11 // pred_check
        %p193 = pneg %p122
      $region26: #{dsc_module.6} parent=11 // pred_check_branch
        %195 = sbr.rel (%p193) target = $region28
      $region27: #{dsc_module.6} parent=11 // pred_region
        _
      $region28: #{dsc_module.6} parent=11 // pred_fallthru
        _
      // Predicated region
      $region29: #{dsc_module.6} parent=11 // pred_check
        %p196 = pneg %p143
      $region30: #{dsc_module.6} parent=11 // pred_check_branch
        %198 = sbr.rel (%p196) target = $region32
      $region31: #{dsc_module.6} parent=11 // pred_region
        _
      $region32: #{dsc_module.6} parent=11 // pred_fallthru
        _
    $region12: #{dsc_module.6} parent=5 // pred_fallthru
      _
    %p199 = scmp.lt.s32.totalorder %s12, 2
    // Predicated region
    $region33: #{dsc_module.6} parent=5 // pred_check
      %p200 = pneg %p199
    $region34: #{dsc_module.6} parent=5 // pred_check_branch
      %202 = sbr.rel (%p200) target = $region36
    $region35: #{dsc_module.6} parent=5 // pred_region
      // Predicated region
      $region37: #{dsc_module.6} parent=35 // pred_check
        %p203 = pneg %p32
      $region38: #{dsc_module.6} parent=35 // pred_check_branch
        %205 = sbr.rel (%p203) target = $region40
      $region39: #{dsc_module.6} parent=35 // pred_region
        %p206 = scmp.lt.s32.totalorder %s12, 1
        %s207 = scalar_select %p206, %s12, 1
        %s208 = smul.addr %s207, 32
        %s209 = smul.addr %s208, 4
        %s210 = scalar_lea.vmem %s0, %s209
      $region40: #{dsc_module.6} parent=35 // pred_fallthru
        _
    $region36: #{dsc_module.6} parent=5 // pred_fallthru
      _
    %p211 = scmp.le.s32.totalorder 1, %s12
    %p212 = scmp.lt.s32.totalorder %s12, 3
    %p213 = pnand %p211, %p212
    %p214 = pneg %p213
    // Predicated region
    $region41: #{dsc_module.6} parent=5 // pred_check
      _
    $region42: #{dsc_module.6} parent=5 // pred_check_branch
      %216 = sbr.rel (%p213) target = $region44
    $region43: #{dsc_module.6} parent=5 // pred_region
      %s217 = ssub.s32 %s12, 1
      %p218 = scmp.lt.s32.totalorder %s17, 1
      %s219 = scalar_select %p218, %s17, 1
      %s220 = smul.addr %s219, 32
      %s221 = smul.addr %s220, 4
      %s222 = scalar_lea.vmem %s0, %s221
      %p223 = pneg %p38
      %p224 = pneg %p35
      %p225 = pneg %p59
      %p226 = pneg %p56
      %p227 = pneg %p80
      %p228 = pneg %p77
      %p229 = pneg %p101
      %p230 = pneg %p98
      %p231 = pneg %p122
      %p232 = pneg %p119
      %p233 = pneg %p143
      %p234 = pneg %p140
      %p235 = pneg %p169
      %p236 = pneg %p166
      %p237 = scmp.lt.s32.totalorder %s17, 1
      %s238 = scalar_select %p237, %s17, 1
      %s239 = smul.addr %s238, 32
      %s240 = smul.addr %s239, 8
      %s241 = scalar_lea.vmem %s6, %s240
      %p242 = scmp.lt.s32.totalorder %s17, 1
      %s243 = scalar_select %p242, %s17, 1
      %s244 = smul.addr %s243, 32
      %s245 = smul.addr %s244, 4
      %s246 = scalar_lea.vmem %s0, %s245
      %p247 = scmp.lt.s32.totalorder %s17, 1
      %s248 = scalar_select %p247, %s17, 1
      %s249 = smul.addr %s248, 32
      %s250 = smul.addr %s249, 8
      %s251 = scalar_lea.vmem %s6, %s250
      %v253 = vld [vmem:[%s246] sm:$0xf]
      %v254 = vld [vmem:[%s246 + $0x4] sm:$0xf]
      %v255 = vld [vmem:[%s246 + $0x8] sm:$0xf]
      %v256 = vld [vmem:[%s246 + $0xc] sm:$0xf]
      %v257 = vld [vmem:[%s246 + $0x10] sm:$0xf]
      %v258 = vld [vmem:[%s246 + $0x14] sm:$0xf]
      %v259 = vld [vmem:[%s246 + $0x18] sm:$0xf]
      %v260 = vld [vmem:[%s246 + $0x1c] sm:$0xf]
      %v261 = vld [vmem:[%s246 + $0x20] sm:$0xf]
      %v262 = vld [vmem:[%s246 + $0x24] sm:$0xf]
      %v263 = vld [vmem:[%s246 + $0x28] sm:$0xf]
      %v264 = vld [vmem:[%s246 + $0x2c] sm:$0xf]
      %v265 = vld [vmem:[%s246 + $0x30] sm:$0xf]
      %v266 = vld [vmem:[%s246 + $0x34] sm:$0xf]
      %v267 = vld [vmem:[%s246 + $0x38] sm:$0xf]
      %v268 = vld [vmem:[%s246 + $0x3c] sm:$0xf]
      %v269 = vld [vmem:[%s246 + $0x40] sm:$0xf]
      %v270 = vld [vmem:[%s246 + $0x44] sm:$0xf]
      %v271 = vld [vmem:[%s246 + $0x48] sm:$0xf]
      %v272 = vld [vmem:[%s246 + $0x4c] sm:$0xf]
      %v273 = vld [vmem:[%s246 + $0x50] sm:$0xf]
      %v274 = vld [vmem:[%s246 + $0x54] sm:$0xf]
      %v275 = vld [vmem:[%s246 + $0x58] sm:$0xf]
      %v276 = vld [vmem:[%s246 + $0x5c] sm:$0xf]
      %v277 = vld [vmem:[%s246 + $0x60] sm:$0xf]
      %v278 = vld [vmem:[%s246 + $0x64] sm:$0xf]
      %v279 = vld [vmem:[%s246 + $0x68] sm:$0xf]
      %v280 = vld [vmem:[%s246 + $0x6c] sm:$0xf]
      %v281 = vld [vmem:[%s246 + $0x70] sm:$0xf]
      %v282 = vld [vmem:[%s246 + $0x74] sm:$0xf]
      %v283 = vld [vmem:[%s246 + $0x78] sm:$0xf]
      %v284 = vld [vmem:[%s246 + $0x7c] sm:$0xf]
      %v285 = vld [vmem:[%s1] sm:$0xf]
      %v286 = vld [vmem:[%s1 + $0x4] sm:$0xf]
      %v287 = vld [vmem:[%s1 + $0x8] sm:$0xf]
      %v288 = vld [vmem:[%s1 + $0xc] sm:$0xf]
      %v289 = vld [vmem:[%s1 + $0x10] sm:$0xf]
      %v290 = vld [vmem:[%s1 + $0x14] sm:$0xf]
      %v291 = vld [vmem:[%s1 + $0x18] sm:$0xf]
      %v292 = vld [vmem:[%s1 + $0x1c] sm:$0xf]
      %v293 = vld [vmem:[%s1 + $0x20] sm:$0xf]
      %v294 = vld [vmem:[%s2] sm:$0x1]
      %v296 = vlaneseq
      %v297 = vshrl.u32 %v296, 7
      %v298 = vsub.s32 0, %v297
      %v299 = vrot.slane %v294, %v298
      %v333 = vunpack.c.l.b16 %v253
      %v334 = vunpack.c.l.b16 %v254
      %v335 = vunpack.c.l.b16 %v255
      %v336 = vunpack.c.l.b16 %v256
      %v337 = vunpack.c.l.b16 %v257
      %v338 = vunpack.c.l.b16 %v258
      %v339 = vunpack.c.l.b16 %v259
      %v340 = vunpack.c.l.b16 %v260
      %v341 = vunpack.c.l.b16 %v261
      %v342 = vunpack.c.l.b16 %v262
      %v343 = vunpack.c.l.b16 %v263
      %v344 = vunpack.c.l.b16 %v264
      %v345 = vunpack.c.l.b16 %v265
      %v346 = vunpack.c.l.b16 %v266
      %v347 = vunpack.c.l.b16 %v267
      %v348 = vunpack.c.l.b16 %v268
      %v349 = vunpack.c.l.b16 %v269
      %v350 = vunpack.c.l.b16 %v270
      %v351 = vunpack.c.l.b16 %v271
      %v352 = vunpack.c.l.b16 %v272
      %v353 = vunpack.c.l.b16 %v273
      %v354 = vunpack.c.l.b16 %v274
      %v355 = vunpack.c.l.b16 %v275
      %v356 = vunpack.c.l.b16 %v276
      %v357 = vunpack.c.l.b16 %v277
      %v358 = vunpack.c.l.b16 %v278
      %v359 = vunpack.c.l.b16 %v279
      %v360 = vunpack.c.l.b16 %v280
      %v361 = vunpack.c.l.b16 %v281
      %v362 = vunpack.c.l.b16 %v282
      %v363 = vunpack.c.l.b16 %v283
      %v364 = vunpack.c.l.b16 %v284
      %v365 = vpack.c.b16 %v334, %v333
      %v366 = vpack.c.b16 %v336, %v335
      %v367 = vpack.c.b16 %v338, %v337
      %v368 = vpack.c.b16 %v340, %v339
      %v369 = vpack.c.b16 %v342, %v341
      %v370 = vpack.c.b16 %v344, %v343
      %v371 = vpack.c.b16 %v346, %v345
      %v372 = vpack.c.b16 %v348, %v347
      %v373 = vpack.c.b16 %v350, %v349
      %v374 = vpack.c.b16 %v352, %v351
      %v375 = vpack.c.b16 %v354, %v353
      %v376 = vpack.c.b16 %v356, %v355
      %v377 = vpack.c.b16 %v358, %v357
      %v378 = vpack.c.b16 %v360, %v359
      %v379 = vpack.c.b16 %v362, %v361
      %v380 = vpack.c.b16 %v364, %v363
      %v390 = vunpack.c.l.b16 %v285
      %v391 = vunpack.c.l.b16 %v286
      %v392 = vunpack.c.l.b16 %v287
      %v393 = vunpack.c.l.b16 %v288
      %v394 = vunpack.c.l.b16 %v289
      %v395 = vunpack.c.l.b16 %v290
      %v396 = vunpack.c.l.b16 %v291
      %v397 = vunpack.c.l.b16 %v292
      %v398 = vunpack.c.l.b16 %v293
      %v399 = vpack.c.b16 %v391, %v390
      %v400 = vpack.c.b16 %v393, %v392
      %v401 = vpack.c.b16 %v395, %v394
      %v402 = vpack.c.b16 %v397, %v396
      %v403 = vpack.c.b16 %v398, %v398
      %vm408 = vcmask 588800
      %v410 = vsel %vm408, %v365, 0
      %v413 = vsel %vm408, %v366, 0
      %v416 = vsel %vm408, %v367, 0
      %v419 = vsel %vm408, %v368, 0
      %v422 = vsel %vm408, %v369, 0
      %v425 = vsel %vm408, %v370, 0
      %v428 = vsel %vm408, %v371, 0
      %v431 = vsel %vm408, %v372, 0
      %v434 = vsel %vm408, %v373, 0
      %v437 = vsel %vm408, %v374, 0
      %v440 = vsel %vm408, %v375, 0
      %v443 = vsel %vm408, %v376, 0
      %v446 = vsel %vm408, %v377, 0
      %v449 = vsel %vm408, %v378, 0
      %v452 = vsel %vm408, %v379, 0
      %v455 = vsel %vm408, %v380, 0
      %vm457 = vcmask 1043456
      %v459 = vsel %vm457, %v403, 0
      %461 = vmatprep.subr.bf16.mxu0 0
      %462 = vmatpush1.bf16.msra.mxu0 0
      %463 = vmatprep.subr.bf16.mxu0 0
      %464 = vmatpush1.bf16.msra.mxu0 0
      %465 = vmatprep.subr.bf16.mxu0 0
      %466 = vmatpush1.bf16.msra.mxu0 0
      %467 = vmatprep.subr.bf16.mxu0 0
      %468 = vmatpush1.bf16.msra.mxu0 %v459
      %469 = vmatprep.subr.bf16.mxu0 0
      %470 = vmatpush1.bf16.msra.mxu0 %v402
      %471 = vmatprep.subr.bf16.mxu0 0
      %472 = vmatpush1.bf16.msra.mxu0 %v401
      %473 = vmatprep.subr.bf16.mxu0 0
      %474 = vmatpush1.bf16.msra.mxu0 %v400
      %475 = vmatprep.subr.bf16.mxu0 0
      %476 = vmatpush1.bf16.msra.mxu0 %v399
      %477 = vmatprep.subr.bf16.mxu0 0
      %478 = vmatpush2.bf16.msra.mxu0 0
      %479 = vmatprep.subr.bf16.mxu0 0
      %480 = vmatpush2.bf16.msra.mxu0 0
      %481 = vmatprep.subr.bf16.mxu0 0
      %482 = vmatpush2.bf16.msra.mxu0 0
      %483 = vmatprep.subr.bf16.mxu0 0
      %484 = vmatpush2.bf16.msra.mxu0 0
      %485 = vmatprep.subr.bf16.mxu0 0
      %486 = vmatpush2.bf16.msra.mxu0 0
      %487 = vmatprep.subr.bf16.mxu0 0
      %488 = vmatpush2.bf16.msra.mxu0 0
      %489 = vmatprep.subr.bf16.mxu0 0
      %490 = vmatpush2.bf16.msra.mxu0 0
      %491 = vmatprep.subr.bf16.mxu0 0
      %492 = vmatpush2.bf16.msra.mxu0 0
      %493 = vmatprep.mubr.bf16.mxu0 0
      %494 = vmatmul.mubr.bf16.gmra.mxu0 %v410
      %v495 = vpop.f32.mrf.mxu0
      %v496 = vadd.f32 %v299, %v495
      %v497 = vpop.f32.mrf.mxu0
      %v498 = vpop.f32.mrf.mxu0
      %v499 = vadd.f32 %v299, %v498
      %v500 = vpop.f32.mrf.mxu0
      %501 = vmatprep.mubr.bf16.mxu0 0
      %502 = vmatmul.mubr.bf16.gmra.mxu0 %v413
      %v503 = vpop.f32.mrf.mxu0
      %v504 = vadd.f32 %v299, %v503
      %v505 = vpop.f32.mrf.mxu0
      %v506 = vpop.f32.mrf.mxu0
      %v507 = vadd.f32 %v299, %v506
      %v508 = vpop.f32.mrf.mxu0
      %509 = vmatprep.mubr.bf16.mxu0 0
      %510 = vmatmul.mubr.bf16.gmra.mxu0 %v416
      %v511 = vpop.f32.mrf.mxu0
      %v512 = vadd.f32 %v299, %v511
      %v513 = vpop.f32.mrf.mxu0
      %v514 = vpop.f32.mrf.mxu0
      %v515 = vadd.f32 %v299, %v514
      %v516 = vpop.f32.mrf.mxu0
      %517 = vmatprep.mubr.bf16.mxu0 0
      %518 = vmatmul.mubr.bf16.gmra.mxu0 %v419
      %v519 = vpop.f32.mrf.mxu0
      %v520 = vadd.f32 %v299, %v519
      %v521 = vpop.f32.mrf.mxu0
      %v522 = vpop.f32.mrf.mxu0
      %v523 = vadd.f32 %v299, %v522
      %v524 = vpop.f32.mrf.mxu0
      %525 = vmatprep.mubr.bf16.mxu0 0
      %526 = vmatmul.mubr.bf16.gmra.mxu0 %v422
      %v527 = vpop.f32.mrf.mxu0
      %v528 = vadd.f32 %v299, %v527
      %v529 = vpop.f32.mrf.mxu0
      %v530 = vpop.f32.mrf.mxu0
      %v531 = vadd.f32 %v299, %v530
      %v532 = vpop.f32.mrf.mxu0
      %533 = vmatprep.mubr.bf16.mxu0 0
      %534 = vmatmul.mubr.bf16.gmra.mxu0 %v425
      %v535 = vpop.f32.mrf.mxu0
      %v536 = vadd.f32 %v299, %v535
      %v537 = vpop.f32.mrf.mxu0
      %v538 = vpop.f32.mrf.mxu0
      %v539 = vadd.f32 %v299, %v538
      %v540 = vpop.f32.mrf.mxu0
      %541 = vmatprep.mubr.bf16.mxu0 0
      %542 = vmatmul.mubr.bf16.gmra.mxu0 %v428
      %v543 = vpop.f32.mrf.mxu0
      %v544 = vadd.f32 %v299, %v543
      %v545 = vpop.f32.mrf.mxu0
      %v546 = vpop.f32.mrf.mxu0
      %v547 = vadd.f32 %v299, %v546
      %v548 = vpop.f32.mrf.mxu0
      %549 = vmatprep.mubr.bf16.mxu0 0
      %550 = vmatmul.mubr.bf16.gmra.mxu0 %v431
      %v551 = vpop.f32.mrf.mxu0
      %v552 = vadd.f32 %v299, %v551
      %v553 = vpop.f32.mrf.mxu0
      %v554 = vpop.f32.mrf.mxu0
      %v555 = vadd.f32 %v299, %v554
      %v556 = vpop.f32.mrf.mxu0
      %557 = vmatprep.mubr.bf16.mxu0 0
      %558 = vmatmul.mubr.bf16.gmra.mxu0 %v434
      %v559 = vpop.f32.mrf.mxu0
      %v560 = vadd.f32 %v299, %v559
      %v561 = vpop.f32.mrf.mxu0
      %v562 = vpop.f32.mrf.mxu0
      %v563 = vadd.f32 %v299, %v562
      %v564 = vpop.f32.mrf.mxu0
      %565 = vmatprep.mubr.bf16.mxu0 0
      %566 = vmatmul.mubr.bf16.gmra.mxu0 %v437
      %v567 = vpop.f32.mrf.mxu0
      %v568 = vadd.f32 %v299, %v567
      %v569 = vpop.f32.mrf.mxu0
      %v570 = vpop.f32.mrf.mxu0
      %v571 = vadd.f32 %v299, %v570
      %v572 = vpop.f32.mrf.mxu0
      %573 = vmatprep.mubr.bf16.mxu0 0
      %574 = vmatmul.mubr.bf16.gmra.mxu0 %v440
      %v575 = vpop.f32.mrf.mxu0
      %v576 = vadd.f32 %v299, %v575
      %v577 = vpop.f32.mrf.mxu0
      %v578 = vpop.f32.mrf.mxu0
      %v579 = vadd.f32 %v299, %v578
      %v580 = vpop.f32.mrf.mxu0
      %581 = vmatprep.mubr.bf16.mxu0 0
      %582 = vmatmul.mubr.bf16.gmra.mxu0 %v443
      %v583 = vpop.f32.mrf.mxu0
      %v584 = vadd.f32 %v299, %v583
      %v585 = vpop.f32.mrf.mxu0
      %v586 = vpop.f32.mrf.mxu0
      %v587 = vadd.f32 %v299, %v586
      %v588 = vpop.f32.mrf.mxu0
      %589 = vmatprep.mubr.bf16.mxu0 0
      %590 = vmatmul.mubr.bf16.gmra.mxu0 %v446
      %v591 = vpop.f32.mrf.mxu0
      %v592 = vadd.f32 %v299, %v591
      %v593 = vpop.f32.mrf.mxu0
      %v594 = vpop.f32.mrf.mxu0
      %v595 = vadd.f32 %v299, %v594
      %v596 = vpop.f32.mrf.mxu0
      %597 = vmatprep.mubr.bf16.mxu0 0
      %598 = vmatmul.mubr.bf16.gmra.mxu0 %v449
      %v599 = vpop.f32.mrf.mxu0
      %v600 = vadd.f32 %v299, %v599
      %v601 = vpop.f32.mrf.mxu0
      %v602 = vpop.f32.mrf.mxu0
      %v603 = vadd.f32 %v299, %v602
      %v604 = vpop.f32.mrf.mxu0
      %605 = vmatprep.mubr.bf16.mxu0 0
      %606 = vmatmul.mubr.bf16.gmra.mxu0 %v452
      %v607 = vpop.f32.mrf.mxu0
      %v608 = vadd.f32 %v299, %v607
      %v609 = vpop.f32.mrf.mxu0
      %v610 = vpop.f32.mrf.mxu0
      %v611 = vadd.f32 %v299, %v610
      %v612 = vpop.f32.mrf.mxu0
      %613 = vmatprep.mubr.bf16.mxu0 0
      %614 = vmatmul.mubr.bf16.gmra.mxu0 %v455
      %v615 = vpop.f32.mrf.mxu0
      %v616 = vadd.f32 %v299, %v615
      %v617 = vpop.f32.mrf.mxu0
      %v618 = vpop.f32.mrf.mxu0
      %v619 = vadd.f32 %v299, %v618
      %v620 = vpop.f32.mrf.mxu0
      %621 = vdwg.mxu0
      %v622 = vld [vmem:[%s5] sm:$0xff]
      %v623 = vld [vmem:[%s5 + $0x8] sm:$0xff]
      %v624 = vld [vmem:[%s5 + $0x10] sm:$0xff]
      %v625 = vld [vmem:[%s5 + $0x18] sm:$0xff]
      %v626 = vld [vmem:[%s5 + $0x20] sm:$0xff]
      %v627 = vld [vmem:[%s5 + $0x28] sm:$0xff]
      %v628 = vld [vmem:[%s5 + $0x30] sm:$0xff]
      %v629 = vld [vmem:[%s5 + $0x38] sm:$0xff]
      %v630 = vld [vmem:[%s5 + $0x40] sm:$0xff]
      %v631 = vld [vmem:[%s5 + $0x48] sm:$0xff]
      %v632 = vld [vmem:[%s5 + $0x50] sm:$0xff]
      %v633 = vld [vmem:[%s5 + $0x58] sm:$0xff]
      %v634 = vld [vmem:[%s5 + $0x60] sm:$0xff]
      %v635 = vld [vmem:[%s5 + $0x68] sm:$0xff]
      %v636 = vld [vmem:[%s5 + $0x70] sm:$0xff]
      %v637 = vld [vmem:[%s5 + $0x78] sm:$0xff]
      %638 = vmatprep.subr.mxu0 0.0
      %639 = vmatpush1.msra.mxu0 %v637
      %640 = vmatprep.subr.mxu0 0.0
      %641 = vmatpush1.msra.mxu0 %v636
      %642 = vmatprep.subr.mxu0 0.0
      %643 = vmatpush1.msra.mxu0 %v635
      %644 = vmatprep.subr.mxu0 0.0
      %645 = vmatpush1.msra.mxu0 %v634
      %646 = vmatprep.subr.mxu0 0.0
      %647 = vmatpush1.msra.mxu0 %v633
      %648 = vmatprep.subr.mxu0 0.0
      %649 = vmatpush1.msra.mxu0 %v632
      %650 = vmatprep.subr.mxu0 0.0
      %651 = vmatpush1.msra.mxu0 %v631
      %652 = vmatprep.subr.mxu0 0.0
      %653 = vmatpush1.msra.mxu0 %v630
      %654 = vmatprep.subr.mxu0 0.0
      %655 = vmatpush1.msra.mxu0 %v629
      %656 = vmatprep.subr.mxu0 0.0
      %657 = vmatpush1.msra.mxu0 %v628
      %658 = vmatprep.subr.mxu0 0.0
      %659 = vmatpush1.msra.mxu0 %v627
      %660 = vmatprep.subr.mxu0 0.0
      %661 = vmatpush1.msra.mxu0 %v626
      %662 = vmatprep.subr.mxu0 0.0
      %663 = vmatpush1.msra.mxu0 %v625
      %664 = vmatprep.subr.mxu0 0.0
      %665 = vmatpush1.msra.mxu0 %v624
      %666 = vmatprep.subr.mxu0 0.0
      %667 = vmatpush1.msra.mxu0 %v623
      %668 = vmatprep.subr.mxu0 0.0
      %669 = vmatpush1.msra.mxu0 %v622
      %670 = vmatprep.subr.mxu0 0.0
      %671 = vmatpush2.msra.mxu0 0.0
      %672 = vmatprep.subr.mxu0 0.0
      %673 = vmatpush2.msra.mxu0 0.0
      %674 = vmatprep.subr.mxu0 0.0
      %675 = vmatpush2.msra.mxu0 0.0
      %676 = vmatprep.subr.mxu0 0.0
      %677 = vmatpush2.msra.mxu0 0.0
      %678 = vmatprep.subr.mxu0 0.0
      %679 = vmatpush2.msra.mxu0 0.0
      %680 = vmatprep.subr.mxu0 0.0
      %681 = vmatpush2.msra.mxu0 0.0
      %682 = vmatprep.subr.mxu0 0.0
      %683 = vmatpush2.msra.mxu0 0.0
      %684 = vmatprep.subr.mxu0 0.0
      %685 = vmatpush2.msra.mxu0 0.0
      %686 = vmatprep.subr.mxu0 0.0
      %687 = vmatpush2.msra.mxu0 0.0
      %688 = vmatprep.subr.mxu0 0.0
      %689 = vmatpush2.msra.mxu0 0.0
      %690 = vmatprep.subr.mxu0 0.0
      %691 = vmatpush2.msra.mxu0 0.0
      %692 = vmatprep.subr.mxu0 0.0
      %693 = vmatpush2.msra.mxu0 0.0
      %694 = vmatprep.subr.mxu0 0.0
      %695 = vmatpush2.msra.mxu0 0.0
      %696 = vmatprep.subr.mxu0 0.0
      %697 = vmatpush2.msra.mxu0 0.0
      %698 = vmatprep.subr.mxu0 0.0
      %699 = vmatpush2.msra.mxu0 0.0
      %700 = vmatprep.subr.mxu0 0.0
      %701 = vmatpush2.msra.mxu0 0.0
      %702 = vmatprep.mubr.f32.mxu0 0.0
      %703 = vmatmul.mubr.f32.gmra.mxu0 %v496
      %v704 = vpop.f32.mrf.mxu0
      %v705 = vadd.f32 0.0, %v704
      %v706 = vpop.f32.mrf.mxu0
      %707 = vmatprep.mubr.f32.mxu0 0.0
      %708 = vmatmul.mubr.f32.gmra.mxu0 %v499
      %v709 = vpop.f32.mrf.mxu0
      %v710 = vadd.f32 0.0, %v709
      %v711 = vpop.f32.mrf.mxu0
      %712 = vmatprep.mubr.f32.mxu0 0.0
      %713 = vmatmul.mubr.f32.gmra.mxu0 %v504
      %v714 = vpop.f32.mrf.mxu0
      %v715 = vadd.f32 0.0, %v714
      %v716 = vpop.f32.mrf.mxu0
      %717 = vmatprep.mubr.f32.mxu0 0.0
      %718 = vmatmul.mubr.f32.gmra.mxu0 %v507
      %v719 = vpop.f32.mrf.mxu0
      %v720 = vadd.f32 0.0, %v719
      %v721 = vpop.f32.mrf.mxu0
      %722 = vmatprep.mubr.f32.mxu0 0.0
      %723 = vmatmul.mubr.f32.gmra.mxu0 %v512
      %v724 = vpop.f32.mrf.mxu0
      %v725 = vadd.f32 0.0, %v724
      %v726 = vpop.f32.mrf.mxu0
      %727 = vmatprep.mubr.f32.mxu0 0.0
      %728 = vmatmul.mubr.f32.gmra.mxu0 %v515
      %v729 = vpop.f32.mrf.mxu0
      %v730 = vadd.f32 0.0, %v729
      %v731 = vpop.f32.mrf.mxu0
      %732 = vmatprep.mubr.f32.mxu0 0.0
      %733 = vmatmul.mubr.f32.gmra.mxu0 %v520
      %v734 = vpop.f32.mrf.mxu0
      %v735 = vadd.f32 0.0, %v734
      %v736 = vpop.f32.mrf.mxu0
      %737 = vmatprep.mubr.f32.mxu0 0.0
      %738 = vmatmul.mubr.f32.gmra.mxu0 %v523
      %v739 = vpop.f32.mrf.mxu0
      %v740 = vadd.f32 0.0, %v739
      %v741 = vpop.f32.mrf.mxu0
      %742 = vmatprep.mubr.f32.mxu0 0.0
      %743 = vmatmul.mubr.f32.gmra.mxu0 %v528
      %v744 = vpop.f32.mrf.mxu0
      %v745 = vadd.f32 0.0, %v744
      %v746 = vpop.f32.mrf.mxu0
      %747 = vmatprep.mubr.f32.mxu0 0.0
      %748 = vmatmul.mubr.f32.gmra.mxu0 %v531
      %v749 = vpop.f32.mrf.mxu0
      %v750 = vadd.f32 0.0, %v749
      %v751 = vpop.f32.mrf.mxu0
      %752 = vmatprep.mubr.f32.mxu0 0.0
      %753 = vmatmul.mubr.f32.gmra.mxu0 %v536
      %v754 = vpop.f32.mrf.mxu0
      %v755 = vadd.f32 0.0, %v754
      %v756 = vpop.f32.mrf.mxu0
      %757 = vmatprep.mubr.f32.mxu0 0.0
      %758 = vmatmul.mubr.f32.gmra.mxu0 %v539
      %v759 = vpop.f32.mrf.mxu0
      %v760 = vadd.f32 0.0, %v759
      %v761 = vpop.f32.mrf.mxu0
      %762 = vmatprep.mubr.f32.mxu0 0.0
      %763 = vmatmul.mubr.f32.gmra.mxu0 %v544
      %v764 = vpop.f32.mrf.mxu0
      %v765 = vadd.f32 0.0, %v764
      %v766 = vpop.f32.mrf.mxu0
      %767 = vmatprep.mubr.f32.mxu0 0.0
      %768 = vmatmul.mubr.f32.gmra.mxu0 %v547
      %v769 = vpop.f32.mrf.mxu0
      %v770 = vadd.f32 0.0, %v769
      %v771 = vpop.f32.mrf.mxu0
      %772 = vmatprep.mubr.f32.mxu0 0.0
      %773 = vmatmul.mubr.f32.gmra.mxu0 %v552
      %v774 = vpop.f32.mrf.mxu0
      %v775 = vadd.f32 0.0, %v774
      %v776 = vpop.f32.mrf.mxu0
      %777 = vmatprep.mubr.f32.mxu0 0.0
      %778 = vmatmul.mubr.f32.gmra.mxu0 %v555
      %v779 = vpop.f32.mrf.mxu0
      %v780 = vadd.f32 0.0, %v779
      %v781 = vpop.f32.mrf.mxu0
      %782 = vmatprep.mubr.f32.mxu0 0.0
      %783 = vmatmul.mubr.f32.gmra.mxu0 %v560
      %v784 = vpop.f32.mrf.mxu0
      %v785 = vadd.f32 0.0, %v784
      %v786 = vpop.f32.mrf.mxu0
      %787 = vmatprep.mubr.f32.mxu0 0.0
      %788 = vmatmul.mubr.f32.gmra.mxu0 %v563
      %v789 = vpop.f32.mrf.mxu0
      %v790 = vadd.f32 0.0, %v789
      %v791 = vpop.f32.mrf.mxu0
      %792 = vmatprep.mubr.f32.mxu0 0.0
      %793 = vmatmul.mubr.f32.gmra.mxu0 %v568
      %v794 = vpop.f32.mrf.mxu0
      %v795 = vadd.f32 0.0, %v794
      %v796 = vpop.f32.mrf.mxu0
      %797 = vmatprep.mubr.f32.mxu0 0.0
      %798 = vmatmul.mubr.f32.gmra.mxu0 %v571
      %v799 = vpop.f32.mrf.mxu0
      %v800 = vadd.f32 0.0, %v799
      %v801 = vpop.f32.mrf.mxu0
      %802 = vmatprep.mubr.f32.mxu0 0.0
      %803 = vmatmul.mubr.f32.gmra.mxu0 %v576
      %v804 = vpop.f32.mrf.mxu0
      %v805 = vadd.f32 0.0, %v804
      %v806 = vpop.f32.mrf.mxu0
      %807 = vmatprep.mubr.f32.mxu0 0.0
      %808 = vmatmul.mubr.f32.gmra.mxu0 %v579
      %v809 = vpop.f32.mrf.mxu0
      %v810 = vadd.f32 0.0, %v809
      %v811 = vpop.f32.mrf.mxu0
      %812 = vmatprep.mubr.f32.mxu0 0.0
      %813 = vmatmul.mubr.f32.gmra.mxu0 %v584
      %v814 = vpop.f32.mrf.mxu0
      %v815 = vadd.f32 0.0, %v814
      %v816 = vpop.f32.mrf.mxu0
      %817 = vmatprep.mubr.f32.mxu0 0.0
      %818 = vmatmul.mubr.f32.gmra.mxu0 %v587
      %v819 = vpop.f32.mrf.mxu0
      %v820 = vadd.f32 0.0, %v819
      %v821 = vpop.f32.mrf.mxu0
      %822 = vmatprep.mubr.f32.mxu0 0.0
      %823 = vmatmul.mubr.f32.gmra.mxu0 %v592
      %v824 = vpop.f32.mrf.mxu0
      %v825 = vadd.f32 0.0, %v824
      %v826 = vpop.f32.mrf.mxu0
      %827 = vmatprep.mubr.f32.mxu0 0.0
      %828 = vmatmul.mubr.f32.gmra.mxu0 %v595
      %v829 = vpop.f32.mrf.mxu0
      %v830 = vadd.f32 0.0, %v829
      %v831 = vpop.f32.mrf.mxu0
      %832 = vmatprep.mubr.f32.mxu0 0.0
      %833 = vmatmul.mubr.f32.gmra.mxu0 %v600
      %v834 = vpop.f32.mrf.mxu0
      %v835 = vadd.f32 0.0, %v834
      %v836 = vpop.f32.mrf.mxu0
      %837 = vmatprep.mubr.f32.mxu0 0.0
      %838 = vmatmul.mubr.f32.gmra.mxu0 %v603
      %v839 = vpop.f32.mrf.mxu0
      %v840 = vadd.f32 0.0, %v839
      %v841 = vpop.f32.mrf.mxu0
      %842 = vmatprep.mubr.f32.mxu0 0.0
      %843 = vmatmul.mubr.f32.gmra.mxu0 %v608
      %v844 = vpop.f32.mrf.mxu0
      %v845 = vadd.f32 0.0, %v844
      %v846 = vpop.f32.mrf.mxu0
      %847 = vmatprep.mubr.f32.mxu0 0.0
      %848 = vmatmul.mubr.f32.gmra.mxu0 %v611
      %v849 = vpop.f32.mrf.mxu0
      %v850 = vadd.f32 0.0, %v849
      %v851 = vpop.f32.mrf.mxu0
      %852 = vmatprep.mubr.f32.mxu0 0.0
      %853 = vmatmul.mubr.f32.gmra.mxu0 %v616
      %v854 = vpop.f32.mrf.mxu0
      %v855 = vadd.f32 0.0, %v854
      %v856 = vpop.f32.mrf.mxu0
      %857 = vmatprep.mubr.f32.mxu0 0.0
      %858 = vmatmul.mubr.f32.gmra.mxu0 %v619
      %v859 = vpop.f32.mrf.mxu0
      %v860 = vadd.f32 0.0, %v859
      %v861 = vpop.f32.mrf.mxu0
      %862 = vdwg.mxu0
      %v863 = vadd.f32 %v705, %v710
      %v864 = vadd.f32 %v863, %v715
      %v865 = vadd.f32 %v864, %v720
      %v866 = vadd.f32 %v865, %v725
      %v867 = vadd.f32 %v866, %v730
      %v868 = vadd.f32 %v867, %v735
      %v869 = vadd.f32 %v868, %v740
      %v870 = vadd.f32 %v869, %v745
      %v871 = vadd.f32 %v870, %v750
      %v872 = vadd.f32 %v871, %v755
      %v873 = vadd.f32 %v872, %v760
      %v874 = vadd.f32 %v873, %v765
      %v875 = vadd.f32 %v874, %v770
      %v876 = vadd.f32 %v875, %v775
      %v877 = vadd.f32 %v876, %v780
      %v878 = vadd.f32 %v877, %v785
      %v879 = vadd.f32 %v878, %v790
      %v880 = vadd.f32 %v879, %v795
      %v881 = vadd.f32 %v880, %v800
      %v882 = vadd.f32 %v881, %v805
      %v883 = vadd.f32 %v882, %v810
      %v884 = vadd.f32 %v883, %v815
      %v885 = vadd.f32 %v884, %v820
      %v886 = vadd.f32 %v885, %v825
      %v887 = vadd.f32 %v886, %v830
      %v888 = vadd.f32 %v887, %v835
      %v889 = vadd.f32 %v888, %v840
      %v890 = vadd.f32 %v889, %v845
      %v891 = vadd.f32 %v890, %v850
      %v892 = vadd.f32 %v891, %v855
      %v893 = vadd.f32 %v892, %v860
      %v894 = vrot.slane %v893, 4
      %v895 = vadd.f32 %v893, %v894
      %v896 = vrot.slane %v895, 2
      %v897 = vadd.f32 %v895, %v896
      %v898 = vrot.slane %v897, 1
      %v899 = vadd.f32 %v897, %v898
      %v900 = vmul.f32 %v899, 0.0009765625
      %v901 = vsub.f32 %v496, %v900
      %v902 = vsub.f32 %v499, %v900
      %v903 = vsub.f32 %v504, %v900
      %v904 = vsub.f32 %v507, %v900
      %v905 = vsub.f32 %v512, %v900
      %v906 = vsub.f32 %v515, %v900
      %v907 = vsub.f32 %v520, %v900
      %v908 = vsub.f32 %v523, %v900
      %v909 = vsub.f32 %v528, %v900
      %v910 = vsub.f32 %v531, %v900
      %v911 = vsub.f32 %v536, %v900
      %v912 = vsub.f32 %v539, %v900
      %v913 = vsub.f32 %v544, %v900
      %v914 = vsub.f32 %v547, %v900
      %v915 = vsub.f32 %v552, %v900
      %v916 = vsub.f32 %v555, %v900
      %v917 = vsub.f32 %v560, %v900
      %v918 = vsub.f32 %v563, %v900
      %v919 = vsub.f32 %v568, %v900
      %v920 = vsub.f32 %v571, %v900
      %v921 = vsub.f32 %v576, %v900
      %v922 = vsub.f32 %v579, %v900
      %v923 = vsub.f32 %v584, %v900
      %v924 = vsub.f32 %v587, %v900
      %v925 = vsub.f32 %v592, %v900
      %v926 = vsub.f32 %v595, %v900
      %v927 = vsub.f32 %v600, %v900
      %v928 = vsub.f32 %v603, %v900
      %v929 = vsub.f32 %v608, %v900
      %v930 = vsub.f32 %v611, %v900
      %v931 = vsub.f32 %v616, %v900
      %v932 = vsub.f32 %v619, %v900
      %v933 = vmul.f32 %v901, %v901
      %v934 = vmul.f32 %v902, %v902
      %v935 = vmul.f32 %v903, %v903
      %v936 = vmul.f32 %v904, %v904
      %v937 = vmul.f32 %v905, %v905
      %v938 = vmul.f32 %v906, %v906
      %v939 = vmul.f32 %v907, %v907
      %v940 = vmul.f32 %v908, %v908
      %v941 = vmul.f32 %v909, %v909
      %v942 = vmul.f32 %v910, %v910
      %v943 = vmul.f32 %v911, %v911
      %v944 = vmul.f32 %v912, %v912
      %v945 = vmul.f32 %v913, %v913
      %v946 = vmul.f32 %v914, %v914
      %v947 = vmul.f32 %v915, %v915
      %v948 = vmul.f32 %v916, %v916
      %v949 = vmul.f32 %v917, %v917
      %v950 = vmul.f32 %v918, %v918
      %v951 = vmul.f32 %v919, %v919
      %v952 = vmul.f32 %v920, %v920
      %v953 = vmul.f32 %v921, %v921
      %v954 = vmul.f32 %v922, %v922
      %v955 = vmul.f32 %v923, %v923
      %v956 = vmul.f32 %v924, %v924
      %v957 = vmul.f32 %v925, %v925
      %v958 = vmul.f32 %v926, %v926
      %v959 = vmul.f32 %v927, %v927
      %v960 = vmul.f32 %v928, %v928
      %v961 = vmul.f32 %v929, %v929
      %v962 = vmul.f32 %v930, %v930
      %v963 = vmul.f32 %v931, %v931
      %v964 = vmul.f32 %v932, %v932
      %965 = vmatprep.subr.mxu0 0.0
      %966 = vmatpush1.msra.mxu0 %v637
      %967 = vmatprep.subr.mxu0 0.0
      %968 = vmatpush1.msra.mxu0 %v636
      %969 = vmatprep.subr.mxu0 0.0
      %970 = vmatpush1.msra.mxu0 %v635
      %971 = vmatprep.subr.mxu0 0.0
      %972 = vmatpush1.msra.mxu0 %v634
      %973 = vmatprep.subr.mxu0 0.0
      %974 = vmatpush1.msra.mxu0 %v633
      %975 = vmatprep.subr.mxu0 0.0
      %976 = vmatpush1.msra.mxu0 %v632
      %977 = vmatprep.subr.mxu0 0.0
      %978 = vmatpush1.msra.mxu0 %v631
      %979 = vmatprep.subr.mxu0 0.0
      %980 = vmatpush1.msra.mxu0 %v630
      %981 = vmatprep.subr.mxu0 0.0
      %982 = vmatpush1.msra.mxu0 %v629
      %983 = vmatprep.subr.mxu0 0.0
      %984 = vmatpush1.msra.mxu0 %v628
      %985 = vmatprep.subr.mxu0 0.0
      %986 = vmatpush1.msra.mxu0 %v627
      %987 = vmatprep.subr.mxu0 0.0
      %988 = vmatpush1.msra.mxu0 %v626
      %989 = vmatprep.subr.mxu0 0.0
      %990 = vmatpush1.msra.mxu0 %v625
      %991 = vmatprep.subr.mxu0 0.0
      %992 = vmatpush1.msra.mxu0 %v624
      %993 = vmatprep.subr.mxu0 0.0
      %994 = vmatpush1.msra.mxu0 %v623
      %995 = vmatprep.subr.mxu0 0.0
      %996 = vmatpush1.msra.mxu0 %v622
      %997 = vmatprep.subr.mxu0 0.0
      %998 = vmatpush2.msra.mxu0 0.0
      %999 = vmatprep.subr.mxu0 0.0
      %1000 = vmatpush2.msra.mxu0 0.0
      %1001 = vmatprep.subr.mxu0 0.0
      %1002 = vmatpush2.msra.mxu0 0.0
      %1003 = vmatprep.subr.mxu0 0.0
      %1004 = vmatpush2.msra.mxu0 0.0
      %1005 = vmatprep.subr.mxu0 0.0
      %1006 = vmatpush2.msra.mxu0 0.0
      %1007 = vmatprep.subr.mxu0 0.0
      %1008 = vmatpush2.msra.mxu0 0.0
      %1009 = vmatprep.subr.mxu0 0.0
      %1010 = vmatpush2.msra.mxu0 0.0
      %1011 = vmatprep.subr.mxu0 0.0
      %1012 = vmatpush2.msra.mxu0 0.0
      %1013 = vmatprep.subr.mxu0 0.0
      %1014 = vmatpush2.msra.mxu0 0.0
      %1015 = vmatprep.subr.mxu0 0.0
      %1016 = vmatpush2.msra.mxu0 0.0
      %1017 = vmatprep.subr.mxu0 0.0
      %1018 = vmatpush2.msra.mxu0 0.0
      %1019 = vmatprep.subr.mxu0 0.0
      %1020 = vmatpush2.msra.mxu0 0.0
      %1021 = vmatprep.subr.mxu0 0.0
      %1022 = vmatpush2.msra.mxu0 0.0
      %1023 = vmatprep.subr.mxu0 0.0
      %1024 = vmatpush2.msra.mxu0 0.0
      %1025 = vmatprep.subr.mxu0 0.0
      %1026 = vmatpush2.msra.mxu0 0.0
      %1027 = vmatprep.subr.mxu0 0.0
      %1028 = vmatpush2.msra.mxu0 0.0
      %1029 = vmatprep.mubr.f32.mxu0 0.0
      %1030 = vmatmul.mubr.f32.gmra.mxu0 %v933
      %v1031 = vpop.f32.mrf.mxu0
      %v1032 = vadd.f32 0.0, %v1031
      %v1033 = vpop.f32.mrf.mxu0
      %1034 = vmatprep.mubr.f32.mxu0 0.0
      %1035 = vmatmul.mubr.f32.gmra.mxu0 %v934
      %v1036 = vpop.f32.mrf.mxu0
      %v1037 = vadd.f32 0.0, %v1036
      %v1038 = vpop.f32.mrf.mxu0
      %1039 = vmatprep.mubr.f32.mxu0 0.0
      %1040 = vmatmul.mubr.f32.gmra.mxu0 %v935
      %v1041 = vpop.f32.mrf.mxu0
      %v1042 = vadd.f32 0.0, %v1041
      %v1043 = vpop.f32.mrf.mxu0
      %1044 = vmatprep.mubr.f32.mxu0 0.0
      %1045 = vmatmul.mubr.f32.gmra.mxu0 %v936
      %v1046 = vpop.f32.mrf.mxu0
      %v1047 = vadd.f32 0.0, %v1046
      %v1048 = vpop.f32.mrf.mxu0
      %1049 = vmatprep.mubr.f32.mxu0 0.0
      %1050 = vmatmul.mubr.f32.gmra.mxu0 %v937
      %v1051 = vpop.f32.mrf.mxu0
      %v1052 = vadd.f32 0.0, %v1051
      %v1053 = vpop.f32.mrf.mxu0
      %1054 = vmatprep.mubr.f32.mxu0 0.0
      %1055 = vmatmul.mubr.f32.gmra.mxu0 %v938
      %v1056 = vpop.f32.mrf.mxu0
      %v1057 = vadd.f32 0.0, %v1056
      %v1058 = vpop.f32.mrf.mxu0
      %1059 = vmatprep.mubr.f32.mxu0 0.0
      %1060 = vmatmul.mubr.f32.gmra.mxu0 %v939
      %v1061 = vpop.f32.mrf.mxu0
      %v1062 = vadd.f32 0.0, %v1061
      %v1063 = vpop.f32.mrf.mxu0
      %1064 = vmatprep.mubr.f32.mxu0 0.0
      %1065 = vmatmul.mubr.f32.gmra.mxu0 %v940
      %v1066 = vpop.f32.mrf.mxu0
      %v1067 = vadd.f32 0.0, %v1066
      %v1068 = vpop.f32.mrf.mxu0
      %1069 = vmatprep.mubr.f32.mxu0 0.0
      %1070 = vmatmul.mubr.f32.gmra.mxu0 %v941
      %v1071 = vpop.f32.mrf.mxu0
      %v1072 = vadd.f32 0.0, %v1071
      %v1073 = vpop.f32.mrf.mxu0
      %1074 = vmatprep.mubr.f32.mxu0 0.0
      %1075 = vmatmul.mubr.f32.gmra.mxu0 %v942
      %v1076 = vpop.f32.mrf.mxu0
      %v1077 = vadd.f32 0.0, %v1076
      %v1078 = vpop.f32.mrf.mxu0
      %1079 = vmatprep.mubr.f32.mxu0 0.0
      %1080 = vmatmul.mubr.f32.gmra.mxu0 %v943
      %v1081 = vpop.f32.mrf.mxu0
      %v1082 = vadd.f32 0.0, %v1081
      %v1083 = vpop.f32.mrf.mxu0
      %1084 = vmatprep.mubr.f32.mxu0 0.0
      %1085 = vmatmul.mubr.f32.gmra.mxu0 %v944
      %v1086 = vpop.f32.mrf.mxu0
      %v1087 = vadd.f32 0.0, %v1086
      %v1088 = vpop.f32.mrf.mxu0
      %1089 = vmatprep.mubr.f32.mxu0 0.0
      %1090 = vmatmul.mubr.f32.gmra.mxu0 %v945
      %v1091 = vpop.f32.mrf.mxu0
      %v1092 = vadd.f32 0.0, %v1091
      %v1093 = vpop.f32.mrf.mxu0
      %1094 = vmatprep.mubr.f32.mxu0 0.0
      %1095 = vmatmul.mubr.f32.gmra.mxu0 %v946
      %v1096 = vpop.f32.mrf.mxu0
      %v1097 = vadd.f32 0.0, %v1096
      %v1098 = vpop.f32.mrf.mxu0
      %1099 = vmatprep.mubr.f32.mxu0 0.0
      %1100 = vmatmul.mubr.f32.gmra.mxu0 %v947
      %v1101 = vpop.f32.mrf.mxu0
      %v1102 = vadd.f32 0.0, %v1101
      %v1103 = vpop.f32.mrf.mxu0
      %1104 = vmatprep.mubr.f32.mxu0 0.0
      %1105 = vmatmul.mubr.f32.gmra.mxu0 %v948
      %v1106 = vpop.f32.mrf.mxu0
      %v1107 = vadd.f32 0.0, %v1106
      %v1108 = vpop.f32.mrf.mxu0
      %1109 = vmatprep.mubr.f32.mxu0 0.0
      %1110 = vmatmul.mubr.f32.gmra.mxu0 %v949
      %v1111 = vpop.f32.mrf.mxu0
      %v1112 = vadd.f32 0.0, %v1111
      %v1113 = vpop.f32.mrf.mxu0
      %1114 = vmatprep.mubr.f32.mxu0 0.0
      %1115 = vmatmul.mubr.f32.gmra.mxu0 %v950
      %v1116 = vpop.f32.mrf.mxu0
      %v1117 = vadd.f32 0.0, %v1116
      %v1118 = vpop.f32.mrf.mxu0
      %1119 = vmatprep.mubr.f32.mxu0 0.0
      %1120 = vmatmul.mubr.f32.gmra.mxu0 %v951
      %v1121 = vpop.f32.mrf.mxu0
      %v1122 = vadd.f32 0.0, %v1121
      %v1123 = vpop.f32.mrf.mxu0
      %1124 = vmatprep.mubr.f32.mxu0 0.0
      %1125 = vmatmul.mubr.f32.gmra.mxu0 %v952
      %v1126 = vpop.f32.mrf.mxu0
      %v1127 = vadd.f32 0.0, %v1126
      %v1128 = vpop.f32.mrf.mxu0
      %1129 = vmatprep.mubr.f32.mxu0 0.0
      %1130 = vmatmul.mubr.f32.gmra.mxu0 %v953
      %v1131 = vpop.f32.mrf.mxu0
      %v1132 = vadd.f32 0.0, %v1131
      %v1133 = vpop.f32.mrf.mxu0
      %1134 = vmatprep.mubr.f32.mxu0 0.0
      %1135 = vmatmul.mubr.f32.gmra.mxu0 %v954
      %v1136 = vpop.f32.mrf.mxu0
      %v1137 = vadd.f32 0.0, %v1136
      %v1138 = vpop.f32.mrf.mxu0
      %1139 = vmatprep.mubr.f32.mxu0 0.0
      %1140 = vmatmul.mubr.f32.gmra.mxu0 %v955
      %v1141 = vpop.f32.mrf.mxu0
      %v1142 = vadd.f32 0.0, %v1141
      %v1143 = vpop.f32.mrf.mxu0
      %1144 = vmatprep.mubr.f32.mxu0 0.0
      %1145 = vmatmul.mubr.f32.gmra.mxu0 %v956
      %v1146 = vpop.f32.mrf.mxu0
      %v1147 = vadd.f32 0.0, %v1146
      %v1148 = vpop.f32.mrf.mxu0
      %1149 = vmatprep.mubr.f32.mxu0 0.0
      %1150 = vmatmul.mubr.f32.gmra.mxu0 %v957
      %v1151 = vpop.f32.mrf.mxu0
      %v1152 = vadd.f32 0.0, %v1151
      %v1153 = vpop.f32.mrf.mxu0
      %1154 = vmatprep.mubr.f32.mxu0 0.0
      %1155 = vmatmul.mubr.f32.gmra.mxu0 %v958
      %v1156 = vpop.f32.mrf.mxu0
      %v1157 = vadd.f32 0.0, %v1156
      %v1158 = vpop.f32.mrf.mxu0
      %1159 = vmatprep.mubr.f32.mxu0 0.0
      %1160 = vmatmul.mubr.f32.gmra.mxu0 %v959
      %v1161 = vpop.f32.mrf.mxu0
      %v1162 = vadd.f32 0.0, %v1161
      %v1163 = vpop.f32.mrf.mxu0
      %1164 = vmatprep.mubr.f32.mxu0 0.0
      %1165 = vmatmul.mubr.f32.gmra.mxu0 %v960
      %v1166 = vpop.f32.mrf.mxu0
      %v1167 = vadd.f32 0.0, %v1166
      %v1168 = vpop.f32.mrf.mxu0
      %1169 = vmatprep.mubr.f32.mxu0 0.0
      %1170 = vmatmul.mubr.f32.gmra.mxu0 %v961
      %v1171 = vpop.f32.mrf.mxu0
      %v1172 = vadd.f32 0.0, %v1171
      %v1173 = vpop.f32.mrf.mxu0
      %1174 = vmatprep.mubr.f32.mxu0 0.0
      %1175 = vmatmul.mubr.f32.gmra.mxu0 %v962
      %v1176 = vpop.f32.mrf.mxu0
      %v1177 = vadd.f32 0.0, %v1176
      %v1178 = vpop.f32.mrf.mxu0
      %1179 = vmatprep.mubr.f32.mxu0 0.0
      %1180 = vmatmul.mubr.f32.gmra.mxu0 %v963
      %v1181 = vpop.f32.mrf.mxu0
      %v1182 = vadd.f32 0.0, %v1181
      %v1183 = vpop.f32.mrf.mxu0
      %1184 = vmatprep.mubr.f32.mxu0 0.0
      %1185 = vmatmul.mubr.f32.gmra.mxu0 %v964
      %v1186 = vpop.f32.mrf.mxu0
      %v1187 = vadd.f32 0.0, %v1186
      %v1188 = vpop.f32.mrf.mxu0
      %1189 = vdwg.mxu0
      %v1190 = vadd.f32 %v1032, %v1037
      %v1191 = vadd.f32 %v1190, %v1042
      %v1192 = vadd.f32 %v1191, %v1047
      %v1193 = vadd.f32 %v1192, %v1052
      %v1194 = vadd.f32 %v1193, %v1057
      %v1195 = vadd.f32 %v1194, %v1062
      %v1196 = vadd.f32 %v1195, %v1067
      %v1197 = vadd.f32 %v1196, %v1072
      %v1198 = vadd.f32 %v1197, %v1077
      %v1199 = vadd.f32 %v1198, %v1082
      %v1200 = vadd.f32 %v1199, %v1087
      %v1201 = vadd.f32 %v1200, %v1092
      %v1202 = vadd.f32 %v1201, %v1097
      %v1203 = vadd.f32 %v1202, %v1102
      %v1204 = vadd.f32 %v1203, %v1107
      %v1205 = vadd.f32 %v1204, %v1112
      %v1206 = vadd.f32 %v1205, %v1117
      %v1207 = vadd.f32 %v1206, %v1122
      %v1208 = vadd.f32 %v1207, %v1127
      %v1209 = vadd.f32 %v1208, %v1132
      %v1210 = vadd.f32 %v1209, %v1137
      %v1211 = vadd.f32 %v1210, %v1142
      %v1212 = vadd.f32 %v1211, %v1147
      %v1213 = vadd.f32 %v1212, %v1152
      %v1214 = vadd.f32 %v1213, %v1157
      %v1215 = vadd.f32 %v1214, %v1162
      %v1216 = vadd.f32 %v1215, %v1167
      %v1217 = vadd.f32 %v1216, %v1172
      %v1218 = vadd.f32 %v1217, %v1177
      %v1219 = vadd.f32 %v1218, %v1182
      %v1220 = vadd.f32 %v1219, %v1187
      %v1221 = vrot.slane %v1220, 4
      %v1222 = vadd.f32 %v1220, %v1221
      %v1223 = vrot.slane %v1222, 2
      %v1224 = vadd.f32 %v1222, %v1223
      %v1225 = vrot.slane %v1224, 1
      %v1226 = vadd.f32 %v1224, %v1225
      %v1227 = vmul.f32 %v1226, 0.0009765625
      %v1228 = vadd.f32 %v1227, 1e-05
      %v1229 = vrsqrt.pop %v1228
      %v1230 = vmul.f32 %v901, %v1229
      %v1231 = vmul.f32 %v902, %v1229
      %v1232 = vmul.f32 %v903, %v1229
      %v1233 = vmul.f32 %v904, %v1229
      %v1234 = vmul.f32 %v905, %v1229
      %v1235 = vmul.f32 %v906, %v1229
      %v1236 = vmul.f32 %v907, %v1229
      %v1237 = vmul.f32 %v908, %v1229
      %v1238 = vmul.f32 %v909, %v1229
      %v1239 = vmul.f32 %v910, %v1229
      %v1240 = vmul.f32 %v911, %v1229
      %v1241 = vmul.f32 %v912, %v1229
      %v1242 = vmul.f32 %v913, %v1229
      %v1243 = vmul.f32 %v914, %v1229
      %v1244 = vmul.f32 %v915, %v1229
      %v1245 = vmul.f32 %v916, %v1229
      %v1246 = vmul.f32 %v917, %v1229
      %v1247 = vmul.f32 %v918, %v1229
      %v1248 = vmul.f32 %v919, %v1229
      %v1249 = vmul.f32 %v920, %v1229
      %v1250 = vmul.f32 %v921, %v1229
      %v1251 = vmul.f32 %v922, %v1229
      %v1252 = vmul.f32 %v923, %v1229
      %v1253 = vmul.f32 %v924, %v1229
      %v1254 = vmul.f32 %v925, %v1229
      %v1255 = vmul.f32 %v926, %v1229
      %v1256 = vmul.f32 %v927, %v1229
      %v1257 = vmul.f32 %v928, %v1229
      %v1258 = vmul.f32 %v929, %v1229
      %v1259 = vmul.f32 %v930, %v1229
      %v1260 = vmul.f32 %v931, %v1229
      %v1261 = vmul.f32 %v932, %v1229
      %v1262 = vld [vmem:[%s3] sm:$0x1]
      %v1264 = vlaneseq
      %v1265 = vshrl.u32 %v1264, 7
      %v1266 = vsub.s32 0, %v1265
      %v1267 = vrot.slane %v1262, %v1266
      %v1269 = vmul.f32 %v1230, %v1267
      %v1270 = vmul.f32 %v1231, %v1267
      %v1271 = vmul.f32 %v1232, %v1267
      %v1272 = vmul.f32 %v1233, %v1267
      %v1273 = vmul.f32 %v1234, %v1267
      %v1274 = vmul.f32 %v1235, %v1267
      %v1275 = vmul.f32 %v1236, %v1267
      %v1276 = vmul.f32 %v1237, %v1267
      %v1277 = vmul.f32 %v1238, %v1267
      %v1278 = vmul.f32 %v1239, %v1267
      %v1279 = vmul.f32 %v1240, %v1267
      %v1280 = vmul.f32 %v1241, %v1267
      %v1281 = vmul.f32 %v1242, %v1267
      %v1282 = vmul.f32 %v1243, %v1267
      %v1283 = vmul.f32 %v1244, %v1267
      %v1284 = vmul.f32 %v1245, %v1267
      %v1285 = vmul.f32 %v1246, %v1267
      %v1286 = vmul.f32 %v1247, %v1267
      %v1287 = vmul.f32 %v1248, %v1267
      %v1288 = vmul.f32 %v1249, %v1267
      %v1289 = vmul.f32 %v1250, %v1267
      %v1290 = vmul.f32 %v1251, %v1267
      %v1291 = vmul.f32 %v1252, %v1267
      %v1292 = vmul.f32 %v1253, %v1267
      %v1293 = vmul.f32 %v1254, %v1267
      %v1294 = vmul.f32 %v1255, %v1267
      %v1295 = vmul.f32 %v1256, %v1267
      %v1296 = vmul.f32 %v1257, %v1267
      %v1297 = vmul.f32 %v1258, %v1267
      %v1298 = vmul.f32 %v1259, %v1267
      %v1299 = vmul.f32 %v1260, %v1267
      %v1300 = vmul.f32 %v1261, %v1267
      %v1301 = vld [vmem:[%s4] sm:$0x1]
      %v1303 = vlaneseq
      %v1304 = vshrl.u32 %v1303, 7
      %v1305 = vsub.s32 0, %v1304
      %v1306 = vrot.slane %v1301, %v1305
      %v1308 = vadd.f32 %v1269, %v1306
      %v1309 = vadd.f32 %v1270, %v1306
      %v1310 = vadd.f32 %v1271, %v1306
      %v1311 = vadd.f32 %v1272, %v1306
      %v1312 = vadd.f32 %v1273, %v1306
      %v1313 = vadd.f32 %v1274, %v1306
      %v1314 = vadd.f32 %v1275, %v1306
      %v1315 = vadd.f32 %v1276, %v1306
      %v1316 = vadd.f32 %v1277, %v1306
      %v1317 = vadd.f32 %v1278, %v1306
      %v1318 = vadd.f32 %v1279, %v1306
      %v1319 = vadd.f32 %v1280, %v1306
      %v1320 = vadd.f32 %v1281, %v1306
      %v1321 = vadd.f32 %v1282, %v1306
      %v1322 = vadd.f32 %v1283, %v1306
      %v1323 = vadd.f32 %v1284, %v1306
      %v1324 = vadd.f32 %v1285, %v1306
      %v1325 = vadd.f32 %v1286, %v1306
      %v1326 = vadd.f32 %v1287, %v1306
      %v1327 = vadd.f32 %v1288, %v1306
      %v1328 = vadd.f32 %v1289, %v1306
      %v1329 = vadd.f32 %v1290, %v1306
      %v1330 = vadd.f32 %v1291, %v1306
      %v1331 = vadd.f32 %v1292, %v1306
      %v1332 = vadd.f32 %v1293, %v1306
      %v1333 = vadd.f32 %v1294, %v1306
      %v1334 = vadd.f32 %v1295, %v1306
      %v1335 = vadd.f32 %v1296, %v1306
      %v1336 = vadd.f32 %v1297, %v1306
      %v1337 = vadd.f32 %v1298, %v1306
      %v1338 = vadd.f32 %v1299, %v1306
      %v1339 = vadd.f32 %v1300, %v1306
      %v1340 = vmax.f32 %v1308, 0.0
      %v1341 = vmax.f32 %v1309, 0.0
      %v1342 = vmax.f32 %v1310, 0.0
      %v1343 = vmax.f32 %v1311, 0.0
      %v1344 = vmax.f32 %v1312, 0.0
      %v1345 = vmax.f32 %v1313, 0.0
      %v1346 = vmax.f32 %v1314, 0.0
      %v1347 = vmax.f32 %v1315, 0.0
      %v1348 = vmax.f32 %v1316, 0.0
      %v1349 = vmax.f32 %v1317, 0.0
      %v1350 = vmax.f32 %v1318, 0.0
      %v1351 = vmax.f32 %v1319, 0.0
      %v1352 = vmax.f32 %v1320, 0.0
      %v1353 = vmax.f32 %v1321, 0.0
      %v1354 = vmax.f32 %v1322, 0.0
      %v1355 = vmax.f32 %v1323, 0.0
      %v1356 = vmax.f32 %v1324, 0.0
      %v1357 = vmax.f32 %v1325, 0.0
      %v1358 = vmax.f32 %v1326, 0.0
      %v1359 = vmax.f32 %v1327, 0.0
      %v1360 = vmax.f32 %v1328, 0.0
      %v1361 = vmax.f32 %v1329, 0.0
      %v1362 = vmax.f32 %v1330, 0.0
      %v1363 = vmax.f32 %v1331, 0.0
      %v1364 = vmax.f32 %v1332, 0.0
      %v1365 = vmax.f32 %v1333, 0.0
      %v1366 = vmax.f32 %v1334, 0.0
      %v1367 = vmax.f32 %v1335, 0.0
      %v1368 = vmax.f32 %v1336, 0.0
      %v1369 = vmax.f32 %v1337, 0.0
      %v1370 = vmax.f32 %v1338, 0.0
      %v1371 = vmax.f32 %v1339, 0.0
      %1372 = vst [vmem:[%s251] sm:$0xff] %v1340
      %1373 = vst [vmem:[%s251 + $0x8] sm:$0xff] %v1341
      %1374 = vst [vmem:[%s251 + $0x10] sm:$0xff] %v1342
      %1375 = vst [vmem:[%s251 + $0x18] sm:$0xff] %v1343
      %1376 = vst [vmem:[%s251 + $0x20] sm:$0xff] %v1344
      %1377 = vst [vmem:[%s251 + $0x28] sm:$0xff] %v1345
      %1378 = vst [vmem:[%s251 + $0x30] sm:$0xff] %v1346
      %1379 = vst [vmem:[%s251 + $0x38] sm:$0xff] %v1347
      %1380 = vst [vmem:[%s251 + $0x40] sm:$0xff] %v1348
      %1381 = vst [vmem:[%s251 + $0x48] sm:$0xff] %v1349
      %1382 = vst [vmem:[%s251 + $0x50] sm:$0xff] %v1350
      %1383 = vst [vmem:[%s251 + $0x58] sm:$0xff] %v1351
      %1384 = vst [vmem:[%s251 + $0x60] sm:$0xff] %v1352
      %1385 = vst [vmem:[%s251 + $0x68] sm:$0xff] %v1353
      %1386 = vst [vmem:[%s251 + $0x70] sm:$0xff] %v1354
      %1387 = vst [vmem:[%s251 + $0x78] sm:$0xff] %v1355
      %1388 = vst [vmem:[%s251 + $0x80] sm:$0xff] %v1356
      %1389 = vst [vmem:[%s251 + $0x88] sm:$0xff] %v1357
      %1390 = vst [vmem:[%s251 + $0x90] sm:$0xff] %v1358
      %1391 = vst [vmem:[%s251 + $0x98] sm:$0xff] %v1359
      %1392 = vst [vmem:[%s251 + $0xa0] sm:$0xff] %v1360
      %1393 = vst [vmem:[%s251 + $0xa8] sm:$0xff] %v1361
      %1394 = vst [vmem:[%s251 + $0xb0] sm:$0xff] %v1362
      %1395 = vst [vmem:[%s251 + $0xb8] sm:$0xff] %v1363
      %1396 = vst [vmem:[%s251 + $0xc0] sm:$0xff] %v1364
      %1397 = vst [vmem:[%s251 + $0xc8] sm:$0xff] %v1365
      %1398 = vst [vmem:[%s251 + $0xd0] sm:$0xff] %v1366
      %1399 = vst [vmem:[%s251 + $0xd8] sm:$0xff] %v1367
      %1400 = vst [vmem:[%s251 + $0xe0] sm:$0xff] %v1368
      %1401 = vst [vmem:[%s251 + $0xe8] sm:$0xff] %v1369
      %1402 = vst [vmem:[%s251 + $0xf0] sm:$0xff] %v1370
      %1403 = vst [vmem:[%s251 + $0xf8] sm:$0xff] %v1371
      %p1404 = scmp.lt.s32.totalorder %s17, 1
      %s1405 = scalar_select %p1404, %s17, 1
      %s1406 = smul.addr %s1405, 32
      %s1407 = smul.addr %s1406, 8
      %s1408 = scalar_lea.vmem %s6, %s1407
      // Predicated region
      $region45: #{dsc_module.6} parent=43 // pred_check
        %p1409 = pneg %p166
      $region46: #{dsc_module.6} parent=43 // pred_check_branch
        %1411 = sbr.rel (%p1409) target = $region48
      $region47: #{dsc_module.6} parent=43 // pred_region
        _
      $region48: #{dsc_module.6} parent=43 // pred_fallthru
        _
    $region44: #{dsc_module.6} parent=5 // pred_fallthru
      _
    %p1412 = scmp.le.s32.totalorder 2, %s12
    // Predicated region
    $region49: #{dsc_module.6} parent=5 // pred_check
      %p1413 = pneg %p1412
    $region50: #{dsc_module.6} parent=5 // pred_check_branch
      %1415 = sbr.rel (%p1413) target = $region52
    $region51: #{dsc_module.6} parent=5 // pred_region
      %s1416 = ssub.s32 %s12, 2
      // Predicated region
      $region53: #{dsc_module.6} parent=51 // pred_check
        %p1417 = pneg %p172
      $region54: #{dsc_module.6} parent=51 // pred_check_branch
        %1419 = sbr.rel (%p1417) target = $region56
      $region55: #{dsc_module.6} parent=51 // pred_region
        %p1420 = scmp.lt.s32.totalorder %s18, 1
        %s1421 = scalar_select %p1420, %s18, 1
        %s1422 = smul.addr %s1421, 32
        %s1423 = smul.addr %s1422, 8
        %s1424 = scalar_lea.vmem %s6, %s1423
      $region56: #{dsc_module.6} parent=51 // pred_fallthru
        _
    $region52: #{dsc_module.6} parent=5 // pred_fallthru
      _
  $region6: #{dsc_module.6} parent=0 // loop_footer
    %s16 = sadd.s32 1, %s12
  $region7: #{dsc_module.6} parent=0 // loop_footer_branch
    %11 = sbr.rel target = $region3
  $region8: #{dsc_module.6} parent=0 // loop_exit
    _

// kernel: dsc_module.7
$region0: #{dsc_module.7}
  #allocation0 [shape = 'u32[]', space=smem, size = 0x4, offset = 0x4, fixed_abs, tag = 'smem constant byte address 0x4 - core index']
  #allocation1 [shape = 'u32[144,128]{1,0:T(1,128)}', space=vmem, size = 0x12000, scoped, tag = 'internal scratch']
  %s0 = inlined_call_operand.vmem [shape: bf16[512,216], index: 0, kind: input, shape index: {}]
  %s1 = inlined_call_operand.vmem [shape: bf16[216,128], index: 1, kind: input, shape index: {}]
  %s2 = inlined_call_operand.vmem [shape: f32[1,128], index: 2, kind: input, shape index: {}]
  %s3 = inlined_call_operand.vmem [shape: f32[512,128], index: 3, kind: output, shape index: {}]
  %s4 = sld [smem:[#allocation0]]
  $region45: #{dsc_module.7} parent=0
    _
  %s6 = ssub.s32 1, %s4
  %s7 = scalar_select 0, %s6, %s4
  loop: start=0, step=1, limit=4
  $region2: #{dsc_module.7} parent=0 // loop_pre_header
    _
  $region3: #{dsc_module.7} parent=0 // loop_header
    %s9 = sphi 0, %s13
    %p10 = scmp.ge.s32.totalorder %s9, 4
    %s19 = sphi 0, %s21
    %s22 = sphi 0, %s19
    %s23 = sphi 0, %s22
    %s39 = sphi 0, %s23
    %s43 = sphi 0, %s43
    %s45 = sphi 0, %s43
    %s46 = sphi 0, %s45
    %s60 = sphi 0, %s46
    %s64 = sphi 0, %s64
    %s66 = sphi 0, %s64
    %s67 = sphi 0, %s66
    %s81 = sphi 0, %s67
    %s87 = sphi 0, %s89
    %s90 = sphi 0, %s87
    %s91 = sphi 0, %s90
    %s107 = sphi 0, %s91
  $region4: #{dsc_module.7} parent=0 // loop_header_branch
    %12 = sbr.rel (%p10) target = $region8
  $region5: #{dsc_module.7} parent=0 // loop_body
    %s14 = ssub.s32 %s9, 1
    %s15 = ssub.s32 %s9, 2
    %s16 = sadd.s32 %s9, 1
    %s17 = ssub.s32 %s9, %s16
    %p18 = scmp.eq.s32.totalorder %s17, 0
    %s20 = sadd.s32 %s19, 1
    %s21 = scalar_select %p18, %s19, %s20
    %p24 = pneg %p18
    %p25 = scmp.eq.s32.totalorder %s9, 1
    %p26 = por %p24, %p25
    %p27 = scmp.ne.s32.totalorder %s19, %s22
    %p28 = scmp.eq.s32.totalorder %s9, 0
    %p29 = por %p27, %p28
    %p30 = scmp.ne.s32.totalorder %s19, %s22
    %p31 = scmp.eq.s32.totalorder %s14, 1
    %p32 = por %p30, %p31
    %p33 = scmp.ne.s32.totalorder %s22, %s23
    %p34 = scmp.eq.s32.totalorder %s14, 0
    %p35 = por %p33, %p34
    %p36 = scmp.ne.s32.totalorder %s22, %s23
    %p37 = scmp.eq.s32.totalorder %s15, 1
    %p38 = por %p36, %p37
    %p40 = scmp.ne.s32.totalorder %s23, %s39
    %p41 = scmp.eq.s32.totalorder %s15, 0
    %p42 = por %p40, %p41
    %s44 = sadd.s32 %s43, 1
    %p47 = scmp.eq.s32.totalorder %s9, 1
    %p48 = scmp.ne.s32.totalorder %s43, %s45
    %p49 = scmp.eq.s32.totalorder %s9, 0
    %p50 = por %p48, %p49
    %p51 = scmp.ne.s32.totalorder %s43, %s45
    %p52 = scmp.eq.s32.totalorder %s14, 1
    %p53 = por %p51, %p52
    %p54 = scmp.ne.s32.totalorder %s45, %s46
    %p55 = scmp.eq.s32.totalorder %s14, 0
    %p56 = por %p54, %p55
    %p57 = scmp.ne.s32.totalorder %s45, %s46
    %p58 = scmp.eq.s32.totalorder %s15, 1
    %p59 = por %p57, %p58
    %p61 = scmp.ne.s32.totalorder %s46, %s60
    %p62 = scmp.eq.s32.totalorder %s15, 0
    %p63 = por %p61, %p62
    %s65 = sadd.s32 %s64, 1
    %p68 = scmp.eq.s32.totalorder %s9, 1
    %p69 = scmp.ne.s32.totalorder %s64, %s66
    %p70 = scmp.eq.s32.totalorder %s9, 0
    %p71 = por %p69, %p70
    %p72 = scmp.ne.s32.totalorder %s64, %s66
    %p73 = scmp.eq.s32.totalorder %s14, 1
    %p74 = por %p72, %p73
    %p75 = scmp.ne.s32.totalorder %s66, %s67
    %p76 = scmp.eq.s32.totalorder %s14, 0
    %p77 = por %p75, %p76
    %p78 = scmp.ne.s32.totalorder %s66, %s67
    %p79 = scmp.eq.s32.totalorder %s15, 1
    %p80 = por %p78, %p79
    %p82 = scmp.ne.s32.totalorder %s67, %s81
    %p83 = scmp.eq.s32.totalorder %s15, 0
    %p84 = por %p82, %p83
    %s85 = ssub.s32 %s9, %s16
    %p86 = scmp.eq.s32.totalorder %s85, 0
    %s88 = sadd.s32 %s87, 1
    %s89 = scalar_select %p86, %s87, %s88
    %p92 = pneg %p86
    %p93 = scmp.eq.s32.totalorder %s9, 1
    %p94 = por %p92, %p93
    %p95 = scmp.ne.s32.totalorder %s87, %s90
    %p96 = scmp.eq.s32.totalorder %s9, 0
    %p97 = por %p95, %p96
    %p98 = scmp.ne.s32.totalorder %s87, %s90
    %p99 = scmp.eq.s32.totalorder %s14, 1
    %p100 = por %p98, %p99
    %p101 = scmp.ne.s32.totalorder %s90, %s91
    %p102 = scmp.eq.s32.totalorder %s14, 0
    %p103 = por %p101, %p102
    %p104 = scmp.ne.s32.totalorder %s90, %s91
    %p105 = scmp.eq.s32.totalorder %s15, 1
    %p106 = por %p104, %p105
    %p108 = scmp.ne.s32.totalorder %s91, %s107
    %p109 = scmp.eq.s32.totalorder %s15, 0
    %p110 = por %p108, %p109
    %p111 = scmp.le.s32.totalorder 1, %s9
    %p112 = scmp.lt.s32.totalorder %s9, 3
    %p113 = pnand %p111, %p112
    %p114 = pneg %p113
    // Predicated region
    $region9: #{dsc_module.7} parent=5 // pred_check
      _
    $region10: #{dsc_module.7} parent=5 // pred_check_branch
      %116 = sbr.rel (%p113) target = $region12
    $region11: #{dsc_module.7} parent=5 // pred_region
      %s117 = ssub.s32 %s9, 1
      // Predicated region
      $region13: #{dsc_module.7} parent=11 // pred_check
        %p118 = pneg %p56
      $region14: #{dsc_module.7} parent=11 // pred_check_branch
        %120 = sbr.rel (%p118) target = $region16
      $region15: #{dsc_module.7} parent=11 // pred_region
        _
      $region16: #{dsc_module.7} parent=11 // pred_fallthru
        _
      // Predicated region
      $region17: #{dsc_module.7} parent=11 // pred_check
        %p121 = pneg %p77
      $region18: #{dsc_module.7} parent=11 // pred_check_branch
        %123 = sbr.rel (%p121) target = $region20
      $region19: #{dsc_module.7} parent=11 // pred_region
        _
      $region20: #{dsc_module.7} parent=11 // pred_fallthru
        _
    $region12: #{dsc_module.7} parent=5 // pred_fallthru
      _
    %p124 = scmp.lt.s32.totalorder %s9, 2
    // Predicated region
    $region21: #{dsc_module.7} parent=5 // pred_check
      %p125 = pneg %p124
    $region22: #{dsc_module.7} parent=5 // pred_check_branch
      %127 = sbr.rel (%p125) target = $region24
    $region23: #{dsc_module.7} parent=5 // pred_region
      // Predicated region
      $region25: #{dsc_module.7} parent=23 // pred_check
        %p128 = pneg %p29
      $region26: #{dsc_module.7} parent=23 // pred_check_branch
        %130 = sbr.rel (%p128) target = $region28
      $region27: #{dsc_module.7} parent=23 // pred_region
        %s131 = smul.u32 32, %s9
        %p132 = scmp.lt.s32.totalorder %s131, 63
        %s133 = scalar_select %p132, %s131, 63
        %s134 = smul.addr %s133, 2
        %s135 = smul.addr %s134, 4
        %s136 = scalar_lea.vmem %s0, %s135
        %s137 = smul.u32 32, %s9
      $region28: #{dsc_module.7} parent=23 // pred_fallthru
        _
    $region24: #{dsc_module.7} parent=5 // pred_fallthru
      _
    %p138 = scmp.le.s32.totalorder 1, %s9
    %p139 = scmp.lt.s32.totalorder %s9, 3
    %p140 = pnand %p138, %p139
    %p141 = pneg %p140
    // Predicated region
    $region29: #{dsc_module.7} parent=5 // pred_check
      _
    $region30: #{dsc_module.7} parent=5 // pred_check_branch
      %143 = sbr.rel (%p140) target = $region32
    $region31: #{dsc_module.7} parent=5 // pred_region
      %s144 = ssub.s32 %s9, 1
      %s145 = smul.u32 32, %s14
      %p146 = scmp.lt.s32.totalorder %s145, 63
      %s147 = scalar_select %p146, %s145, 63
      %s148 = smul.addr %s147, 2
      %s149 = smul.addr %s148, 4
      %s150 = scalar_lea.vmem %s0, %s149
      %p151 = pneg %p35
      %p152 = pneg %p32
      %p153 = pneg %p56
      %p154 = pneg %p53
      %p155 = pneg %p77
      %p156 = pneg %p74
      %p157 = pneg %p103
      %p158 = pneg %p100
      %s159 = smul.u32 32, %s14
      %p160 = scmp.lt.s32.totalorder %s159, 63
      %s161 = scalar_select %p160, %s159, 63
      %s162 = smul.addr %s161, 8
      %s163 = scalar_lea.vmem %s3, %s162
      %s164 = smul.u32 32, %s14
      %p165 = scmp.lt.s32.totalorder %s164, 63
      %s166 = scalar_select %p165, %s164, 63
      %s167 = smul.addr %s166, 2
      %s168 = smul.addr %s167, 4
      %s169 = scalar_lea.vmem %s0, %s168
      %s170 = smul.u32 32, %s14
      %s171 = smul.u32 32, %s14
      %p172 = scmp.lt.s32.totalorder %s171, 63
      %s173 = scalar_select %p172, %s171, 63
      %s174 = smul.addr %s173, 8
      %s175 = scalar_lea.vmem %s3, %s174
      %s176 = smul.u32 32, %s14
      %v178 = vld [vmem:[%s169] sm:$0xff]
      %v179 = vld [vmem:[%s169 + $0x8] sm:$0xff]
      %v180 = vld [vmem:[%s169 + $0x10] sm:$0xff]
      %v181 = vld [vmem:[%s169 + $0x18] sm:$0xff]
      %v182 = vld [vmem:[%s169 + $0x20] sm:$0xff]
      %v183 = vld [vmem:[%s169 + $0x28] sm:$0xff]
      %v184 = vld [vmem:[%s169 + $0x30] sm:$0xff]
      %v185 = vld [vmem:[%s169 + $0x38] sm:$0xff]
      %v186 = vld [vmem:[%s169 + $0x40] sm:$0xff]
      %v187 = vld [vmem:[%s169 + $0x48] sm:$0xff]
      %v188 = vld [vmem:[%s169 + $0x50] sm:$0xff]
      %v189 = vld [vmem:[%s169 + $0x58] sm:$0xff]
      %v190 = vld [vmem:[%s169 + $0x60] sm:$0xff]
      %v191 = vld [vmem:[%s169 + $0x68] sm:$0xff]
      %v192 = vld [vmem:[%s169 + $0x70] sm:$0xff]
      %v193 = vld [vmem:[%s169 + $0x78] sm:$0xff]
      %v194 = vld [vmem:[%s169 + $0x80] sm:$0xff]
      %v195 = vld [vmem:[%s169 + $0x88] sm:$0xff]
      %v196 = vld [vmem:[%s169 + $0x90] sm:$0xff]
      %v197 = vld [vmem:[%s169 + $0x98] sm:$0xff]
      %v198 = vld [vmem:[%s169 + $0xa0] sm:$0xff]
      %v199 = vld [vmem:[%s169 + $0xa8] sm:$0xff]
      %v200 = vld [vmem:[%s169 + $0xb0] sm:$0xff]
      %v201 = vld [vmem:[%s169 + $0xb8] sm:$0xff]
      %v202 = vld [vmem:[%s169 + $0xc0] sm:$0xff]
      %v203 = vld [vmem:[%s169 + $0xc8] sm:$0xff]
      %v204 = vld [vmem:[%s169 + $0xd0] sm:$0xff]
      %v205 = vld [vmem:[%s169 + $0xd8] sm:$0xff]
      %v206 = vld [vmem:[%s169 + $0xe0] sm:$0xff]
      %v207 = vld [vmem:[%s169 + $0xe8] sm:$0xff]
      %v208 = vld [vmem:[%s169 + $0xf0] sm:$0xff]
      %v209 = vld [vmem:[%s169 + $0xf8] sm:$0xff]
      %v210 = vld [vmem:[%s1] sm:$0xf]
      %v211 = vld [vmem:[%s1 + $0x4] sm:$0xf]
      %v212 = vld [vmem:[%s1 + $0x8] sm:$0xf]
      %v213 = vld [vmem:[%s1 + $0xc] sm:$0xf]
      %v214 = vld [vmem:[%s1 + $0x10] sm:$0xf]
      %v215 = vld [vmem:[%s1 + $0x14] sm:$0xf]
      %v216 = vld [vmem:[%s1 + $0x18] sm:$0xf]
      %v217 = vld [vmem:[%s1 + $0x1c] sm:$0xf]
      %v218 = vld [vmem:[%s1 + $0x20] sm:$0xf]
      %v219 = vld [vmem:[%s1 + $0x24] sm:$0xf]
      %v220 = vld [vmem:[%s1 + $0x28] sm:$0xf]
      %v221 = vld [vmem:[%s1 + $0x2c] sm:$0xf]
      %v222 = vld [vmem:[%s1 + $0x30] sm:$0xf]
      %v223 = vld [vmem:[%s1 + $0x34] sm:$0xf]
      %v224 = vld [vmem:[%s1 + $0x38] sm:$0xf]
      %v225 = vld [vmem:[%s1 + $0x3c] sm:$0xf]
      %v226 = vld [vmem:[%s1 + $0x40] sm:$0xf]
      %v227 = vld [vmem:[%s1 + $0x44] sm:$0xf]
      %v228 = vld [vmem:[%s1 + $0x48] sm:$0xf]
      %v229 = vld [vmem:[%s1 + $0x4c] sm:$0xf]
      %v230 = vld [vmem:[%s1 + $0x50] sm:$0xf]
      %v231 = vld [vmem:[%s1 + $0x54] sm:$0xf]
      %v232 = vld [vmem:[%s1 + $0x58] sm:$0xf]
      %v233 = vld [vmem:[%s1 + $0x5c] sm:$0xf]
      %v234 = vld [vmem:[%s1 + $0x60] sm:$0xf]
      %v235 = vld [vmem:[%s1 + $0x64] sm:$0xf]
      %v236 = vld [vmem:[%s1 + $0x68] sm:$0xf]
      %v237 = vld [vmem:[%s2] sm:$0x1]
      %v239 = vlaneseq
      %v240 = vshrl.u32 %v239, 7
      %v241 = vsub.s32 0, %v240
      %v242 = vrot.slane %v237, %v241
      %v276 = vunpack.c.l.b16 %v178
      %v277 = vunpack.c.h.b16 %v178
      %v278 = vunpack.c.l.b16 %v179
      %v279 = vunpack.c.h.b16 %v179
      %v280 = vunpack.c.l.b16 %v180
      %v281 = vunpack.c.h.b16 %v180
      %v282 = vunpack.c.l.b16 %v181
      %v283 = vunpack.c.h.b16 %v181
      %v284 = vunpack.c.l.b16 %v182
      %v285 = vunpack.c.h.b16 %v182
      %v286 = vunpack.c.l.b16 %v183
      %v287 = vunpack.c.h.b16 %v183
      %v288 = vunpack.c.l.b16 %v184
      %v289 = vunpack.c.h.b16 %v184
      %v290 = vunpack.c.l.b16 %v185
      %v291 = vunpack.c.h.b16 %v185
      %v292 = vunpack.c.l.b16 %v186
      %v293 = vunpack.c.h.b16 %v186
      %v294 = vunpack.c.l.b16 %v187
      %v295 = vunpack.c.h.b16 %v187
      %v296 = vunpack.c.l.b16 %v188
      %v297 = vunpack.c.h.b16 %v188
      %v298 = vunpack.c.l.b16 %v189
      %v299 = vunpack.c.h.b16 %v189
      %v300 = vunpack.c.l.b16 %v190
      %v301 = vunpack.c.h.b16 %v190
      %v302 = vunpack.c.l.b16 %v191
      %v303 = vunpack.c.h.b16 %v191
      %v304 = vunpack.c.l.b16 %v192
      %v305 = vunpack.c.h.b16 %v192
      %v306 = vunpack.c.l.b16 %v193
      %v307 = vunpack.c.h.b16 %v193
      %v308 = vunpack.c.l.b16 %v194
      %v309 = vunpack.c.h.b16 %v194
      %v310 = vunpack.c.l.b16 %v195
      %v311 = vunpack.c.h.b16 %v195
      %v312 = vunpack.c.l.b16 %v196
      %v313 = vunpack.c.h.b16 %v196
      %v314 = vunpack.c.l.b16 %v197
      %v315 = vunpack.c.h.b16 %v197
      %v316 = vunpack.c.l.b16 %v198
      %v317 = vunpack.c.h.b16 %v198
      %v318 = vunpack.c.l.b16 %v199
      %v319 = vunpack.c.h.b16 %v199
      %v320 = vunpack.c.l.b16 %v200
      %v321 = vunpack.c.h.b16 %v200
      %v322 = vunpack.c.l.b16 %v201
      %v323 = vunpack.c.h.b16 %v201
      %v324 = vunpack.c.l.b16 %v202
      %v325 = vunpack.c.h.b16 %v202
      %v326 = vunpack.c.l.b16 %v203
      %v327 = vunpack.c.h.b16 %v203
      %v328 = vunpack.c.l.b16 %v204
      %v329 = vunpack.c.h.b16 %v204
      %v330 = vunpack.c.l.b16 %v205
      %v331 = vunpack.c.h.b16 %v205
      %v332 = vunpack.c.l.b16 %v206
      %v333 = vunpack.c.h.b16 %v206
      %v334 = vunpack.c.l.b16 %v207
      %v335 = vunpack.c.h.b16 %v207
      %v336 = vunpack.c.l.b16 %v208
      %v337 = vunpack.c.h.b16 %v208
      %v338 = vunpack.c.l.b16 %v209
      %v339 = vunpack.c.h.b16 %v209
      %v340 = vpack.c.b16 %v278, %v276
      %v341 = vpack.c.b16 %v279, %v277
      %v342 = vpack.c.b16 %v282, %v280
      %v343 = vpack.c.b16 %v283, %v281
      %v344 = vpack.c.b16 %v286, %v284
      %v345 = vpack.c.b16 %v287, %v285
      %v346 = vpack.c.b16 %v290, %v288
      %v347 = vpack.c.b16 %v291, %v289
      %v348 = vpack.c.b16 %v294, %v292
      %v349 = vpack.c.b16 %v295, %v293
      %v350 = vpack.c.b16 %v298, %v296
      %v351 = vpack.c.b16 %v299, %v297
      %v352 = vpack.c.b16 %v302, %v300
      %v353 = vpack.c.b16 %v303, %v301
      %v354 = vpack.c.b16 %v306, %v304
      %v355 = vpack.c.b16 %v307, %v305
      %v356 = vpack.c.b16 %v310, %v308
      %v357 = vpack.c.b16 %v311, %v309
      %v358 = vpack.c.b16 %v314, %v312
      %v359 = vpack.c.b16 %v315, %v313
      %v360 = vpack.c.b16 %v318, %v316
      %v361 = vpack.c.b16 %v319, %v317
      %v362 = vpack.c.b16 %v322, %v320
      %v363 = vpack.c.b16 %v323, %v321
      %v364 = vpack.c.b16 %v326, %v324
      %v365 = vpack.c.b16 %v327, %v325
      %v366 = vpack.c.b16 %v330, %v328
      %v367 = vpack.c.b16 %v331, %v329
      %v368 = vpack.c.b16 %v334, %v332
      %v369 = vpack.c.b16 %v335, %v333
      %v370 = vpack.c.b16 %v338, %v336
      %v371 = vpack.c.b16 %v339, %v337
      %v415 = vunpack.c.l.b16 %v210
      %v416 = vunpack.c.l.b16 %v211
      %v417 = vunpack.c.l.b16 %v212
      %v418 = vunpack.c.l.b16 %v213
      %v419 = vunpack.c.l.b16 %v214
      %v420 = vunpack.c.l.b16 %v215
      %v421 = vunpack.c.l.b16 %v216
      %v422 = vunpack.c.l.b16 %v217
      %v423 = vunpack.c.l.b16 %v218
      %v424 = vunpack.c.l.b16 %v219
      %v425 = vunpack.c.l.b16 %v220
      %v426 = vunpack.c.l.b16 %v221
      %v427 = vunpack.c.l.b16 %v222
      %v428 = vunpack.c.l.b16 %v223
      %v429 = vunpack.c.l.b16 %v224
      %v430 = vunpack.c.l.b16 %v225
      %v431 = vunpack.c.l.b16 %v226
      %v432 = vunpack.c.l.b16 %v227
      %v433 = vunpack.c.l.b16 %v228
      %v434 = vunpack.c.l.b16 %v229
      %v435 = vunpack.c.l.b16 %v230
      %v436 = vunpack.c.l.b16 %v231
      %v437 = vunpack.c.l.b16 %v232
      %v438 = vunpack.c.l.b16 %v233
      %v439 = vunpack.c.l.b16 %v234
      %v440 = vunpack.c.l.b16 %v235
      %v441 = vunpack.c.l.b16 %v236
      %v442 = vpack.c.b16 %v416, %v415
      %v443 = vpack.c.b16 %v418, %v417
      %v444 = vpack.c.b16 %v420, %v419
      %v445 = vpack.c.b16 %v422, %v421
      %v446 = vpack.c.b16 %v424, %v423
      %v447 = vpack.c.b16 %v426, %v425
      %v448 = vpack.c.b16 %v428, %v427
      %v449 = vpack.c.b16 %v430, %v429
      %v450 = vpack.c.b16 %v432, %v431
      %v451 = vpack.c.b16 %v434, %v433
      %v452 = vpack.c.b16 %v436, %v435
      %v453 = vpack.c.b16 %v438, %v437
      %v454 = vpack.c.b16 %v440, %v439
      %v455 = vpack.c.b16 %v441, %v441
      %vm469 = vcmask 719872
      %v471 = vsel %vm469, %v341, 0
      %v474 = vsel %vm469, %v343, 0
      %v477 = vsel %vm469, %v345, 0
      %v480 = vsel %vm469, %v347, 0
      %v483 = vsel %vm469, %v349, 0
      %v486 = vsel %vm469, %v351, 0
      %v489 = vsel %vm469, %v353, 0
      %v492 = vsel %vm469, %v355, 0
      %v495 = vsel %vm469, %v357, 0
      %v498 = vsel %vm469, %v359, 0
      %v501 = vsel %vm469, %v361, 0
      %v504 = vsel %vm469, %v363, 0
      %v507 = vsel %vm469, %v365, 0
      %v510 = vsel %vm469, %v367, 0
      %v513 = vsel %vm469, %v369, 0
      %v516 = vsel %vm469, %v371, 0
      %vm518 = vcmask 1043456
      %v520 = vsel %vm518, %v455, 0
      %522 = vmatprep.subr.bf16.mxu0 0
      %523 = vmatpush1.bf16.msra.mxu0 %v449
      %524 = vmatprep.subr.bf16.mxu0 0
      %525 = vmatpush1.bf16.msra.mxu0 %v448
      %526 = vmatprep.subr.bf16.mxu0 0
      %527 = vmatpush1.bf16.msra.mxu0 %v447
      %528 = vmatprep.subr.bf16.mxu0 0
      %529 = vmatpush1.bf16.msra.mxu0 %v446
      %530 = vmatprep.subr.bf16.mxu0 0
      %531 = vmatpush1.bf16.msra.mxu0 %v445
      %532 = vmatprep.subr.bf16.mxu0 0
      %533 = vmatpush1.bf16.msra.mxu0 %v444
      %534 = vmatprep.subr.bf16.mxu0 0
      %535 = vmatpush1.bf16.msra.mxu0 %v443
      %536 = vmatprep.subr.bf16.mxu0 0
      %537 = vmatpush1.bf16.msra.mxu0 %v442
      %538 = vmatprep.subr.bf16.mxu0 0
      %539 = vmatpush2.bf16.msra.mxu0 0
      %540 = vmatprep.subr.bf16.mxu0 0
      %541 = vmatpush2.bf16.msra.mxu0 0
      %542 = vmatprep.subr.bf16.mxu0 0
      %543 = vmatpush2.bf16.msra.mxu0 %v520
      %544 = vmatprep.subr.bf16.mxu0 0
      %545 = vmatpush2.bf16.msra.mxu0 %v454
      %546 = vmatprep.subr.bf16.mxu0 0
      %547 = vmatpush2.bf16.msra.mxu0 %v453
      %548 = vmatprep.subr.bf16.mxu0 0
      %549 = vmatpush2.bf16.msra.mxu0 %v452
      %550 = vmatprep.subr.bf16.mxu0 0
      %551 = vmatpush2.bf16.msra.mxu0 %v451
      %552 = vmatprep.subr.bf16.mxu0 0
      %553 = vmatpush2.bf16.msra.mxu0 %v450
      %554 = vmatprep.mubr.bf16.mxu0 %v471
      %555 = vmatmul.mubr.bf16.gmra.mxu0 %v340
      %v556 = vpop.f32.mrf.mxu0
      %v557 = vadd.f32 %v242, %v556
      %v558 = vpop.f32.mrf.mxu0
      %v559 = vpop.f32.mrf.mxu0
      %v560 = vadd.f32 %v242, %v559
      %v561 = vpop.f32.mrf.mxu0
      %562 = vmatprep.mubr.bf16.mxu0 %v474
      %563 = vmatmul.mubr.bf16.gmra.mxu0 %v342
      %v564 = vpop.f32.mrf.mxu0
      %v565 = vadd.f32 %v242, %v564
      %v566 = vpop.f32.mrf.mxu0
      %v567 = vpop.f32.mrf.mxu0
      %v568 = vadd.f32 %v242, %v567
      %v569 = vpop.f32.mrf.mxu0
      %570 = vmatprep.mubr.bf16.mxu0 %v477
      %571 = vmatmul.mubr.bf16.gmra.mxu0 %v344
      %v572 = vpop.f32.mrf.mxu0
      %v573 = vadd.f32 %v242, %v572
      %v574 = vpop.f32.mrf.mxu0
      %v575 = vpop.f32.mrf.mxu0
      %v576 = vadd.f32 %v242, %v575
      %v577 = vpop.f32.mrf.mxu0
      %578 = vmatprep.mubr.bf16.mxu0 %v480
      %579 = vmatmul.mubr.bf16.gmra.mxu0 %v346
      %v580 = vpop.f32.mrf.mxu0
      %v581 = vadd.f32 %v242, %v580
      %v582 = vpop.f32.mrf.mxu0
      %v583 = vpop.f32.mrf.mxu0
      %v584 = vadd.f32 %v242, %v583
      %v585 = vpop.f32.mrf.mxu0
      %586 = vmatprep.mubr.bf16.mxu0 %v483
      %587 = vmatmul.mubr.bf16.gmra.mxu0 %v348
      %v588 = vpop.f32.mrf.mxu0
      %v589 = vadd.f32 %v242, %v588
      %v590 = vpop.f32.mrf.mxu0
      %v591 = vpop.f32.mrf.mxu0
      %v592 = vadd.f32 %v242, %v591
      %v593 = vpop.f32.mrf.mxu0
      %594 = vmatprep.mubr.bf16.mxu0 %v486
      %595 = vmatmul.mubr.bf16.gmra.mxu0 %v350
      %v596 = vpop.f32.mrf.mxu0
      %v597 = vadd.f32 %v242, %v596
      %v598 = vpop.f32.mrf.mxu0
      %v599 = vpop.f32.mrf.mxu0
      %v600 = vadd.f32 %v242, %v599
      %v601 = vpop.f32.mrf.mxu0
      %602 = vmatprep.mubr.bf16.mxu0 %v489
      %603 = vmatmul.mubr.bf16.gmra.mxu0 %v352
      %v604 = vpop.f32.mrf.mxu0
      %v605 = vadd.f32 %v242, %v604
      %v606 = vpop.f32.mrf.mxu0
      %v607 = vpop.f32.mrf.mxu0
      %v608 = vadd.f32 %v242, %v607
      %v609 = vpop.f32.mrf.mxu0
      %610 = vmatprep.mubr.bf16.mxu0 %v492
      %611 = vmatmul.mubr.bf16.gmra.mxu0 %v354
      %v612 = vpop.f32.mrf.mxu0
      %v613 = vadd.f32 %v242, %v612
      %v614 = vpop.f32.mrf.mxu0
      %v615 = vpop.f32.mrf.mxu0
      %v616 = vadd.f32 %v242, %v615
      %v617 = vpop.f32.mrf.mxu0
      %618 = vmatprep.mubr.bf16.mxu0 %v495
      %619 = vmatmul.mubr.bf16.gmra.mxu0 %v356
      %v620 = vpop.f32.mrf.mxu0
      %v621 = vadd.f32 %v242, %v620
      %v622 = vpop.f32.mrf.mxu0
      %v623 = vpop.f32.mrf.mxu0
      %v624 = vadd.f32 %v242, %v623
      %v625 = vpop.f32.mrf.mxu0
      %626 = vmatprep.mubr.bf16.mxu0 %v498
      %627 = vmatmul.mubr.bf16.gmra.mxu0 %v358
      %v628 = vpop.f32.mrf.mxu0
      %v629 = vadd.f32 %v242, %v628
      %v630 = vpop.f32.mrf.mxu0
      %v631 = vpop.f32.mrf.mxu0
      %v632 = vadd.f32 %v242, %v631
      %v633 = vpop.f32.mrf.mxu0
      %634 = vmatprep.mubr.bf16.mxu0 %v501
      %635 = vmatmul.mubr.bf16.gmra.mxu0 %v360
      %v636 = vpop.f32.mrf.mxu0
      %v637 = vadd.f32 %v242, %v636
      %v638 = vpop.f32.mrf.mxu0
      %v639 = vpop.f32.mrf.mxu0
      %v640 = vadd.f32 %v242, %v639
      %v641 = vpop.f32.mrf.mxu0
      %642 = vmatprep.mubr.bf16.mxu0 %v504
      %643 = vmatmul.mubr.bf16.gmra.mxu0 %v362
      %v644 = vpop.f32.mrf.mxu0
      %v645 = vadd.f32 %v242, %v644
      %v646 = vpop.f32.mrf.mxu0
      %v647 = vpop.f32.mrf.mxu0
      %v648 = vadd.f32 %v242, %v647
      %v649 = vpop.f32.mrf.mxu0
      %650 = vmatprep.mubr.bf16.mxu0 %v507
      %651 = vmatmul.mubr.bf16.gmra.mxu0 %v364
      %v652 = vpop.f32.mrf.mxu0
      %v653 = vadd.f32 %v242, %v652
      %v654 = vpop.f32.mrf.mxu0
      %v655 = vpop.f32.mrf.mxu0
      %v656 = vadd.f32 %v242, %v655
      %v657 = vpop.f32.mrf.mxu0
      %658 = vmatprep.mubr.bf16.mxu0 %v510
      %659 = vmatmul.mubr.bf16.gmra.mxu0 %v366
      %v660 = vpop.f32.mrf.mxu0
      %v661 = vadd.f32 %v242, %v660
      %v662 = vpop.f32.mrf.mxu0
      %v663 = vpop.f32.mrf.mxu0
      %v664 = vadd.f32 %v242, %v663
      %v665 = vpop.f32.mrf.mxu0
      %666 = vmatprep.mubr.bf16.mxu0 %v513
      %667 = vmatmul.mubr.bf16.gmra.mxu0 %v368
      %v668 = vpop.f32.mrf.mxu0
      %v669 = vadd.f32 %v242, %v668
      %v670 = vpop.f32.mrf.mxu0
      %v671 = vpop.f32.mrf.mxu0
      %v672 = vadd.f32 %v242, %v671
      %v673 = vpop.f32.mrf.mxu0
      %674 = vmatprep.mubr.bf16.mxu0 %v516
      %675 = vmatmul.mubr.bf16.gmra.mxu0 %v370
      %v676 = vpop.f32.mrf.mxu0
      %v677 = vadd.f32 %v242, %v676
      %v678 = vpop.f32.mrf.mxu0
      %v679 = vpop.f32.mrf.mxu0
      %v680 = vadd.f32 %v242, %v679
      %v681 = vpop.f32.mrf.mxu0
      %682 = vdwg.mxu0
      %683 = vst [vmem:[%s175] sm:$0xff] %v557
      %684 = vst [vmem:[%s175 + $0x8] sm:$0xff] %v560
      %685 = vst [vmem:[%s175 + $0x10] sm:$0xff] %v565
      %686 = vst [vmem:[%s175 + $0x18] sm:$0xff] %v568
      %687 = vst [vmem:[%s175 + $0x20] sm:$0xff] %v573
      %688 = vst [vmem:[%s175 + $0x28] sm:$0xff] %v576
      %689 = vst [vmem:[%s175 + $0x30] sm:$0xff] %v581
      %690 = vst [vmem:[%s175 + $0x38] sm:$0xff] %v584
      %691 = vst [vmem:[%s175 + $0x40] sm:$0xff] %v589
      %692 = vst [vmem:[%s175 + $0x48] sm:$0xff] %v592
      %693 = vst [vmem:[%s175 + $0x50] sm:$0xff] %v597
      %694 = vst [vmem:[%s175 + $0x58] sm:$0xff] %v600
      %695 = vst [vmem:[%s175 + $0x60] sm:$0xff] %v605
      %696 = vst [vmem:[%s175 + $0x68] sm:$0xff] %v608
      %697 = vst [vmem:[%s175 + $0x70] sm:$0xff] %v613
      %698 = vst [vmem:[%s175 + $0x78] sm:$0xff] %v616
      %699 = vst [vmem:[%s175 + $0x80] sm:$0xff] %v621
      %700 = vst [vmem:[%s175 + $0x88] sm:$0xff] %v624
      %701 = vst [vmem:[%s175 + $0x90] sm:$0xff] %v629
      %702 = vst [vmem:[%s175 + $0x98] sm:$0xff] %v632
      %703 = vst [vmem:[%s175 + $0xa0] sm:$0xff] %v637
      %704 = vst [vmem:[%s175 + $0xa8] sm:$0xff] %v640
      %705 = vst [vmem:[%s175 + $0xb0] sm:$0xff] %v645
      %706 = vst [vmem:[%s175 + $0xb8] sm:$0xff] %v648
      %707 = vst [vmem:[%s175 + $0xc0] sm:$0xff] %v653
      %708 = vst [vmem:[%s175 + $0xc8] sm:$0xff] %v656
      %709 = vst [vmem:[%s175 + $0xd0] sm:$0xff] %v661
      %710 = vst [vmem:[%s175 + $0xd8] sm:$0xff] %v664
      %711 = vst [vmem:[%s175 + $0xe0] sm:$0xff] %v669
      %712 = vst [vmem:[%s175 + $0xe8] sm:$0xff] %v672
      %713 = vst [vmem:[%s175 + $0xf0] sm:$0xff] %v677
      %714 = vst [vmem:[%s175 + $0xf8] sm:$0xff] %v680
      %s715 = smul.u32 32, %s14
      %p716 = scmp.lt.s32.totalorder %s715, 63
      %s717 = scalar_select %p716, %s715, 63
      %s718 = smul.addr %s717, 8
      %s719 = scalar_lea.vmem %s3, %s718
      // Predicated region
      $region33: #{dsc_module.7} parent=31 // pred_check
        %p720 = pneg %p100
      $region34: #{dsc_module.7} parent=31 // pred_check_branch
        %722 = sbr.rel (%p720) target = $region36
      $region35: #{dsc_module.7} parent=31 // pred_region
        %s723 = smul.u32 32, %s14
      $region36: #{dsc_module.7} parent=31 // pred_fallthru
        _
    $region32: #{dsc_module.7} parent=5 // pred_fallthru
      _
    %p724 = scmp.le.s32.totalorder 2, %s9
    // Predicated region
    $region37: #{dsc_module.7} parent=5 // pred_check
      %p725 = pneg %p724
    $region38: #{dsc_module.7} parent=5 // pred_check_branch
      %727 = sbr.rel (%p725) target = $region40
    $region39: #{dsc_module.7} parent=5 // pred_region
      %s728 = ssub.s32 %s9, 2
      // Predicated region
      $region41: #{dsc_module.7} parent=39 // pred_check
        %p729 = pneg %p106
      $region42: #{dsc_module.7} parent=39 // pred_check_branch
        %731 = sbr.rel (%p729) target = $region44
      $region43: #{dsc_module.7} parent=39 // pred_region
        %s732 = smul.u32 32, %s15
        %p733 = scmp.lt.s32.totalorder %s732, 63
        %s734 = scalar_select %p733, %s732, 63
        %s735 = smul.addr %s734, 8
        %s736 = scalar_lea.vmem %s3, %s735
      $region44: #{dsc_module.7} parent=39 // pred_fallthru
        _
    $region40: #{dsc_module.7} parent=5 // pred_fallthru
      _
  $region6: #{dsc_module.7} parent=0 // loop_footer
    %s13 = sadd.s32 1, %s9
  $region7: #{dsc_module.7} parent=0 // loop_footer_branch
    %8 = sbr.rel target = $region3
  $region8: #{dsc_module.7} parent=0 // loop_exit
    _

</llo_original>
